<compile_context>
chip_gen: v7x
topology: tpu7x:2x2x1
jax: 0.10.0
libtpu: 0.0.40
codegen_flags: <defaults>
</compile_context>

<pallas_src>
import functools

import numpy as np
import jax
import jax.numpy as jnp
from jax.experimental import pallas as pl
from jax.experimental.pallas import tpu as pltpu


# ----------------------------- fused Pallas kernel -----------------------------

def _fused_forward_kernel(x_ref, w1_ref, b1_ref, wskip_ref, shift_ref,
                          wpol_ref, ssel_ref, ssum_ref, bias_ref,
                          o_ref, hpad_ref,
                          *, board, cin, cmid, reach, layers, export_mode):
    """Whole policy-net forward for ONE batch element, resident in VMEM.

    Activation layout: zero-padded 2-D slab `hpad` of shape
    (board + 2*reach, (board + 2*reach) * cmid) with
        activation[y, x, c]  <->  hpad[reach + y, (reach + x) * cmid + c],
    so the hidden state is a single lane-dense (board, board*cmid) tile.
    """
    f32 = jnp.float32
    k = 2 * reach + 1          # first / policy conv kernel size
    lane = board * cmid        # hidden slab lane width (128 for default config)
    r0 = reach                 # interior row offset inside hpad
    c0 = reach * cmid          # interior lane offset inside hpad

    # Zero the padded-activation scratch (its border must read as zero padding).
    hpad_ref[...] = jnp.zeros_like(hpad_ref)

    x2d = x_ref[0]             # (board + 2*reach, (board + 2*reach) * cin), f32

    # ---- x_sum: per-cell sum over the cin input channels of the inner board ----
    xin = x2d[reach:reach + board, :]
    xsum_board = jnp.dot(xin, ssum_ref[...],
                         preferred_element_type=f32)              # (board, board)

    # ---- first conv (KxK, padding = reach-1): single MXU matmul, bf16 x bf16 -> f32 ----
    wins = []
    for dy in range(k):
        for dx in range(k):
            wins.append(x2d[dy:dy + board, dx * cin:(dx + board) * cin])
    big = jnp.concatenate(wins, axis=1).astype(jnp.bfloat16)      # (board, k*k*board*cin)
    cur = jnp.dot(big, w1_ref[...], preferred_element_type=f32)   # (board, lane)
    cur = cur + b1_ref[...]
    hpad_ref[r0:r0 + board, c0:c0 + lane] = cur

    # ---- skip layers: 3x3 conv (one matmul, BN scale folded) + shift + residual + swish ----
    for l in range(layers):
        wins = []
        for dy in range(3):
            for dx in range(3):
                wins.append(hpad_ref[r0 - 1 + dy:r0 - 1 + dy + board,
                                     (r0 - 1 + dx) * cmid:(r0 - 1 + dx + board) * cmid])
        big = jnp.concatenate(wins, axis=1).astype(jnp.bfloat16)         # (board, 9*lane)
        conv = jnp.dot(big, wskip_ref[l], preferred_element_type=f32)    # (board, lane)
        y = cur + conv + shift_ref[l:l + 1, :]
        cur = y * jax.nn.sigmoid(y)                                      # swish
        hpad_ref[r0:r0 + board, c0:c0 + lane] = cur

    # ---- policy head (cmid -> 1, padding = reach): VPU tap-accumulate + lane-group reduce ----
    acc = jnp.zeros((board, lane), f32)
    t = 0
    for dy in range(k):
        for dx in range(k):
            win = hpad_ref[dy:dy + board, dx * cmid:(dx + board) * cmid]
            acc = acc + win * wpol_ref[t:t + 1, :]
            t += 1
    pol = jnp.dot(acc, ssel_ref[...], preferred_element_type=f32)        # (board, board)
    pol = pol + bias_ref[...]

    if export_mode:
        o_ref[0] = pol
    else:
        total = jnp.sum(xsum_board, keepdims=True)                       # (1, 1)
        factor = jnp.exp(jnp.tanh((total - 1.0) * 1000.0) * 10.0)
        # illegal = x_sum * factor - x_sum  ==  x_sum * (factor - 1)
        o_ref[0] = pol - xsum_board * (factor - 1.0)


# ------------------------------ parameter packing ------------------------------

def _taps_from_oihw(w_oihw):
    """(Cout, Cin, K, K) -> (K*K, Cin, Cout), tap order dy-major / dx-minor."""
    co, ci, kh, kw = w_oihw.shape
    return jnp.transpose(w_oihw, (2, 3, 1, 0)).reshape(kh * kw, ci, co)


def _oihw_from_taps(w_taps):
    kk, ci, co = w_taps.shape
    ks = int(round(kk ** 0.5))
    return jnp.transpose(w_taps.reshape(ks, ks, ci, co), (3, 2, 0, 1))


def _block_diag_taps(w_taps, board):
    """(taps, Cin, Cout) -> (taps*board*Cin, board*Cout): per-tap kron(I_board, W_t)."""
    taps, ci, co = w_taps.shape
    eye = jnp.eye(board, dtype=w_taps.dtype)
    big = jax.vmap(lambda wt: jnp.kron(eye, wt))(w_taps)    # (taps, board*ci, board*co)
    return big.reshape(taps * board * ci, board * co)


def prepare_kernel_params(params, board, reach):
    """PyTorch-layout params -> fused-kernel operands (block-diag bf16 weights etc.)."""
    cin = params["conv_w"].shape[1]
    cmid = params["conv_w"].shape[2]
    lane = board * cmid

    w1 = _block_diag_taps(params["conv_w"], board).astype(jnp.bfloat16)
    b1 = jnp.tile(params["conv_b"], board).reshape(1, lane).astype(jnp.float32)

    wsk, shifts = [], []
    for sp in params["skip"]:
        # fold BN scale (and SkipLayerBias scale=1) into the conv weights
        wt = sp["w"] * sp["scale"][None, None, :]
        wsk.append(_block_diag_taps(wt, board))
        shifts.append(jnp.tile(sp["shift"], board))
    wskip = jnp.stack(wsk, axis=0).astype(jnp.bfloat16)      # (layers, 9*lane, lane)
    shift = jnp.stack(shifts, axis=0).astype(jnp.float32)    # (layers, lane)

    wpol = jnp.tile(params["policy_w"][:, :, 0], (1, board)).astype(jnp.float32)  # (kk, lane)
    ssel = jnp.kron(jnp.eye(board, dtype=jnp.float32),
                    jnp.ones((cmid, 1), jnp.float32))                             # (lane, board)

    hp = board + 2 * reach
    rows = jnp.arange(hp * cin) // cin - reach
    ssum = (rows[:, None] == jnp.arange(board)[None, :]).astype(jnp.float32)      # (hp*cin, board)

    bias_board = params["bias"].reshape(board, board).astype(jnp.float32)
    return dict(w1=w1, b1=b1, wskip=wskip, shift=shift,
                wpol=wpol, ssel=ssel, ssum=ssum, bias=bias_board)


# ----------------------------------- forward -----------------------------------

def conv_forward(x_nchw, kparams, *, board, reach, layers, cmid, export_mode=False):
    """Matches Conv.forward. x_nchw: (B, 2, board+2, board+2). Returns (B, board**2)."""
    b, cin = x_nchw.shape[0], x_nchw.shape[1]
    k = 2 * reach + 1
    pad1 = reach - 1
    lane = board * cmid
    hp = board + 2 * reach            # padded spatial extent (input and activations)

    x = jnp.transpose(x_nchw, (0, 2, 3, 1)).astype(jnp.float32)          # NHWC
    xp = jnp.pad(x, ((0, 0), (pad1, pad1), (pad1, pad1), (0, 0)))        # (b, hp, hp, cin)
    xp2d = xp.reshape(b, hp, hp * cin)

    kernel = functools.partial(
        _fused_forward_kernel, board=board, cin=cin, cmid=cmid,
        reach=reach, layers=layers, export_mode=export_mode)

    out = pl.pallas_call(
        kernel,
        out_shape=jax.ShapeDtypeStruct((b, board, board), jnp.float32),
        grid=(b,),
        in_specs=[
            pl.BlockSpec((1, hp, hp * cin), lambda i: (i, 0, 0)),         # padded input
            pl.BlockSpec((k * k * board * cin, lane), lambda i: (0, 0)),  # first-conv weights
            pl.BlockSpec((1, lane), lambda i: (0, 0)),                    # first-conv bias row
            pl.BlockSpec((layers, 9 * lane, lane), lambda i: (0, 0, 0)),  # skip weights
            pl.BlockSpec((layers, lane), lambda i: (0, 0)),               # skip BN shift rows
            pl.BlockSpec((k * k, lane), lambda i: (0, 0)),                # policy tap rows
            pl.BlockSpec((lane, board), lambda i: (0, 0)),                # lane-group select
            pl.BlockSpec((hp * cin, board), lambda i: (0, 0)),            # x_sum select
            pl.BlockSpec((board, board), lambda i: (0, 0)),               # policy bias board
        ],
        out_specs=pl.BlockSpec((1, board, board), lambda i: (i, 0, 0)),
        scratch_shapes=[pltpu.VMEM((hp, hp * cmid), jnp.float32)],
        compiler_params=pltpu.CompilerParams(
            dimension_semantics=("parallel",)),   # v7x: one batch element per TensorCore
    )(xp2d, kparams["w1"], kparams["b1"], kparams["wskip"], kparams["shift"],
      kparams["wpol"], kparams["ssel"], kparams["ssum"], kparams["bias"])
    return out.reshape(b, board * board)


# ------------------------------ params & reference ------------------------------

def init_params(key, board_size, layers, cmid, reach):
    """Synthetic parameters with the same shapes/init style as the PyTorch module."""
    k = 2 * reach + 1
    keys = jax.random.split(key, 3 + layers)

    def conv_taps(kk_key, cout, cin, ks):
        fan_in = cin * ks * ks
        bound = 1.0 / jnp.sqrt(jnp.float32(fan_in))
        w = jax.random.uniform(kk_key, (cout, cin, ks, ks), jnp.float32, -bound, bound)
        return _taps_from_oihw(w)                         # (ks*ks, cin, cout)

    eps = 1e-5
    params = {
        "conv_w": conv_taps(keys[0], cmid, 2, k),
        "conv_b": jax.random.uniform(keys[1], (cmid,), jnp.float32, -0.1, 0.1),
        "policy_w": conv_taps(keys[2], 1, cmid, k),
        "bias": jnp.zeros((board_size ** 2,), jnp.float32),   # nn.Parameter(torch.zeros(...))
        "skip": [],
    }
    for i in range(layers):
        gamma = jnp.ones((cmid,), jnp.float32)
        beta = jnp.zeros((cmid,), jnp.float32)
        running_mean = jnp.zeros((cmid,), jnp.float32)
        running_var = jnp.ones((cmid,), jnp.float32)
        scale = gamma / jnp.sqrt(running_var + eps)
        shift = beta - running_mean * scale
        params["skip"].append({
            "w": conv_taps(keys[3 + i], cmid, cmid, 3),
            "scale": scale,
            "shift": shift,
        })
    return params


def reference_forward(x_nchw, params, board, reach, export_mode):
    """Pure-JAX (XLA conv) reference of Conv.forward for verification."""
    n = board * board
    x = x_nchw.astype(jnp.float32)
    x_sum = jnp.sum(x[:, :, 1:-1, 1:-1], axis=1).reshape(-1, n)

    def conv(inp, w_taps, pad):
        w = _oihw_from_taps(w_taps)
        return jax.lax.conv_general_dilated(
            inp, w, (1, 1), [(pad, pad), (pad, pad)],
            dimension_numbers=("NCHW", "OIHW", "NCHW"))

    h = conv(x, params["conv_w"], reach - 1) + params["conv_b"][None, :, None, None]
    for sp in params["skip"]:
        z = conv(h, sp["w"], 1)
        z = z * sp["scale"][None, :, None, None] + sp["shift"][None, :, None, None]
        y = h + z
        h = y * jax.nn.sigmoid(y)
    pol = conv(h, params["policy_w"], reach).reshape(-1, n)
    out = pol + params["bias"][None, :]
    if export_mode:
        return out
    factor = jnp.exp(jnp.tanh((jnp.sum(x_sum, axis=1, keepdims=True) - 1.0) * 1000.0) * 10.0)
    illegal = x_sum * factor - x_sum
    return out - illegal


# ------------------------------------- main -------------------------------------

if __name__ == "__main__":
    board_size = 8
    layers = 2
    intermediate_channels = 16
    reach = 2
    export_mode = False
    batch = 2

    key = jax.random.PRNGKey(0)
    kx, kp = jax.random.split(key)
    # Module expects input of spatial size board_size + 2 (the first conv shrinks by 2).
    x = jax.random.normal(kx, (batch, 2, board_size + 2, board_size + 2), jnp.float32)

    params = init_params(kp, board_size, layers, intermediate_channels, reach)
    kparams = prepare_kernel_params(params, board_size, reach)

    fwd = jax.jit(functools.partial(
        conv_forward, board=board_size, reach=reach, layers=layers,
        cmid=intermediate_channels, export_mode=export_mode))
    out = jax.block_until_ready(fwd(x, kparams))

    assert out.shape == (batch, board_size ** 2)
    assert bool(jnp.all(jnp.isfinite(out)))

    ref = reference_forward(x, params, board_size, reach, export_mode)
    np.testing.assert_allclose(np.asarray(out), np.asarray(ref), rtol=2e-2, atol=2e-1)
    print("KERNEL_OK")
</pallas_src>

<mosaic_0001>
module attributes {stable_mosaic.version = 11 : i64} {
  func.func @_fused_forward_kernel(%arg0: i32, %arg1: memref<1x12x24xf32, #tpu.memory_space<vmem>>, %arg2: memref<400x128xbf16, #tpu.memory_space<vmem>>, %arg3: memref<1x128xf32, #tpu.memory_space<vmem>>, %arg4: memref<2x1152x128xbf16, #tpu.memory_space<vmem>>, %arg5: memref<2x128xf32, #tpu.memory_space<vmem>>, %arg6: memref<25x128xf32, #tpu.memory_space<vmem>>, %arg7: memref<128x8xf32, #tpu.memory_space<vmem>>, %arg8: memref<24x8xf32, #tpu.memory_space<vmem>>, %arg9: memref<8x8xf32, #tpu.memory_space<vmem>>, %arg10: memref<1x8x8xf32, #tpu.memory_space<vmem>>, %arg11: memref<12x192xf32, #tpu.memory_space<vmem>>) attributes {dimension_semantics = [#tpu.dimension_semantics<parallel>], iteration_bounds = array<i64: 2>, scalar_prefetch = 0 : i64, scratch_operands = 1 : i64, tpu.core_type = #tpu.core_type<tc>, window_params = [{transform_indices = @transform_0, window_bounds = array<i64: 1, 12, 24>}, {pipeline_mode = #tpu.pipeline_mode<synchronous>, transform_indices = @transform_1, window_bounds = array<i64: 400, 128>}, {pipeline_mode = #tpu.pipeline_mode<synchronous>, transform_indices = @transform_2, window_bounds = array<i64: 1, 128>}, {pipeline_mode = #tpu.pipeline_mode<synchronous>, transform_indices = @transform_3, window_bounds = array<i64: 2, 1152, 128>}, {pipeline_mode = #tpu.pipeline_mode<synchronous>, transform_indices = @transform_4, window_bounds = array<i64: 2, 128>}, {pipeline_mode = #tpu.pipeline_mode<synchronous>, transform_indices = @transform_5, window_bounds = array<i64: 25, 128>}, {pipeline_mode = #tpu.pipeline_mode<synchronous>, transform_indices = @transform_6, window_bounds = array<i64: 128, 8>}, {pipeline_mode = #tpu.pipeline_mode<synchronous>, transform_indices = @transform_7, window_bounds = array<i64: 24, 8>}, {pipeline_mode = #tpu.pipeline_mode<synchronous>, transform_indices = @transform_8, window_bounds = array<i64: 8, 8>}, {transform_indices = @transform_9, window_bounds = array<i64: 1, 8, 8>}]} {
    %cst = arith.constant 0.000000e+00 : f32
    %0 = vector.broadcast %cst : f32 to vector<12x192xf32>
    %c0 = arith.constant 0 : index
    %c0_0 = arith.constant 0 : index
    %1 = vector.load %arg11[%c0, %c0_0] : memref<12x192xf32, #tpu.memory_space<vmem>>, vector<12x192xf32>
    tpu.vector_store %arg11[%c0, %c0_0], %0 {strides = array<i32>} : memref<12x192xf32, #tpu.memory_space<vmem>>, vector<12x192xf32>,
    %c0_1 = arith.constant 0 : index
    %c0_2 = arith.constant 0 : index
    %c0_3 = arith.constant 0 : index
    %2 = vector.load %arg1[%c0_1, %c0_2, %c0_3] : memref<1x12x24xf32, #tpu.memory_space<vmem>>, vector<1x12x24xf32>
    %3 = vector.shape_cast %2 : vector<1x12x24xf32> to vector<12x24xf32>
    %4 = vector.extract_strided_slice %3 {offsets = [2, 0], sizes = [8, 24], strides = [1, 1]} : vector<12x24xf32> to vector<8x24xf32>
    %c0_4 = arith.constant 0 : index
    %c0_5 = arith.constant 0 : index
    %5 = vector.load %arg8[%c0_4, %c0_5] : memref<24x8xf32, #tpu.memory_space<vmem>>, vector<24x8xf32>
    %cst_6 = arith.constant dense<0.000000e+00> : vector<8x8xf32>
    %6 = tpu.matmul %4, %5, %cst_6 {dimension_numbers = #tpu.dot_dimension_numbers<[1], [0], [0], [1], [0, 0, 1, 1], [], []>} : vector<8x24xf32>, vector<24x8xf32>, vector<8x8xf32> -> vector<8x8xf32>
    %7 = vector.extract_strided_slice %3 {offsets = [0, 0], sizes = [8, 16], strides = [1, 1]} : vector<12x24xf32> to vector<8x16xf32>
    %8 = vector.extract_strided_slice %3 {offsets = [0, 2], sizes = [8, 16], strides = [1, 1]} : vector<12x24xf32> to vector<8x16xf32>
    %9 = vector.extract_strided_slice %3 {offsets = [0, 4], sizes = [8, 16], strides = [1, 1]} : vector<12x24xf32> to vector<8x16xf32>
    %10 = vector.extract_strided_slice %3 {offsets = [0, 6], sizes = [8, 16], strides = [1, 1]} : vector<12x24xf32> to vector<8x16xf32>
    %11 = vector.extract_strided_slice %3 {offsets = [0, 8], sizes = [8, 16], strides = [1, 1]} : vector<12x24xf32> to vector<8x16xf32>
    %12 = vector.extract_strided_slice %3 {offsets = [1, 0], sizes = [8, 16], strides = [1, 1]} : vector<12x24xf32> to vector<8x16xf32>
    %13 = vector.extract_strided_slice %3 {offsets = [1, 2], sizes = [8, 16], strides = [1, 1]} : vector<12x24xf32> to vector<8x16xf32>
    %14 = vector.extract_strided_slice %3 {offsets = [1, 4], sizes = [8, 16], strides = [1, 1]} : vector<12x24xf32> to vector<8x16xf32>
    %15 = vector.extract_strided_slice %3 {offsets = [1, 6], sizes = [8, 16], strides = [1, 1]} : vector<12x24xf32> to vector<8x16xf32>
    %16 = vector.extract_strided_slice %3 {offsets = [1, 8], sizes = [8, 16], strides = [1, 1]} : vector<12x24xf32> to vector<8x16xf32>
    %17 = vector.extract_strided_slice %3 {offsets = [2, 0], sizes = [8, 16], strides = [1, 1]} : vector<12x24xf32> to vector<8x16xf32>
    %18 = vector.extract_strided_slice %3 {offsets = [2, 2], sizes = [8, 16], strides = [1, 1]} : vector<12x24xf32> to vector<8x16xf32>
    %19 = vector.extract_strided_slice %3 {offsets = [2, 4], sizes = [8, 16], strides = [1, 1]} : vector<12x24xf32> to vector<8x16xf32>
    %20 = vector.extract_strided_slice %3 {offsets = [2, 6], sizes = [8, 16], strides = [1, 1]} : vector<12x24xf32> to vector<8x16xf32>
    %21 = vector.extract_strided_slice %3 {offsets = [2, 8], sizes = [8, 16], strides = [1, 1]} : vector<12x24xf32> to vector<8x16xf32>
    %22 = vector.extract_strided_slice %3 {offsets = [3, 0], sizes = [8, 16], strides = [1, 1]} : vector<12x24xf32> to vector<8x16xf32>
    %23 = vector.extract_strided_slice %3 {offsets = [3, 2], sizes = [8, 16], strides = [1, 1]} : vector<12x24xf32> to vector<8x16xf32>
    %24 = vector.extract_strided_slice %3 {offsets = [3, 4], sizes = [8, 16], strides = [1, 1]} : vector<12x24xf32> to vector<8x16xf32>
    %25 = vector.extract_strided_slice %3 {offsets = [3, 6], sizes = [8, 16], strides = [1, 1]} : vector<12x24xf32> to vector<8x16xf32>
    %26 = vector.extract_strided_slice %3 {offsets = [3, 8], sizes = [8, 16], strides = [1, 1]} : vector<12x24xf32> to vector<8x16xf32>
    %27 = vector.extract_strided_slice %3 {offsets = [4, 0], sizes = [8, 16], strides = [1, 1]} : vector<12x24xf32> to vector<8x16xf32>
    %28 = vector.extract_strided_slice %3 {offsets = [4, 2], sizes = [8, 16], strides = [1, 1]} : vector<12x24xf32> to vector<8x16xf32>
    %29 = vector.extract_strided_slice %3 {offsets = [4, 4], sizes = [8, 16], strides = [1, 1]} : vector<12x24xf32> to vector<8x16xf32>
    %30 = vector.extract_strided_slice %3 {offsets = [4, 6], sizes = [8, 16], strides = [1, 1]} : vector<12x24xf32> to vector<8x16xf32>
    %31 = vector.extract_strided_slice %3 {offsets = [4, 8], sizes = [8, 16], strides = [1, 1]} : vector<12x24xf32> to vector<8x16xf32>
    %32 = tpu.concatenate %7, %8, %9, %10, %11, %12, %13, %14, %15, %16, %17, %18, %19, %20, %21, %22 in 1 : vector<8x16xf32>, vector<8x16xf32>, vector<8x16xf32>, vector<8x16xf32>, vector<8x16xf32>, vector<8x16xf32>, vector<8x16xf32>, vector<8x16xf32>, vector<8x16xf32>, vector<8x16xf32>, vector<8x16xf32>, vector<8x16xf32>, vector<8x16xf32>, vector<8x16xf32>, vector<8x16xf32>, vector<8x16xf32> -> vector<8x256xf32>
    %33 = tpu.concatenate %23, %24, %25, %26, %27, %28, %29, %30, %31 in 1 : vector<8x16xf32>, vector<8x16xf32>, vector<8x16xf32>, vector<8x16xf32>, vector<8x16xf32>, vector<8x16xf32>, vector<8x16xf32>, vector<8x16xf32>, vector<8x16xf32> -> vector<8x144xf32>
    %34 = tpu.concatenate %32, %33 in 1 : vector<8x256xf32>, vector<8x144xf32> -> vector<8x400xf32>
    %35 = arith.truncf %34 : vector<8x400xf32> to vector<8x400xbf16>
    %c0_7 = arith.constant 0 : index
    %c0_8 = arith.constant 0 : index
    %36 = vector.load %arg2[%c0_7, %c0_8] : memref<400x128xbf16, #tpu.memory_space<vmem>>, vector<400x128xbf16>
    %cst_9 = arith.constant dense<0.000000e+00> : vector<8x128xf32>
    %37 = tpu.matmul %35, %36, %cst_9 {dimension_numbers = #tpu.dot_dimension_numbers<[1], [0], [0], [1], [0, 0, 1, 1], [], []>} : vector<8x400xbf16>, vector<400x128xbf16>, vector<8x128xf32> -> vector<8x128xf32>
    %c0_10 = arith.constant 0 : index
    %c0_11 = arith.constant 0 : index
    %38 = vector.load %arg3[%c0_10, %c0_11] : memref<1x128xf32, #tpu.memory_space<vmem>>, vector<1x128xf32>
    %39 = vector.broadcast %38 : vector<1x128xf32> to vector<8x128xf32>
    %40 = arith.addf %37, %39 : vector<8x128xf32>
    %c2 = arith.constant 2 : index
    %c32 = arith.constant 32 : index
    %41 = vector.load %arg11[%c2, %c32] : memref<12x192xf32, #tpu.memory_space<vmem>>, vector<8x128xf32>
    tpu.vector_store %arg11[%c2, %c32], %40 {strides = array<i32>} : memref<12x192xf32, #tpu.memory_space<vmem>>, vector<8x128xf32>,
    %c1 = arith.constant 1 : index
    %c16 = arith.constant 16 : index
    %42 = vector.load %arg11[%c1, %c16] : memref<12x192xf32, #tpu.memory_space<vmem>>, vector<8x128xf32>
    %c1_12 = arith.constant 1 : index
    %c32_13 = arith.constant 32 : index
    %43 = vector.load %arg11[%c1_12, %c32_13] : memref<12x192xf32, #tpu.memory_space<vmem>>, vector<8x128xf32>
    %c1_14 = arith.constant 1 : index
    %c48 = arith.constant 48 : index
    %44 = vector.load %arg11[%c1_14, %c48] : memref<12x192xf32, #tpu.memory_space<vmem>>, vector<8x128xf32>
    %c2_15 = arith.constant 2 : index
    %c16_16 = arith.constant 16 : index
    %45 = vector.load %arg11[%c2_15, %c16_16] : memref<12x192xf32, #tpu.memory_space<vmem>>, vector<8x128xf32>
    %c2_17 = arith.constant 2 : index
    %c32_18 = arith.constant 32 : index
    %46 = vector.load %arg11[%c2_17, %c32_18] : memref<12x192xf32, #tpu.memory_space<vmem>>, vector<8x128xf32>
    %c2_19 = arith.constant 2 : index
    %c48_20 = arith.constant 48 : index
    %47 = vector.load %arg11[%c2_19, %c48_20] : memref<12x192xf32, #tpu.memory_space<vmem>>, vector<8x128xf32>
    %c3 = arith.constant 3 : index
    %c16_21 = arith.constant 16 : index
    %48 = vector.load %arg11[%c3, %c16_21] : memref<12x192xf32, #tpu.memory_space<vmem>>, vector<8x128xf32>
    %c3_22 = arith.constant 3 : index
    %c32_23 = arith.constant 32 : index
    %49 = vector.load %arg11[%c3_22, %c32_23] : memref<12x192xf32, #tpu.memory_space<vmem>>, vector<8x128xf32>
    %c3_24 = arith.constant 3 : index
    %c48_25 = arith.constant 48 : index
    %50 = vector.load %arg11[%c3_24, %c48_25] : memref<12x192xf32, #tpu.memory_space<vmem>>, vector<8x128xf32>
    %51 = tpu.concatenate %42, %43, %44, %45, %46, %47, %48, %49, %50 in 1 : vector<8x128xf32>, vector<8x128xf32>, vector<8x128xf32>, vector<8x128xf32>, vector<8x128xf32>, vector<8x128xf32>, vector<8x128xf32>, vector<8x128xf32>, vector<8x128xf32> -> vector<8x1152xf32>
    %52 = arith.truncf %51 : vector<8x1152xf32> to vector<8x1152xbf16>
    %c0_26 = arith.constant 0 : index
    %c0_27 = arith.constant 0 : index
    %c0_28 = arith.constant 0 : index
    %53 = vector.load %arg4[%c0_26, %c0_27, %c0_28] : memref<2x1152x128xbf16, #tpu.memory_space<vmem>>, vector<1x1152x128xbf16>
    %54 = vector.shape_cast %53 : vector<1x1152x128xbf16> to vector<1152x128xbf16>
    %cst_29 = arith.constant dense<0.000000e+00> : vector<8x128xf32>
    %55 = tpu.matmul %52, %54, %cst_29 {dimension_numbers = #tpu.dot_dimension_numbers<[1], [0], [0], [1], [0, 0, 1, 1], [], []>} : vector<8x1152xbf16>, vector<1152x128xbf16>, vector<8x128xf32> -> vector<8x128xf32>
    %56 = arith.addf %40, %55 : vector<8x128xf32>
    %c0_30 = arith.constant 0 : index
    %c0_31 = arith.constant 0 : index
    %57 = vector.load %arg5[%c0_30, %c0_31] : memref<2x128xf32, #tpu.memory_space<vmem>>, vector<1x128xf32>
    %58 = vector.broadcast %57 : vector<1x128xf32> to vector<8x128xf32>
    %59 = arith.addf %56, %58 : vector<8x128xf32>
    %60 = arith.negf %59 : vector<8x128xf32>
    %61 = math.exp %60 : vector<8x128xf32>
    %cst_32 = arith.constant 1.000000e+00 : f32
    %62 = vector.broadcast %cst_32 : f32 to vector<8x128xf32>
    %63 = arith.addf %62, %61 : vector<8x128xf32>
    %64 = arith.divf %62, %63 : vector<8x128xf32>
    %65 = arith.mulf %59, %64 : vector<8x128xf32>
    %c2_33 = arith.constant 2 : index
    %c32_34 = arith.constant 32 : index
    %66 = vector.load %arg11[%c2_33, %c32_34] : memref<12x192xf32, #tpu.memory_space<vmem>>, vector<8x128xf32>
    tpu.vector_store %arg11[%c2_33, %c32_34], %65 {strides = array<i32>} : memref<12x192xf32, #tpu.memory_space<vmem>>, vector<8x128xf32>,
    %c1_35 = arith.constant 1 : index
    %c16_36 = arith.constant 16 : index
    %67 = vector.load %arg11[%c1_35, %c16_36] : memref<12x192xf32, #tpu.memory_space<vmem>>, vector<8x128xf32>
    %c1_37 = arith.constant 1 : index
    %c32_38 = arith.constant 32 : index
    %68 = vector.load %arg11[%c1_37, %c32_38] : memref<12x192xf32, #tpu.memory_space<vmem>>, vector<8x128xf32>
    %c1_39 = arith.constant 1 : index
    %c48_40 = arith.constant 48 : index
    %69 = vector.load %arg11[%c1_39, %c48_40] : memref<12x192xf32, #tpu.memory_space<vmem>>, vector<8x128xf32>
    %c2_41 = arith.constant 2 : index
    %c16_42 = arith.constant 16 : index
    %70 = vector.load %arg11[%c2_41, %c16_42] : memref<12x192xf32, #tpu.memory_space<vmem>>, vector<8x128xf32>
    %c2_43 = arith.constant 2 : index
    %c32_44 = arith.constant 32 : index
    %71 = vector.load %arg11[%c2_43, %c32_44] : memref<12x192xf32, #tpu.memory_space<vmem>>, vector<8x128xf32>
    %c2_45 = arith.constant 2 : index
    %c48_46 = arith.constant 48 : index
    %72 = vector.load %arg11[%c2_45, %c48_46] : memref<12x192xf32, #tpu.memory_space<vmem>>, vector<8x128xf32>
    %c3_47 = arith.constant 3 : index
    %c16_48 = arith.constant 16 : index
    %73 = vector.load %arg11[%c3_47, %c16_48] : memref<12x192xf32, #tpu.memory_space<vmem>>, vector<8x128xf32>
    %c3_49 = arith.constant 3 : index
    %c32_50 = arith.constant 32 : index
    %74 = vector.load %arg11[%c3_49, %c32_50] : memref<12x192xf32, #tpu.memory_space<vmem>>, vector<8x128xf32>
    %c3_51 = arith.constant 3 : index
    %c48_52 = arith.constant 48 : index
    %75 = vector.load %arg11[%c3_51, %c48_52] : memref<12x192xf32, #tpu.memory_space<vmem>>, vector<8x128xf32>
    %76 = tpu.concatenate %67, %68, %69, %70, %71, %72, %73, %74, %75 in 1 : vector<8x128xf32>, vector<8x128xf32>, vector<8x128xf32>, vector<8x128xf32>, vector<8x128xf32>, vector<8x128xf32>, vector<8x128xf32>, vector<8x128xf32>, vector<8x128xf32> -> vector<8x1152xf32>
    %77 = arith.truncf %76 : vector<8x1152xf32> to vector<8x1152xbf16>
    %c1_53 = arith.constant 1 : index
    %c0_54 = arith.constant 0 : index
    %c0_55 = arith.constant 0 : index
    %78 = vector.load %arg4[%c1_53, %c0_54, %c0_55] : memref<2x1152x128xbf16, #tpu.memory_space<vmem>>, vector<1x1152x128xbf16>
    %79 = vector.shape_cast %78 : vector<1x1152x128xbf16> to vector<1152x128xbf16>
    %cst_56 = arith.constant dense<0.000000e+00> : vector<8x128xf32>
    %80 = tpu.matmul %77, %79, %cst_56 {dimension_numbers = #tpu.dot_dimension_numbers<[1], [0], [0], [1], [0, 0, 1, 1], [], []>} : vector<8x1152xbf16>, vector<1152x128xbf16>, vector<8x128xf32> -> vector<8x128xf32>
    %81 = arith.addf %65, %80 : vector<8x128xf32>
    %c1_57 = arith.constant 1 : index
    %c0_58 = arith.constant 0 : index
    %82 = vector.load %arg5[%c1_57, %c0_58] : memref<2x128xf32, #tpu.memory_space<vmem>>, vector<1x128xf32>
    %83 = vector.broadcast %82 : vector<1x128xf32> to vector<8x128xf32>
    %84 = arith.addf %81, %83 : vector<8x128xf32>
    %85 = arith.negf %84 : vector<8x128xf32>
    %86 = math.exp %85 : vector<8x128xf32>
    %cst_59 = arith.constant 1.000000e+00 : f32
    %87 = vector.broadcast %cst_59 : f32 to vector<8x128xf32>
    %88 = arith.addf %87, %86 : vector<8x128xf32>
    %89 = arith.divf %87, %88 : vector<8x128xf32>
    %90 = arith.mulf %84, %89 : vector<8x128xf32>
    %c2_60 = arith.constant 2 : index
    %c32_61 = arith.constant 32 : index
    %91 = vector.load %arg11[%c2_60, %c32_61] : memref<12x192xf32, #tpu.memory_space<vmem>>, vector<8x128xf32>
    tpu.vector_store %arg11[%c2_60, %c32_61], %90 {strides = array<i32>} : memref<12x192xf32, #tpu.memory_space<vmem>>, vector<8x128xf32>,
    %cst_62 = arith.constant 0.000000e+00 : f32
    %92 = vector.broadcast %cst_62 : f32 to vector<8x128xf32>
    %c0_63 = arith.constant 0 : index
    %c0_64 = arith.constant 0 : index
    %93 = vector.load %arg11[%c0_63, %c0_64] : memref<12x192xf32, #tpu.memory_space<vmem>>, vector<8x128xf32>
    %c0_65 = arith.constant 0 : index
    %c0_66 = arith.constant 0 : index
    %94 = vector.load %arg6[%c0_65, %c0_66] : memref<25x128xf32, #tpu.memory_space<vmem>>, vector<1x128xf32>
    %95 = vector.broadcast %94 : vector<1x128xf32> to vector<8x128xf32>
    %96 = arith.mulf %93, %95 : vector<8x128xf32>
    %97 = arith.addf %92, %96 : vector<8x128xf32>
    %c0_67 = arith.constant 0 : index
    %c16_68 = arith.constant 16 : index
    %98 = vector.load %arg11[%c0_67, %c16_68] : memref<12x192xf32, #tpu.memory_space<vmem>>, vector<8x128xf32>
    %c1_69 = arith.constant 1 : index
    %c0_70 = arith.constant 0 : index
    %99 = vector.load %arg6[%c1_69, %c0_70] : memref<25x128xf32, #tpu.memory_space<vmem>>, vector<1x128xf32>
    %100 = vector.broadcast %99 : vector<1x128xf32> to vector<8x128xf32>
    %101 = arith.mulf %98, %100 : vector<8x128xf32>
    %102 = arith.addf %97, %101 : vector<8x128xf32>
    %c0_71 = arith.constant 0 : index
    %c32_72 = arith.constant 32 : index
    %103 = vector.load %arg11[%c0_71, %c32_72] : memref<12x192xf32, #tpu.memory_space<vmem>>, vector<8x128xf32>
    %c2_73 = arith.constant 2 : index
    %c0_74 = arith.constant 0 : index
    %104 = vector.load %arg6[%c2_73, %c0_74] : memref<25x128xf32, #tpu.memory_space<vmem>>, vector<1x128xf32>
    %105 = vector.broadcast %104 : vector<1x128xf32> to vector<8x128xf32>
    %106 = arith.mulf %103, %105 : vector<8x128xf32>
    %107 = arith.addf %102, %106 : vector<8x128xf32>
    %c0_75 = arith.constant 0 : index
    %c48_76 = arith.constant 48 : index
    %108 = vector.load %arg11[%c0_75, %c48_76] : memref<12x192xf32, #tpu.memory_space<vmem>>, vector<8x128xf32>
    %c3_77 = arith.constant 3 : index
    %c0_78 = arith.constant 0 : index
    %109 = vector.load %arg6[%c3_77, %c0_78] : memref<25x128xf32, #tpu.memory_space<vmem>>, vector<1x128xf32>
    %110 = vector.broadcast %109 : vector<1x128xf32> to vector<8x128xf32>
    %111 = arith.mulf %108, %110 : vector<8x128xf32>
    %112 = arith.addf %107, %111 : vector<8x128xf32>
    %c0_79 = arith.constant 0 : index
    %c64 = arith.constant 64 : index
    %113 = vector.load %arg11[%c0_79, %c64] : memref<12x192xf32, #tpu.memory_space<vmem>>, vector<8x128xf32>
    %c4 = arith.constant 4 : index
    %c0_80 = arith.constant 0 : index
    %114 = vector.load %arg6[%c4, %c0_80] : memref<25x128xf32, #tpu.memory_space<vmem>>, vector<1x128xf32>
    %115 = vector.broadcast %114 : vector<1x128xf32> to vector<8x128xf32>
    %116 = arith.mulf %113, %115 : vector<8x128xf32>
    %117 = arith.addf %112, %116 : vector<8x128xf32>
    %c1_81 = arith.constant 1 : index
    %c0_82 = arith.constant 0 : index
    %118 = vector.load %arg11[%c1_81, %c0_82] : memref<12x192xf32, #tpu.memory_space<vmem>>, vector<8x128xf32>
    %c5 = arith.constant 5 : index
    %c0_83 = arith.constant 0 : index
    %119 = vector.load %arg6[%c5, %c0_83] : memref<25x128xf32, #tpu.memory_space<vmem>>, vector<1x128xf32>
    %120 = vector.broadcast %119 : vector<1x128xf32> to vector<8x128xf32>
    %121 = arith.mulf %118, %120 : vector<8x128xf32>
    %122 = arith.addf %117, %121 : vector<8x128xf32>
    %c1_84 = arith.constant 1 : index
    %c16_85 = arith.constant 16 : index
    %123 = vector.load %arg11[%c1_84, %c16_85] : memref<12x192xf32, #tpu.memory_space<vmem>>, vector<8x128xf32>
    %c6 = arith.constant 6 : index
    %c0_86 = arith.constant 0 : index
    %124 = vector.load %arg6[%c6, %c0_86] : memref<25x128xf32, #tpu.memory_space<vmem>>, vector<1x128xf32>
    %125 = vector.broadcast %124 : vector<1x128xf32> to vector<8x128xf32>
    %126 = arith.mulf %123, %125 : vector<8x128xf32>
    %127 = arith.addf %122, %126 : vector<8x128xf32>
    %c1_87 = arith.constant 1 : index
    %c32_88 = arith.constant 32 : index
    %128 = vector.load %arg11[%c1_87, %c32_88] : memref<12x192xf32, #tpu.memory_space<vmem>>, vector<8x128xf32>
    %c7 = arith.constant 7 : index
    %c0_89 = arith.constant 0 : index
    %129 = vector.load %arg6[%c7, %c0_89] : memref<25x128xf32, #tpu.memory_space<vmem>>, vector<1x128xf32>
    %130 = vector.broadcast %129 : vector<1x128xf32> to vector<8x128xf32>
    %131 = arith.mulf %128, %130 : vector<8x128xf32>
    %132 = arith.addf %127, %131 : vector<8x128xf32>
    %c1_90 = arith.constant 1 : index
    %c48_91 = arith.constant 48 : index
    %133 = vector.load %arg11[%c1_90, %c48_91] : memref<12x192xf32, #tpu.memory_space<vmem>>, vector<8x128xf32>
    %c8 = arith.constant 8 : index
    %c0_92 = arith.constant 0 : index
    %134 = vector.load %arg6[%c8, %c0_92] : memref<25x128xf32, #tpu.memory_space<vmem>>, vector<1x128xf32>
    %135 = vector.broadcast %134 : vector<1x128xf32> to vector<8x128xf32>
    %136 = arith.mulf %133, %135 : vector<8x128xf32>
    %137 = arith.addf %132, %136 : vector<8x128xf32>
    %c1_93 = arith.constant 1 : index
    %c64_94 = arith.constant 64 : index
    %138 = vector.load %arg11[%c1_93, %c64_94] : memref<12x192xf32, #tpu.memory_space<vmem>>, vector<8x128xf32>
    %c9 = arith.constant 9 : index
    %c0_95 = arith.constant 0 : index
    %139 = vector.load %arg6[%c9, %c0_95] : memref<25x128xf32, #tpu.memory_space<vmem>>, vector<1x128xf32>
    %140 = vector.broadcast %139 : vector<1x128xf32> to vector<8x128xf32>
    %141 = arith.mulf %138, %140 : vector<8x128xf32>
    %142 = arith.addf %137, %141 : vector<8x128xf32>
    %c2_96 = arith.constant 2 : index
    %c0_97 = arith.constant 0 : index
    %143 = vector.load %arg11[%c2_96, %c0_97] : memref<12x192xf32, #tpu.memory_space<vmem>>, vector<8x128xf32>
    %c10 = arith.constant 10 : index
    %c0_98 = arith.constant 0 : index
    %144 = vector.load %arg6[%c10, %c0_98] : memref<25x128xf32, #tpu.memory_space<vmem>>, vector<1x128xf32>
    %145 = vector.broadcast %144 : vector<1x128xf32> to vector<8x128xf32>
    %146 = arith.mulf %143, %145 : vector<8x128xf32>
    %147 = arith.addf %142, %146 : vector<8x128xf32>
    %c2_99 = arith.constant 2 : index
    %c16_100 = arith.constant 16 : index
    %148 = vector.load %arg11[%c2_99, %c16_100] : memref<12x192xf32, #tpu.memory_space<vmem>>, vector<8x128xf32>
    %c11 = arith.constant 11 : index
    %c0_101 = arith.constant 0 : index
    %149 = vector.load %arg6[%c11, %c0_101] : memref<25x128xf32, #tpu.memory_space<vmem>>, vector<1x128xf32>
    %150 = vector.broadcast %149 : vector<1x128xf32> to vector<8x128xf32>
    %151 = arith.mulf %148, %150 : vector<8x128xf32>
    %152 = arith.addf %147, %151 : vector<8x128xf32>
    %c2_102 = arith.constant 2 : index
    %c32_103 = arith.constant 32 : index
    %153 = vector.load %arg11[%c2_102, %c32_103] : memref<12x192xf32, #tpu.memory_space<vmem>>, vector<8x128xf32>
    %c12 = arith.constant 12 : index
    %c0_104 = arith.constant 0 : index
    %154 = vector.load %arg6[%c12, %c0_104] : memref<25x128xf32, #tpu.memory_space<vmem>>, vector<1x128xf32>
    %155 = vector.broadcast %154 : vector<1x128xf32> to vector<8x128xf32>
    %156 = arith.mulf %153, %155 : vector<8x128xf32>
    %157 = arith.addf %152, %156 : vector<8x128xf32>
    %c2_105 = arith.constant 2 : index
    %c48_106 = arith.constant 48 : index
    %158 = vector.load %arg11[%c2_105, %c48_106] : memref<12x192xf32, #tpu.memory_space<vmem>>, vector<8x128xf32>
    %c13 = arith.constant 13 : index
    %c0_107 = arith.constant 0 : index
    %159 = vector.load %arg6[%c13, %c0_107] : memref<25x128xf32, #tpu.memory_space<vmem>>, vector<1x128xf32>
    %160 = vector.broadcast %159 : vector<1x128xf32> to vector<8x128xf32>
    %161 = arith.mulf %158, %160 : vector<8x128xf32>
    %162 = arith.addf %157, %161 : vector<8x128xf32>
    %c2_108 = arith.constant 2 : index
    %c64_109 = arith.constant 64 : index
    %163 = vector.load %arg11[%c2_108, %c64_109] : memref<12x192xf32, #tpu.memory_space<vmem>>, vector<8x128xf32>
    %c14 = arith.constant 14 : index
    %c0_110 = arith.constant 0 : index
    %164 = vector.load %arg6[%c14, %c0_110] : memref<25x128xf32, #tpu.memory_space<vmem>>, vector<1x128xf32>
    %165 = vector.broadcast %164 : vector<1x128xf32> to vector<8x128xf32>
    %166 = arith.mulf %163, %165 : vector<8x128xf32>
    %167 = arith.addf %162, %166 : vector<8x128xf32>
    %c3_111 = arith.constant 3 : index
    %c0_112 = arith.constant 0 : index
    %168 = vector.load %arg11[%c3_111, %c0_112] : memref<12x192xf32, #tpu.memory_space<vmem>>, vector<8x128xf32>
    %c15 = arith.constant 15 : index
    %c0_113 = arith.constant 0 : index
    %169 = vector.load %arg6[%c15, %c0_113] : memref<25x128xf32, #tpu.memory_space<vmem>>, vector<1x128xf32>
    %170 = vector.broadcast %169 : vector<1x128xf32> to vector<8x128xf32>
    %171 = arith.mulf %168, %170 : vector<8x128xf32>
    %172 = arith.addf %167, %171 : vector<8x128xf32>
    %c3_114 = arith.constant 3 : index
    %c16_115 = arith.constant 16 : index
    %173 = vector.load %arg11[%c3_114, %c16_115] : memref<12x192xf32, #tpu.memory_space<vmem>>, vector<8x128xf32>
    %c16_116 = arith.constant 16 : index
    %c0_117 = arith.constant 0 : index
    %174 = vector.load %arg6[%c16_116, %c0_117] : memref<25x128xf32, #tpu.memory_space<vmem>>, vector<1x128xf32>
    %175 = vector.broadcast %174 : vector<1x128xf32> to vector<8x128xf32>
    %176 = arith.mulf %173, %175 : vector<8x128xf32>
    %177 = arith.addf %172, %176 : vector<8x128xf32>
    %c3_118 = arith.constant 3 : index
    %c32_119 = arith.constant 32 : index
    %178 = vector.load %arg11[%c3_118, %c32_119] : memref<12x192xf32, #tpu.memory_space<vmem>>, vector<8x128xf32>
    %c17 = arith.constant 17 : index
    %c0_120 = arith.constant 0 : index
    %179 = vector.load %arg6[%c17, %c0_120] : memref<25x128xf32, #tpu.memory_space<vmem>>, vector<1x128xf32>
    %180 = vector.broadcast %179 : vector<1x128xf32> to vector<8x128xf32>
    %181 = arith.mulf %178, %180 : vector<8x128xf32>
    %182 = arith.addf %177, %181 : vector<8x128xf32>
    %c3_121 = arith.constant 3 : index
    %c48_122 = arith.constant 48 : index
    %183 = vector.load %arg11[%c3_121, %c48_122] : memref<12x192xf32, #tpu.memory_space<vmem>>, vector<8x128xf32>
    %c18 = arith.constant 18 : index
    %c0_123 = arith.constant 0 : index
    %184 = vector.load %arg6[%c18, %c0_123] : memref<25x128xf32, #tpu.memory_space<vmem>>, vector<1x128xf32>
    %185 = vector.broadcast %184 : vector<1x128xf32> to vector<8x128xf32>
    %186 = arith.mulf %183, %185 : vector<8x128xf32>
    %187 = arith.addf %182, %186 : vector<8x128xf32>
    %c3_124 = arith.constant 3 : index
    %c64_125 = arith.constant 64 : index
    %188 = vector.load %arg11[%c3_124, %c64_125] : memref<12x192xf32, #tpu.memory_space<vmem>>, vector<8x128xf32>
    %c19 = arith.constant 19 : index
    %c0_126 = arith.constant 0 : index
    %189 = vector.load %arg6[%c19, %c0_126] : memref<25x128xf32, #tpu.memory_space<vmem>>, vector<1x128xf32>
    %190 = vector.broadcast %189 : vector<1x128xf32> to vector<8x128xf32>
    %191 = arith.mulf %188, %190 : vector<8x128xf32>
    %192 = arith.addf %187, %191 : vector<8x128xf32>
    %c4_127 = arith.constant 4 : index
    %c0_128 = arith.constant 0 : index
    %193 = vector.load %arg11[%c4_127, %c0_128] : memref<12x192xf32, #tpu.memory_space<vmem>>, vector<8x128xf32>
    %c20 = arith.constant 20 : index
    %c0_129 = arith.constant 0 : index
    %194 = vector.load %arg6[%c20, %c0_129] : memref<25x128xf32, #tpu.memory_space<vmem>>, vector<1x128xf32>
    %195 = vector.broadcast %194 : vector<1x128xf32> to vector<8x128xf32>
    %196 = arith.mulf %193, %195 : vector<8x128xf32>
    %197 = arith.addf %192, %196 : vector<8x128xf32>
    %c4_130 = arith.constant 4 : index
    %c16_131 = arith.constant 16 : index
    %198 = vector.load %arg11[%c4_130, %c16_131] : memref<12x192xf32, #tpu.memory_space<vmem>>, vector<8x128xf32>
    %c21 = arith.constant 21 : index
    %c0_132 = arith.constant 0 : index
    %199 = vector.load %arg6[%c21, %c0_132] : memref<25x128xf32, #tpu.memory_space<vmem>>, vector<1x128xf32>
    %200 = vector.broadcast %199 : vector<1x128xf32> to vector<8x128xf32>
    %201 = arith.mulf %198, %200 : vector<8x128xf32>
    %202 = arith.addf %197, %201 : vector<8x128xf32>
    %c4_133 = arith.constant 4 : index
    %c32_134 = arith.constant 32 : index
    %203 = vector.load %arg11[%c4_133, %c32_134] : memref<12x192xf32, #tpu.memory_space<vmem>>, vector<8x128xf32>
    %c22 = arith.constant 22 : index
    %c0_135 = arith.constant 0 : index
    %204 = vector.load %arg6[%c22, %c0_135] : memref<25x128xf32, #tpu.memory_space<vmem>>, vector<1x128xf32>
    %205 = vector.broadcast %204 : vector<1x128xf32> to vector<8x128xf32>
    %206 = arith.mulf %203, %205 : vector<8x128xf32>
    %207 = arith.addf %202, %206 : vector<8x128xf32>
    %c4_136 = arith.constant 4 : index
    %c48_137 = arith.constant 48 : index
    %208 = vector.load %arg11[%c4_136, %c48_137] : memref<12x192xf32, #tpu.memory_space<vmem>>, vector<8x128xf32>
    %c23 = arith.constant 23 : index
    %c0_138 = arith.constant 0 : index
    %209 = vector.load %arg6[%c23, %c0_138] : memref<25x128xf32, #tpu.memory_space<vmem>>, vector<1x128xf32>
    %210 = vector.broadcast %209 : vector<1x128xf32> to vector<8x128xf32>
    %211 = arith.mulf %208, %210 : vector<8x128xf32>
    %212 = arith.addf %207, %211 : vector<8x128xf32>
    %c4_139 = arith.constant 4 : index
    %c64_140 = arith.constant 64 : index
    %213 = vector.load %arg11[%c4_139, %c64_140] : memref<12x192xf32, #tpu.memory_space<vmem>>, vector<8x128xf32>
    %c24 = arith.constant 24 : index
    %c0_141 = arith.constant 0 : index
    %214 = vector.load %arg6[%c24, %c0_141] : memref<25x128xf32, #tpu.memory_space<vmem>>, vector<1x128xf32>
    %215 = vector.broadcast %214 : vector<1x128xf32> to vector<8x128xf32>
    %216 = arith.mulf %213, %215 : vector<8x128xf32>
    %217 = arith.addf %212, %216 : vector<8x128xf32>
    %c0_142 = arith.constant 0 : index
    %c0_143 = arith.constant 0 : index
    %218 = vector.load %arg7[%c0_142, %c0_143] : memref<128x8xf32, #tpu.memory_space<vmem>>, vector<128x8xf32>
    %cst_144 = arith.constant dense<0.000000e+00> : vector<8x8xf32>
    %219 = tpu.matmul %217, %218, %cst_144 {dimension_numbers = #tpu.dot_dimension_numbers<[1], [0], [0], [1], [0, 0, 1, 1], [], []>} : vector<8x128xf32>, vector<128x8xf32>, vector<8x8xf32> -> vector<8x8xf32>
    %c0_145 = arith.constant 0 : index
    %c0_146 = arith.constant 0 : index
    %220 = vector.load %arg9[%c0_145, %c0_146] : memref<8x8xf32, #tpu.memory_space<vmem>>, vector<8x8xf32>
    %221 = arith.addf %219, %220 : vector<8x8xf32>
    %222 = vector.shape_cast %6 : vector<8x8xf32> to vector<1x8x8xf32>
    %cst_147 = arith.constant dense<0.000000e+00> : vector<1xf32>
    %223 = vector.multi_reduction <add>, %222, %cst_147 [1, 2] : vector<1x8x8xf32> to vector<1xf32>
    %224 = vector.shape_cast %223 : vector<1xf32> to vector<1x1x1xf32>
    %225 = vector.extract %224[0, 0, 0] : f32 from vector<1x1x1xf32>
    %226 = vector.broadcast %225 : f32 to vector<1x1xf32>
    %cst_148 = arith.constant 1.000000e+00 : f32
    %227 = vector.broadcast %cst_148 : f32 to vector<1x1xf32>
    %228 = arith.subf %226, %227 : vector<1x1xf32>
    %cst_149 = arith.constant 1.000000e+03 : f32
    %229 = vector.broadcast %cst_149 : f32 to vector<1x1xf32>
    %230 = arith.mulf %228, %229 : vector<1x1xf32>
    %231 = math.tanh %230 : vector<1x1xf32>
    %cst_150 = arith.constant 1.000000e+01 : f32
    %232 = vector.broadcast %cst_150 : f32 to vector<1x1xf32>
    %233 = arith.mulf %231, %232 : vector<1x1xf32>
    %234 = math.exp %233 : vector<1x1xf32>
    %cst_151 = arith.constant 1.000000e+00 : f32
    %235 = vector.broadcast %cst_151 : f32 to vector<1x1xf32>
    %236 = arith.subf %234, %235 : vector<1x1xf32>
    %237 = vector.broadcast %236 : vector<1x1xf32> to vector<8x8xf32>
    %238 = arith.mulf %6, %237 : vector<8x8xf32>
    %239 = arith.subf %221, %238 : vector<8x8xf32>
    %c0_152 = arith.constant 0 : index
    %c0_153 = arith.constant 0 : index
    %c0_154 = arith.constant 0 : index
    %240 = vector.load %arg10[%c0_152, %c0_153, %c0_154] : memref<1x8x8xf32, #tpu.memory_space<vmem>>, vector<1x8x8xf32>
    %241 = vector.shape_cast %240 : vector<1x8x8xf32> to vector<8x8xf32>
    %242 = vector.shape_cast %239 : vector<8x8xf32> to vector<1x8x8xf32>
    tpu.vector_store %arg10[%c0_152, %c0_153, %c0_154], %242 {strides = array<i32>} : memref<1x8x8xf32, #tpu.memory_space<vmem>>, vector<1x8x8xf32>,
    return
  }
  func.func @transform_0(%arg0: i32) -> (i32, i32, i32) {
    %c0_i32 = arith.constant 0 : i32
    %c0_i32_0 = arith.constant 0 : i32
    %c0_i32_1 = arith.constant 0 : i32
    return %arg0, %c0_i32, %c0_i32_0 : i32, i32, i32
  }
  func.func @transform_1(%arg0: i32) -> (i32, i32) {
    %c0_i32 = arith.constant 0 : i32
    %c0_i32_0 = arith.constant 0 : i32
    %c0_i32_1 = arith.constant 0 : i32
    return %c0_i32, %c0_i32_0 : i32, i32
  }
  func.func @transform_2(%arg0: i32) -> (i32, i32) {
    %c0_i32 = arith.constant 0 : i32
    %c0_i32_0 = arith.constant 0 : i32
    %c0_i32_1 = arith.constant 0 : i32
    return %c0_i32, %c0_i32_0 : i32, i32
  }
  func.func @transform_3(%arg0: i32) -> (i32, i32, i32) {
    %c0_i32 = arith.constant 0 : i32
    %c0_i32_0 = arith.constant 0 : i32
    %c0_i32_1 = arith.constant 0 : i32
    %c0_i32_2 = arith.constant 0 : i32
    return %c0_i32, %c0_i32_0, %c0_i32_1 : i32, i32, i32
  }
  func.func @transform_4(%arg0: i32) -> (i32, i32) {
    %c0_i32 = arith.constant 0 : i32
    %c0_i32_0 = arith.constant 0 : i32
    %c0_i32_1 = arith.constant 0 : i32
    return %c0_i32, %c0_i32_0 : i32, i32
  }
  func.func @transform_5(%arg0: i32) -> (i32, i32) {
    %c0_i32 = arith.constant 0 : i32
    %c0_i32_0 = arith.constant 0 : i32
    %c0_i32_1 = arith.constant 0 : i32
    return %c0_i32, %c0_i32_0 : i32, i32
  }
  func.func @transform_6(%arg0: i32) -> (i32, i32) {
    %c0_i32 = arith.constant 0 : i32
    %c0_i32_0 = arith.constant 0 : i32
    %c0_i32_1 = arith.constant 0 : i32
    return %c0_i32, %c0_i32_0 : i32, i32
  }
  func.func @transform_7(%arg0: i32) -> (i32, i32) {
    %c0_i32 = arith.constant 0 : i32
    %c0_i32_0 = arith.constant 0 : i32
    %c0_i32_1 = arith.constant 0 : i32
    return %c0_i32, %c0_i32_0 : i32, i32
  }
  func.func @transform_8(%arg0: i32) -> (i32, i32) {
    %c0_i32 = arith.constant 0 : i32
    %c0_i32_0 = arith.constant 0 : i32
    %c0_i32_1 = arith.constant 0 : i32
    return %c0_i32, %c0_i32_0 : i32, i32
  }
  func.func @transform_9(%arg0: i32) -> (i32, i32, i32) {
    %c0_i32 = arith.constant 0 : i32
    %c0_i32_0 = arith.constant 0 : i32
    %c0_i32_1 = arith.constant 0 : i32
    return %arg0, %c0_i32, %c0_i32_0 : i32, i32, i32
  }
}

</mosaic_0001>

<llo_original>
// kernel: conv_forward.1
$region0: #{conv_forward.1}
  #allocation0 [shape = 'u32[]', space=smem, size = 0x4, offset = 0x4, fixed_abs, tag = 'smem constant byte address 0x4 - core index']
  #allocation1 [shape = 'u32[144,128]{1,0:T(1,128)}', space=vmem, size = 0x12000, scoped, tag = 'internal scratch']
  #allocation2 [shape = 'f32[12,192]{1,0:T(8,128)}', space=vmem, size = 0x4000, scoped, tag = 'scratch operand']
  %s0 = inlined_call_operand.vmem [shape: f32[2,12,24], index: 0, kind: input, shape index: {}]
  %s1 = inlined_call_operand.vmem [shape: bf16[400,128], index: 1, kind: input, shape index: {}]
  %s2 = inlined_call_operand.vmem [shape: f32[1,128], index: 2, kind: input, shape index: {}]
  %s3 = inlined_call_operand.hbm [shape: bf16[2,1152,128], index: 3, kind: input, shape index: {}]
  %s4 = inlined_call_operand.vmem [shape: f32[2,128], index: 4, kind: input, shape index: {}]
  %s5 = inlined_call_operand.vmem [shape: f32[25,128], index: 5, kind: input, shape index: {}]
  %s6 = inlined_call_operand.vmem [shape: f32[128,8], index: 6, kind: input, shape index: {}]
  %s7 = inlined_call_operand.vmem [shape: f32[24,8], index: 7, kind: input, shape index: {}]
  %s8 = inlined_call_operand.vmem [shape: f32[8,8], index: 8, kind: input, shape index: {}]
  %s9 = inlined_call_operand.vmem [shape: f32[2,8,8], index: 9, kind: output, shape index: {}]
  %s10 = sld [smem:[#allocation0]]
  $region73: #{conv_forward.1} parent=0
    _
  %s12 = ssub.s32 1, %s10
  %s13 = scalar_select 0, %s12, %s10
  $region1: #{conv_forward.1} parent=0
    #allocation3 [shape = 'u8[589824]{0}', space=vmem, size = 0x90000, scoped, tag = 'input window, operand 3, single buffered']
    #allocation4 [shape = 's32[2]{0}', space=sflag, size = 0x8, scoped, tag = 'scoped memory for conv_forward.1']
    %14 = vsyncpa [#allocation4], 0
    loop: start=0, step=1, limit=4
    $region2: #{conv_forward.1} parent=1 // loop_pre_header
      _
    $region3: #{conv_forward.1} parent=1 // loop_header
      %s16 = sphi 0, %s20
      %p17 = scmp.ge.s32.totalorder %s16, 4
      %s26 = sphi 0, %s28
      %s29 = sphi 0, %s26
      %s30 = sphi 0, %s29
      %s46 = sphi 0, %s30
      %s50 = sphi 0, %s50
      %s52 = sphi 0, %s50
      %s53 = sphi 0, %s52
      %s67 = sphi 0, %s53
      %s71 = sphi 0, %s71
      %s73 = sphi 0, %s71
      %s74 = sphi 0, %s73
      %s88 = sphi 0, %s74
      %s92 = sphi 0, %s92
      %s94 = sphi 0, %s92
      %s95 = sphi 0, %s94
      %s109 = sphi 0, %s95
      %s113 = sphi 0, %s113
      %s115 = sphi 0, %s113
      %s116 = sphi 0, %s115
      %s130 = sphi 0, %s116
      %s134 = sphi 0, %s134
      %s136 = sphi 0, %s134
      %s137 = sphi 0, %s136
      %s151 = sphi 0, %s137
      %s155 = sphi 0, %s155
      %s157 = sphi 0, %s155
      %s158 = sphi 0, %s157
      %s172 = sphi 0, %s158
      %s176 = sphi 0, %s176
      %s178 = sphi 0, %s176
      %s179 = sphi 0, %s178
      %s193 = sphi 0, %s179
      %s197 = sphi 0, %s197
      %s199 = sphi 0, %s197
      %s200 = sphi 0, %s199
      %s214 = sphi 0, %s200
      %s220 = sphi 0, %s222
      %s223 = sphi 0, %s220
      %s224 = sphi 0, %s223
      %s240 = sphi 0, %s224
    $region4: #{conv_forward.1} parent=1 // loop_header_branch
      %19 = sbr.rel (%p17) target = $region8
    $region5: #{conv_forward.1} parent=1 // loop_body
      %s21 = ssub.s32 %s16, 1
      %s22 = ssub.s32 %s16, 2
      %s23 = sadd.s32 %s16, 1
      %s24 = ssub.s32 %s16, %s23
      %p25 = scmp.eq.s32.totalorder %s24, 0
      %s27 = sadd.s32 %s26, 1
      %s28 = scalar_select %p25, %s26, %s27
      %p31 = pneg %p25
      %p32 = scmp.eq.s32.totalorder %s16, 1
      %p33 = por %p31, %p32
      %p34 = scmp.ne.s32.totalorder %s26, %s29
      %p35 = scmp.eq.s32.totalorder %s16, 0
      %p36 = por %p34, %p35
      %p37 = scmp.ne.s32.totalorder %s26, %s29
      %p38 = scmp.eq.s32.totalorder %s21, 1
      %p39 = por %p37, %p38
      %p40 = scmp.ne.s32.totalorder %s29, %s30
      %p41 = scmp.eq.s32.totalorder %s21, 0
      %p42 = por %p40, %p41
      %p43 = scmp.ne.s32.totalorder %s29, %s30
      %p44 = scmp.eq.s32.totalorder %s22, 1
      %p45 = por %p43, %p44
      %p47 = scmp.ne.s32.totalorder %s30, %s46
      %p48 = scmp.eq.s32.totalorder %s22, 0
      %p49 = por %p47, %p48
      %s51 = sadd.s32 %s50, 1
      %p54 = scmp.eq.s32.totalorder %s16, 1
      %p55 = scmp.ne.s32.totalorder %s50, %s52
      %p56 = scmp.eq.s32.totalorder %s16, 0
      %p57 = por %p55, %p56
      %p58 = scmp.ne.s32.totalorder %s50, %s52
      %p59 = scmp.eq.s32.totalorder %s21, 1
      %p60 = por %p58, %p59
      %p61 = scmp.ne.s32.totalorder %s52, %s53
      %p62 = scmp.eq.s32.totalorder %s21, 0
      %p63 = por %p61, %p62
      %p64 = scmp.ne.s32.totalorder %s52, %s53
      %p65 = scmp.eq.s32.totalorder %s22, 1
      %p66 = por %p64, %p65
      %p68 = scmp.ne.s32.totalorder %s53, %s67
      %p69 = scmp.eq.s32.totalorder %s22, 0
      %p70 = por %p68, %p69
      %s72 = sadd.s32 %s71, 1
      %p75 = scmp.eq.s32.totalorder %s16, 1
      %p76 = scmp.ne.s32.totalorder %s71, %s73
      %p77 = scmp.eq.s32.totalorder %s16, 0
      %p78 = por %p76, %p77
      %p79 = scmp.ne.s32.totalorder %s71, %s73
      %p80 = scmp.eq.s32.totalorder %s21, 1
      %p81 = por %p79, %p80
      %p82 = scmp.ne.s32.totalorder %s73, %s74
      %p83 = scmp.eq.s32.totalorder %s21, 0
      %p84 = por %p82, %p83
      %p85 = scmp.ne.s32.totalorder %s73, %s74
      %p86 = scmp.eq.s32.totalorder %s22, 1
      %p87 = por %p85, %p86
      %p89 = scmp.ne.s32.totalorder %s74, %s88
      %p90 = scmp.eq.s32.totalorder %s22, 0
      %p91 = por %p89, %p90
      %s93 = sadd.s32 %s92, 1
      %p96 = scmp.eq.s32.totalorder %s16, 1
      %p97 = scmp.ne.s32.totalorder %s92, %s94
      %p98 = scmp.eq.s32.totalorder %s16, 0
      %p99 = por %p97, %p98
      %p100 = scmp.ne.s32.totalorder %s92, %s94
      %p101 = scmp.eq.s32.totalorder %s21, 1
      %p102 = por %p100, %p101
      %p103 = scmp.ne.s32.totalorder %s94, %s95
      %p104 = scmp.eq.s32.totalorder %s21, 0
      %p105 = por %p103, %p104
      %p106 = scmp.ne.s32.totalorder %s94, %s95
      %p107 = scmp.eq.s32.totalorder %s22, 1
      %p108 = por %p106, %p107
      %p110 = scmp.ne.s32.totalorder %s95, %s109
      %p111 = scmp.eq.s32.totalorder %s22, 0
      %p112 = por %p110, %p111
      %s114 = sadd.s32 %s113, 1
      %p117 = scmp.eq.s32.totalorder %s16, 1
      %p118 = scmp.ne.s32.totalorder %s113, %s115
      %p119 = scmp.eq.s32.totalorder %s16, 0
      %p120 = por %p118, %p119
      %p121 = scmp.ne.s32.totalorder %s113, %s115
      %p122 = scmp.eq.s32.totalorder %s21, 1
      %p123 = por %p121, %p122
      %p124 = scmp.ne.s32.totalorder %s115, %s116
      %p125 = scmp.eq.s32.totalorder %s21, 0
      %p126 = por %p124, %p125
      %p127 = scmp.ne.s32.totalorder %s115, %s116
      %p128 = scmp.eq.s32.totalorder %s22, 1
      %p129 = por %p127, %p128
      %p131 = scmp.ne.s32.totalorder %s116, %s130
      %p132 = scmp.eq.s32.totalorder %s22, 0
      %p133 = por %p131, %p132
      %s135 = sadd.s32 %s134, 1
      %p138 = scmp.eq.s32.totalorder %s16, 1
      %p139 = scmp.ne.s32.totalorder %s134, %s136
      %p140 = scmp.eq.s32.totalorder %s16, 0
      %p141 = por %p139, %p140
      %p142 = scmp.ne.s32.totalorder %s134, %s136
      %p143 = scmp.eq.s32.totalorder %s21, 1
      %p144 = por %p142, %p143
      %p145 = scmp.ne.s32.totalorder %s136, %s137
      %p146 = scmp.eq.s32.totalorder %s21, 0
      %p147 = por %p145, %p146
      %p148 = scmp.ne.s32.totalorder %s136, %s137
      %p149 = scmp.eq.s32.totalorder %s22, 1
      %p150 = por %p148, %p149
      %p152 = scmp.ne.s32.totalorder %s137, %s151
      %p153 = scmp.eq.s32.totalorder %s22, 0
      %p154 = por %p152, %p153
      %s156 = sadd.s32 %s155, 1
      %p159 = scmp.eq.s32.totalorder %s16, 1
      %p160 = scmp.ne.s32.totalorder %s155, %s157
      %p161 = scmp.eq.s32.totalorder %s16, 0
      %p162 = por %p160, %p161
      %p163 = scmp.ne.s32.totalorder %s155, %s157
      %p164 = scmp.eq.s32.totalorder %s21, 1
      %p165 = por %p163, %p164
      %p166 = scmp.ne.s32.totalorder %s157, %s158
      %p167 = scmp.eq.s32.totalorder %s21, 0
      %p168 = por %p166, %p167
      %p169 = scmp.ne.s32.totalorder %s157, %s158
      %p170 = scmp.eq.s32.totalorder %s22, 1
      %p171 = por %p169, %p170
      %p173 = scmp.ne.s32.totalorder %s158, %s172
      %p174 = scmp.eq.s32.totalorder %s22, 0
      %p175 = por %p173, %p174
      %s177 = sadd.s32 %s176, 1
      %p180 = scmp.eq.s32.totalorder %s16, 1
      %p181 = scmp.ne.s32.totalorder %s176, %s178
      %p182 = scmp.eq.s32.totalorder %s16, 0
      %p183 = por %p181, %p182
      %p184 = scmp.ne.s32.totalorder %s176, %s178
      %p185 = scmp.eq.s32.totalorder %s21, 1
      %p186 = por %p184, %p185
      %p187 = scmp.ne.s32.totalorder %s178, %s179
      %p188 = scmp.eq.s32.totalorder %s21, 0
      %p189 = por %p187, %p188
      %p190 = scmp.ne.s32.totalorder %s178, %s179
      %p191 = scmp.eq.s32.totalorder %s22, 1
      %p192 = por %p190, %p191
      %p194 = scmp.ne.s32.totalorder %s179, %s193
      %p195 = scmp.eq.s32.totalorder %s22, 0
      %p196 = por %p194, %p195
      %s198 = sadd.s32 %s197, 1
      %p201 = scmp.eq.s32.totalorder %s16, 1
      %p202 = scmp.ne.s32.totalorder %s197, %s199
      %p203 = scmp.eq.s32.totalorder %s16, 0
      %p204 = por %p202, %p203
      %p205 = scmp.ne.s32.totalorder %s197, %s199
      %p206 = scmp.eq.s32.totalorder %s21, 1
      %p207 = por %p205, %p206
      %p208 = scmp.ne.s32.totalorder %s199, %s200
      %p209 = scmp.eq.s32.totalorder %s21, 0
      %p210 = por %p208, %p209
      %p211 = scmp.ne.s32.totalorder %s199, %s200
      %p212 = scmp.eq.s32.totalorder %s22, 1
      %p213 = por %p211, %p212
      %p215 = scmp.ne.s32.totalorder %s200, %s214
      %p216 = scmp.eq.s32.totalorder %s22, 0
      %p217 = por %p215, %p216
      %s218 = ssub.s32 %s16, %s23
      %p219 = scmp.eq.s32.totalorder %s218, 0
      %s221 = sadd.s32 %s220, 1
      %s222 = scalar_select %p219, %s220, %s221
      %p225 = pneg %p219
      %p226 = scmp.eq.s32.totalorder %s16, 1
      %p227 = por %p225, %p226
      %p228 = scmp.ne.s32.totalorder %s220, %s223
      %p229 = scmp.eq.s32.totalorder %s16, 0
      %p230 = por %p228, %p229
      %p231 = scmp.ne.s32.totalorder %s220, %s223
      %p232 = scmp.eq.s32.totalorder %s21, 1
      %p233 = por %p231, %p232
      %p234 = scmp.ne.s32.totalorder %s223, %s224
      %p235 = scmp.eq.s32.totalorder %s21, 0
      %p236 = por %p234, %p235
      %p237 = scmp.ne.s32.totalorder %s223, %s224
      %p238 = scmp.eq.s32.totalorder %s22, 1
      %p239 = por %p237, %p238
      %p241 = scmp.ne.s32.totalorder %s224, %s240
      %p242 = scmp.eq.s32.totalorder %s22, 0
      %p243 = por %p241, %p242
      %p244 = scmp.le.s32.totalorder 1, %s16
      %p245 = scmp.lt.s32.totalorder %s16, 3
      %p246 = pnand %p244, %p245
      %p247 = pneg %p246
      // Predicated region
      $region9: #{conv_forward.1} parent=5 // pred_check
        _
      $region10: #{conv_forward.1} parent=5 // pred_check_branch
        %249 = sbr.rel (%p246) target = $region12
      $region11: #{conv_forward.1} parent=5 // pred_region
        %s250 = ssub.s32 %s16, 1
        // Predicated region
        $region13: #{conv_forward.1} parent=11 // pred_check
          %p251 = pneg %p63
        $region14: #{conv_forward.1} parent=11 // pred_check_branch
          %253 = sbr.rel (%p251) target = $region16
        $region15: #{conv_forward.1} parent=11 // pred_region
          _
        $region16: #{conv_forward.1} parent=11 // pred_fallthru
          _
        // Predicated region
        $region17: #{conv_forward.1} parent=11 // pred_check
          %p254 = pneg %p84
        $region18: #{conv_forward.1} parent=11 // pred_check_branch
          %256 = sbr.rel (%p254) target = $region20
        $region19: #{conv_forward.1} parent=11 // pred_region
          _
        $region20: #{conv_forward.1} parent=11 // pred_fallthru
          _
        // Predicated region
        $region21: #{conv_forward.1} parent=11 // pred_check
          %p257 = pneg %p105
        $region22: #{conv_forward.1} parent=11 // pred_check_branch
          %259 = sbr.rel (%p257) target = $region24
        $region23: #{conv_forward.1} parent=11 // pred_region
          %s261 = ssub.s32 18432, 18432
          %262 = vsyncadd [#allocation4], %s261
          %s263 = sshll.u32 [#allocation3], 4
          %s264 = int_to_ptr.vmem [resolvable:$true] %s263
          %269 = dma.hbm_to_vmem [thread:$0]  %s3, 18432, %s264, [#allocation4], 64, 64, 4
        $region24: #{conv_forward.1} parent=11 // pred_fallthru
          _
        // Predicated region
        $region25: #{conv_forward.1} parent=11 // pred_check
          %p270 = pneg %p126
        $region26: #{conv_forward.1} parent=11 // pred_check_branch
          %272 = sbr.rel (%p270) target = $region28
        $region27: #{conv_forward.1} parent=11 // pred_region
          _
        $region28: #{conv_forward.1} parent=11 // pred_fallthru
          _
        // Predicated region
        $region29: #{conv_forward.1} parent=11 // pred_check
          %p273 = pneg %p147
        $region30: #{conv_forward.1} parent=11 // pred_check_branch
          %275 = sbr.rel (%p273) target = $region32
        $region31: #{conv_forward.1} parent=11 // pred_region
          _
        $region32: #{conv_forward.1} parent=11 // pred_fallthru
          _
        // Predicated region
        $region33: #{conv_forward.1} parent=11 // pred_check
          %p276 = pneg %p168
        $region34: #{conv_forward.1} parent=11 // pred_check_branch
          %278 = sbr.rel (%p276) target = $region36
        $region35: #{conv_forward.1} parent=11 // pred_region
          _
        $region36: #{conv_forward.1} parent=11 // pred_fallthru
          _
        // Predicated region
        $region37: #{conv_forward.1} parent=11 // pred_check
          %p279 = pneg %p189
        $region38: #{conv_forward.1} parent=11 // pred_check_branch
          %281 = sbr.rel (%p279) target = $region40
        $region39: #{conv_forward.1} parent=11 // pred_region
          _
        $region40: #{conv_forward.1} parent=11 // pred_fallthru
          _
        // Predicated region
        $region41: #{conv_forward.1} parent=11 // pred_check
          %p282 = pneg %p210
        $region42: #{conv_forward.1} parent=11 // pred_check_branch
          %284 = sbr.rel (%p282) target = $region44
        $region43: #{conv_forward.1} parent=11 // pred_region
          _
        $region44: #{conv_forward.1} parent=11 // pred_fallthru
          _
      $region12: #{conv_forward.1} parent=5 // pred_fallthru
        _
      %p285 = scmp.lt.s32.totalorder %s16, 2
      // Predicated region
      $region45: #{conv_forward.1} parent=5 // pred_check
        %p286 = pneg %p285
      $region46: #{conv_forward.1} parent=5 // pred_check_branch
        %288 = sbr.rel (%p286) target = $region48
      $region47: #{conv_forward.1} parent=5 // pred_region
        // Predicated region
        $region49: #{conv_forward.1} parent=47 // pred_check
          %p289 = pneg %p36
        $region50: #{conv_forward.1} parent=47 // pred_check_branch
          %291 = sbr.rel (%p289) target = $region52
        $region51: #{conv_forward.1} parent=47 // pred_region
          %p292 = scmp.lt.s32.totalorder %s16, 1
          %s293 = scalar_select %p292, %s16, 1
          %s294 = smul.addr %s293, 2
          %s295 = smul.addr %s294, 8
          %s296 = scalar_lea.vmem %s0, %s295
        $region52: #{conv_forward.1} parent=47 // pred_fallthru
          _
      $region48: #{conv_forward.1} parent=5 // pred_fallthru
        _
      %p297 = scmp.le.s32.totalorder 1, %s16
      %p298 = scmp.lt.s32.totalorder %s16, 3
      %p299 = pnand %p297, %p298
      %p300 = pneg %p299
      // Predicated region
      $region53: #{conv_forward.1} parent=5 // pred_check
        _
      $region54: #{conv_forward.1} parent=5 // pred_check_branch
        %302 = sbr.rel (%p299) target = $region56
      $region55: #{conv_forward.1} parent=5 // pred_region
        %s303 = ssub.s32 %s16, 1
        // Predicated region
        $region57: #{conv_forward.1} parent=55 // pred_check
          %p304 = pneg %p105
        $region58: #{conv_forward.1} parent=55 // pred_check_branch
          %306 = sbr.rel (%p304) target = $region60
        $region59: #{conv_forward.1} parent=55 // pred_region
          %307 = dma.done [#allocation4], 18432
        $region60: #{conv_forward.1} parent=55 // pred_fallthru
          _
        %p308 = scmp.lt.s32.totalorder %s21, 1
        %s309 = scalar_select %p308, %s21, 1
        %s310 = smul.addr %s309, 2
        %s311 = smul.addr %s310, 8
        %s312 = scalar_lea.vmem %s0, %s311
        %p313 = pneg %p42
        %p314 = pneg %p39
        %p315 = pneg %p63
        %p316 = pneg %p60
        %p317 = pneg %p84
        %p318 = pneg %p81
        %p319 = pneg %p105
        %p320 = pneg %p102
        %p321 = pneg %p126
        %p322 = pneg %p123
        %p323 = pneg %p147
        %p324 = pneg %p144
        %p325 = pneg %p168
        %p326 = pneg %p165
        %p327 = pneg %p189
        %p328 = pneg %p186
        %p329 = pneg %p210
        %p330 = pneg %p207
        %p331 = pneg %p236
        %p332 = pneg %p233
        %p333 = scmp.lt.s32.totalorder %s21, 1
        %s334 = scalar_select %p333, %s21, 1
        %s335 = smul.addr %s334, 8
        %s336 = scalar_lea.vmem %s9, %s335
        %p337 = scmp.lt.s32.totalorder %s21, 1
        %s338 = scalar_select %p337, %s21, 1
        %s339 = smul.addr %s338, 2
        %s340 = smul.addr %s339, 8
        %s341 = scalar_lea.vmem %s0, %s340
        %p342 = scmp.lt.s32.totalorder %s21, 1
        %s343 = scalar_select %p342, %s21, 1
        %s344 = smul.addr %s343, 8
        %s345 = scalar_lea.vmem %s9, %s344
        %347 = vst [vmem:[#allocation2] sm:$0xff] 0.0
        %vm348 = vcmask 523264
        %349 = vst.msk [vmem:[#allocation2 + $0x8] sm:$0xff] %vm348, 0.0
        %350 = vst [vmem:[#allocation2 + $0x10] sm:$0xf] 0.0
        %vm351 = vcmask 519168
        %352 = vst.msk [vmem:[#allocation2 + $0x18] sm:$0xf] %vm351, 0.0
        %v353 = vld [vmem:[%s341] sm:$0xff]
        %v354 = vld [vmem:[%s341 + $0x8] sm:$0xf]
        %v355 = vld [vmem:[%s7] sm:$0xff]
        %v356 = vld [vmem:[%s7 + $0x8] sm:$0xff]
        %v357 = vld [vmem:[%s7 + $0x10] sm:$0xff]
        %vm360 = vcmask 1045504
        %v361 = vrot.slane %v353, 2
        %v362 = vrot.slane %v354, 2
        %v363 = vsel %vm360, %v361, %v362
        %vm364 = vcmask 195584
        %v365 = vsel %vm364, %v363, 0
        %367 = vmatprep.subr.mxu0 0.0
        %368 = vmatpush1.msra.mxu0 %v355
        %369 = vmatprep.subr.mxu0 0.0
        %370 = vmatpush1.msra.mxu0 %v356
        %371 = vmatprep.subr.mxu0 0.0
        %372 = vmatpush1.msra.mxu0 %v357
        %373 = vmatprep.subr.mxu0 0.0
        %374 = vmatpush1.msra.mxu0 0.0
        %375 = vmatprep.subr.mxu0 0.0
        %376 = vmatpush1.msra.mxu0 0.0
        %377 = vmatprep.subr.mxu0 0.0
        %378 = vmatpush1.msra.mxu0 0.0
        %379 = vmatprep.subr.mxu0 0.0
        %380 = vmatpush1.msra.mxu0 0.0
        %381 = vmatprep.subr.mxu0 0.0
        %382 = vmatpush1.msra.mxu0 0.0
        %383 = vmatprep.subr.mxu0 0.0
        %384 = vmatpush1.msra.mxu0 0.0
        %385 = vmatprep.subr.mxu0 0.0
        %386 = vmatpush1.msra.mxu0 0.0
        %387 = vmatprep.subr.mxu0 0.0
        %388 = vmatpush1.msra.mxu0 0.0
        %389 = vmatprep.subr.mxu0 0.0
        %390 = vmatpush1.msra.mxu0 0.0
        %391 = vmatprep.subr.mxu0 0.0
        %392 = vmatpush1.msra.mxu0 0.0
        %393 = vmatprep.subr.mxu0 0.0
        %394 = vmatpush1.msra.mxu0 0.0
        %395 = vmatprep.subr.mxu0 0.0
        %396 = vmatpush1.msra.mxu0 0.0
        %397 = vmatprep.subr.mxu0 0.0
        %398 = vmatpush1.msra.mxu0 0.0
        %399 = vmatprep.subr.mxu0 0.0
        %400 = vmatpush1.msra.mxu0 0.0
        %401 = vmatprep.subr.mxu0 0.0
        %402 = vmatpush1.msra.mxu0 0.0
        %403 = vmatprep.subr.mxu0 0.0
        %404 = vmatpush1.msra.mxu0 0.0
        %405 = vmatprep.subr.mxu0 0.0
        %406 = vmatpush1.msra.mxu0 0.0
        %407 = vmatprep.subr.mxu0 0.0
        %408 = vmatpush1.msra.mxu0 0.0
        %409 = vmatprep.subr.mxu0 0.0
        %410 = vmatpush1.msra.mxu0 0.0
        %411 = vmatprep.subr.mxu0 0.0
        %412 = vmatpush1.msra.mxu0 0.0
        %413 = vmatprep.subr.mxu0 0.0
        %414 = vmatpush1.msra.mxu0 0.0
        %415 = vmatprep.subr.mxu0 0.0
        %416 = vmatpush1.msra.mxu0 0.0
        %417 = vmatprep.subr.mxu0 0.0
        %418 = vmatpush1.msra.mxu0 0.0
        %419 = vmatprep.subr.mxu0 0.0
        %420 = vmatpush1.msra.mxu0 0.0
        %421 = vmatprep.subr.mxu0 0.0
        %422 = vmatpush1.msra.mxu0 0.0
        %423 = vmatprep.subr.mxu0 0.0
        %424 = vmatpush1.msra.mxu0 0.0
        %425 = vmatprep.subr.mxu0 0.0
        %426 = vmatpush1.msra.mxu0 0.0
        %427 = vmatprep.subr.mxu0 0.0
        %428 = vmatpush1.msra.mxu0 0.0
        %429 = vmatprep.subr.mxu0 0.0
        %430 = vmatpush1.msra.mxu0 0.0
        %431 = vmatprep.mubr.f32.mxu0 0.0
        %432 = vmatmul.mubr.f32.gmra.mrb[0].mxu0 %v365
        %v433 = vpop.f32.mrb[0].mxu0
        %v434 = vadd.f32 0.0, %v433
        %v435 = vpop.f32.mrb[0].mxu0
        %436 = vdwg.mxu0
        %437 = vrot.lane.b32.xlu0 %v353, 14
        %v438 = vpop.permute.xlu0 %437
        %440 = vrot.lane.b32.xlu0 %v353, 28
        %v441 = vpop.permute.xlu0 %440
        %443 = vrot.lane.b32.xlu0 %v353, 42
        %v444 = vpop.permute.xlu0 %443
        %446 = vrot.lane.b32.xlu0 %v353, 56
        %v447 = vpop.permute.xlu0 %446
        %vm449 = vcmask 1046528
        %v450 = vrot.slane %v353, 1
        %v451 = vrot.slane %v354, 1
        %v452 = vsel %vm449, %v450, %v451
        %453 = vrot.lane.b32.xlu0 %v452, 80
        %v454 = vpop.permute.xlu0 %453
        %456 = vrot.lane.b32.xlu0 %v452, 94
        %v457 = vpop.permute.xlu0 %456
        %459 = vrot.lane.b32.xlu0 %v452, 108
        %v460 = vpop.permute.xlu0 %459
        %462 = vrot.lane.b32.xlu0 %v452, 122
        %v463 = vpop.permute.xlu0 %462
        %465 = vrot.lane.b32.xlu0 %v452, 8
        %v466 = vpop.permute.xlu0 %465
        %468 = vrot.lane.b32.xlu0 %v363, 32
        %v469 = vpop.permute.xlu0 %468
        %471 = vrot.lane.b32.xlu0 %v363, 46
        %v472 = vpop.permute.xlu0 %471
        %474 = vrot.lane.b32.xlu0 %v363, 60
        %v475 = vpop.permute.xlu0 %474
        %477 = vrot.lane.b32.xlu0 %v363, 74
        %v478 = vpop.permute.xlu0 %477
        %480 = vrot.lane.b32.xlu0 %v363, 88
        %v481 = vpop.permute.xlu0 %480
        %vm483 = vcmask 1044480
        %v484 = vrot.slane %v353, 3
        %v485 = vrot.slane %v354, 3
        %v486 = vsel %vm483, %v484, %v485
        %487 = vrot.lane.b32.xlu0 %v486, 112
        %v488 = vpop.permute.xlu0 %487
        %vm490 = vcmask 130048
        %v491 = vsel %vm490, %v353, %v438
        %vm492 = vcmask 261120
        %v493 = vsel %vm492, %v491, %v441
        %vm494 = vcmask 392192
        %v495 = vsel %vm494, %v493, %v444
        %v496 = vsel %vm348, %v495, %v447
        %vm497 = vcmask 654336
        %v498 = vsel %vm497, %v496, %v454
        %vm499 = vcmask 785408
        %v500 = vsel %vm499, %v498, %v457
        %vm501 = vcmask 916480
        %v502 = vsel %vm501, %v500, %v460
        %v503 = vsel %vm490, %v463, %v466
        %v504 = vsel %vm492, %v503, %v469
        %v505 = vsel %vm494, %v504, %v472
        %v506 = vsel %vm348, %v505, %v475
        %v507 = vsel %vm497, %v506, %v478
        %v508 = vsel %vm499, %v507, %v481
        %v509 = vsel %vm501, %v508, %v488
        %510 = vrot.lane.b32.xlu0 %v353, 126
        %v511 = vpop.permute.xlu0 %510
        %512 = vrot.lane.b32.xlu0 %v354, 126
        %v513 = vpop.permute.xlu0 %512
        %516 = vrot.lane.b32.xlu0 %v353, 12
        %v517 = vpop.permute.xlu0 %516
        %518 = vrot.lane.b32.xlu0 %v354, 12
        %v519 = vpop.permute.xlu0 %518
        %522 = vrot.lane.b32.xlu0 %v353, 26
        %v523 = vpop.permute.xlu0 %522
        %524 = vrot.lane.b32.xlu0 %v354, 26
        %v525 = vpop.permute.xlu0 %524
        %528 = vrot.lane.b32.xlu0 %v353, 40
        %v529 = vpop.permute.xlu0 %528
        %530 = vrot.lane.b32.xlu0 %v354, 40
        %v531 = vpop.permute.xlu0 %530
        %534 = vrot.lane.b32.xlu0 %v452, 64
        %v535 = vpop.permute.xlu0 %534
        %536 = vrot.lane.b32.xlu0 %v451, 64
        %v537 = vpop.permute.xlu0 %536
        %540 = vrot.lane.b32.xlu0 %v452, 78
        %v541 = vpop.permute.xlu0 %540
        %542 = vrot.lane.b32.xlu0 %v451, 78
        %v543 = vpop.permute.xlu0 %542
        %546 = vrot.lane.b32.xlu0 %v452, 92
        %v547 = vpop.permute.xlu0 %546
        %548 = vrot.lane.b32.xlu0 %v451, 92
        %v549 = vpop.permute.xlu0 %548
        %552 = vrot.lane.b32.xlu0 %v452, 106
        %v553 = vpop.permute.xlu0 %552
        %554 = vrot.lane.b32.xlu0 %v451, 106
        %v555 = vpop.permute.xlu0 %554
        %558 = vrot.lane.b32.xlu0 %v452, 120
        %v559 = vpop.permute.xlu0 %558
        %560 = vrot.lane.b32.xlu0 %v451, 120
        %v561 = vpop.permute.xlu0 %560
        %v562 = vsel %vm490, %v511, %v517
        %v563 = vsel %vm490, %v513, %v519
        %v564 = vsel %vm492, %v562, %v523
        %v565 = vsel %vm492, %v563, %v525
        %v566 = vsel %vm494, %v564, %v529
        %v567 = vsel %vm494, %v565, %v531
        %v568 = vsel %vm348, %v566, %v535
        %v569 = vsel %vm348, %v567, %v537
        %v570 = vsel %vm497, %v568, %v541
        %v571 = vsel %vm497, %v569, %v543
        %v572 = vsel %vm499, %v570, %v547
        %v573 = vsel %vm499, %v571, %v549
        %v574 = vsel %vm501, %v572, %v553
        %v575 = vsel %vm501, %v573, %v555
        %v578 = vrot.slane %v574, 3
        %v579 = vrot.slane %v575, 3
        %v580 = vsel %vm483, %v578, %v579
        %v581 = vrot.slane %v559, 3
        %v582 = vrot.slane %v561, 3
        %v583 = vsel %vm483, %v581, %v582
        %v586 = vpack.c.bf16 %v502, %v502
        %v587 = vpack.c.bf16 %v509, %v509
        %v588 = vpack.c.bf16 %v580, %v580
        %v589 = vpack.c.bf16 %v583, %v583
        %v590 = vld [vmem:[%s1] sm:$0xf]
        %v591 = vld [vmem:[%s1 + $0x4] sm:$0xf]
        %v592 = vld [vmem:[%s1 + $0x8] sm:$0xf]
        %v593 = vld [vmem:[%s1 + $0xc] sm:$0xf]
        %v594 = vld [vmem:[%s1 + $0x10] sm:$0xf]
        %v595 = vld [vmem:[%s1 + $0x14] sm:$0xf]
        %v596 = vld [vmem:[%s1 + $0x18] sm:$0xf]
        %v597 = vld [vmem:[%s1 + $0x1c] sm:$0xf]
        %v598 = vld [vmem:[%s1 + $0x20] sm:$0xf]
        %v599 = vld [vmem:[%s1 + $0x24] sm:$0xf]
        %v600 = vld [vmem:[%s1 + $0x28] sm:$0xf]
        %v601 = vld [vmem:[%s1 + $0x2c] sm:$0xf]
        %v602 = vld [vmem:[%s1 + $0x30] sm:$0xf]
        %v603 = vld [vmem:[%s1 + $0x34] sm:$0xf]
        %v604 = vld [vmem:[%s1 + $0x38] sm:$0xf]
        %v605 = vld [vmem:[%s1 + $0x3c] sm:$0xf]
        %v606 = vld [vmem:[%s1 + $0x40] sm:$0xf]
        %v607 = vld [vmem:[%s1 + $0x44] sm:$0xf]
        %v608 = vld [vmem:[%s1 + $0x48] sm:$0xf]
        %v609 = vld [vmem:[%s1 + $0x4c] sm:$0xf]
        %v610 = vld [vmem:[%s1 + $0x50] sm:$0xf]
        %v611 = vld [vmem:[%s1 + $0x54] sm:$0xf]
        %v612 = vld [vmem:[%s1 + $0x58] sm:$0xf]
        %v613 = vld [vmem:[%s1 + $0x5c] sm:$0xf]
        %v614 = vld [vmem:[%s1 + $0x60] sm:$0xf]
        %v615 = vld [vmem:[%s1 + $0x64] sm:$0xf]
        %v616 = vld [vmem:[%s1 + $0x68] sm:$0xf]
        %v617 = vld [vmem:[%s1 + $0x6c] sm:$0xf]
        %v618 = vld [vmem:[%s1 + $0x70] sm:$0xf]
        %v619 = vld [vmem:[%s1 + $0x74] sm:$0xf]
        %v620 = vld [vmem:[%s1 + $0x78] sm:$0xf]
        %v621 = vld [vmem:[%s1 + $0x7c] sm:$0xf]
        %v622 = vld [vmem:[%s1 + $0x80] sm:$0xf]
        %v623 = vld [vmem:[%s1 + $0x84] sm:$0xf]
        %v624 = vld [vmem:[%s1 + $0x88] sm:$0xf]
        %v625 = vld [vmem:[%s1 + $0x8c] sm:$0xf]
        %v626 = vld [vmem:[%s1 + $0x90] sm:$0xf]
        %v627 = vld [vmem:[%s1 + $0x94] sm:$0xf]
        %v628 = vld [vmem:[%s1 + $0x98] sm:$0xf]
        %v629 = vld [vmem:[%s1 + $0x9c] sm:$0xf]
        %v630 = vld [vmem:[%s1 + $0xa0] sm:$0xf]
        %v631 = vld [vmem:[%s1 + $0xa4] sm:$0xf]
        %v632 = vld [vmem:[%s1 + $0xa8] sm:$0xf]
        %v633 = vld [vmem:[%s1 + $0xac] sm:$0xf]
        %v634 = vld [vmem:[%s1 + $0xb0] sm:$0xf]
        %v635 = vld [vmem:[%s1 + $0xb4] sm:$0xf]
        %v636 = vld [vmem:[%s1 + $0xb8] sm:$0xf]
        %v637 = vld [vmem:[%s1 + $0xbc] sm:$0xf]
        %v638 = vld [vmem:[%s1 + $0xc0] sm:$0xf]
        %v639 = vld [vmem:[%s1 + $0xc4] sm:$0xf]
        %v640 = vld [vmem:[%s2] sm:$0x1]
        %v642 = vlaneseq
        %v643 = vshrl.u32 %v642, 7
        %v644 = vsub.s32 0, %v643
        %v645 = vrot.slane %v640, %v644
        %v697 = vunpack.c.l.b16 %v590
        %v698 = vunpack.c.l.b16 %v591
        %v699 = vunpack.c.l.b16 %v592
        %v700 = vunpack.c.l.b16 %v593
        %v701 = vunpack.c.l.b16 %v594
        %v702 = vunpack.c.l.b16 %v595
        %v703 = vunpack.c.l.b16 %v596
        %v704 = vunpack.c.l.b16 %v597
        %v705 = vunpack.c.l.b16 %v598
        %v706 = vunpack.c.l.b16 %v599
        %v707 = vunpack.c.l.b16 %v600
        %v708 = vunpack.c.l.b16 %v601
        %v709 = vunpack.c.l.b16 %v602
        %v710 = vunpack.c.l.b16 %v603
        %v711 = vunpack.c.l.b16 %v604
        %v712 = vunpack.c.l.b16 %v605
        %v713 = vunpack.c.l.b16 %v606
        %v714 = vunpack.c.l.b16 %v607
        %v715 = vunpack.c.l.b16 %v608
        %v716 = vunpack.c.l.b16 %v609
        %v717 = vunpack.c.l.b16 %v610
        %v718 = vunpack.c.l.b16 %v611
        %v719 = vunpack.c.l.b16 %v612
        %v720 = vunpack.c.l.b16 %v613
        %v721 = vunpack.c.l.b16 %v614
        %v722 = vunpack.c.l.b16 %v615
        %v723 = vunpack.c.l.b16 %v616
        %v724 = vunpack.c.l.b16 %v617
        %v725 = vunpack.c.l.b16 %v618
        %v726 = vunpack.c.l.b16 %v619
        %v727 = vunpack.c.l.b16 %v620
        %v728 = vunpack.c.l.b16 %v621
        %v729 = vunpack.c.l.b16 %v622
        %v730 = vunpack.c.l.b16 %v623
        %v731 = vunpack.c.l.b16 %v624
        %v732 = vunpack.c.l.b16 %v625
        %v733 = vunpack.c.l.b16 %v626
        %v734 = vunpack.c.l.b16 %v627
        %v735 = vunpack.c.l.b16 %v628
        %v736 = vunpack.c.l.b16 %v629
        %v737 = vunpack.c.l.b16 %v630
        %v738 = vunpack.c.l.b16 %v631
        %v739 = vunpack.c.l.b16 %v632
        %v740 = vunpack.c.l.b16 %v633
        %v741 = vunpack.c.l.b16 %v634
        %v742 = vunpack.c.l.b16 %v635
        %v743 = vunpack.c.l.b16 %v636
        %v744 = vunpack.c.l.b16 %v637
        %v745 = vunpack.c.l.b16 %v638
        %v746 = vunpack.c.l.b16 %v639
        %v747 = vpack.c.b16 %v698, %v697
        %v748 = vpack.c.b16 %v700, %v699
        %v749 = vpack.c.b16 %v702, %v701
        %v750 = vpack.c.b16 %v704, %v703
        %v751 = vpack.c.b16 %v706, %v705
        %v752 = vpack.c.b16 %v708, %v707
        %v753 = vpack.c.b16 %v710, %v709
        %v754 = vpack.c.b16 %v712, %v711
        %v755 = vpack.c.b16 %v714, %v713
        %v756 = vpack.c.b16 %v716, %v715
        %v757 = vpack.c.b16 %v718, %v717
        %v758 = vpack.c.b16 %v720, %v719
        %v759 = vpack.c.b16 %v722, %v721
        %v760 = vpack.c.b16 %v724, %v723
        %v761 = vpack.c.b16 %v726, %v725
        %v762 = vpack.c.b16 %v728, %v727
        %v763 = vpack.c.b16 %v730, %v729
        %v764 = vpack.c.b16 %v732, %v731
        %v765 = vpack.c.b16 %v734, %v733
        %v766 = vpack.c.b16 %v736, %v735
        %v767 = vpack.c.b16 %v738, %v737
        %v768 = vpack.c.b16 %v740, %v739
        %v769 = vpack.c.b16 %v742, %v741
        %v770 = vpack.c.b16 %v744, %v743
        %v771 = vpack.c.b16 %v746, %v745
        %v798 = vsel %vm490, %v589, 0
        %800 = vmatprep.subr.bf16.mxu0 0
        %801 = vmatpush1.bf16.msra.mxu0 %v747
        %802 = vmatprep.subr.bf16.mxu0 0
        %803 = vmatpush1.bf16.msra.mxu0 %v748
        %804 = vmatprep.subr.bf16.mxu0 0
        %805 = vmatpush1.bf16.msra.mxu0 %v749
        %806 = vmatprep.subr.bf16.mxu0 0
        %807 = vmatpush1.bf16.msra.mxu0 %v750
        %808 = vmatprep.subr.bf16.mxu0 0
        %809 = vmatpush1.bf16.msra.mxu0 %v751
        %810 = vmatprep.subr.bf16.mxu0 0
        %811 = vmatpush1.bf16.msra.mxu0 %v752
        %812 = vmatprep.subr.bf16.mxu0 0
        %813 = vmatpush1.bf16.msra.mxu0 %v753
        %814 = vmatprep.subr.bf16.mxu0 0
        %815 = vmatpush1.bf16.msra.mxu0 %v754
        %816 = vmatprep.subr.bf16.mxu0 0
        %817 = vmatpush1.bf16.msra.mxu0 %v755
        %818 = vmatprep.subr.bf16.mxu0 0
        %819 = vmatpush1.bf16.msra.mxu0 %v756
        %820 = vmatprep.subr.bf16.mxu0 0
        %821 = vmatpush1.bf16.msra.mxu0 %v757
        %822 = vmatprep.subr.bf16.mxu0 0
        %823 = vmatpush1.bf16.msra.mxu0 %v758
        %824 = vmatprep.subr.bf16.mxu0 0
        %825 = vmatpush1.bf16.msra.mxu0 %v759
        %826 = vmatprep.subr.bf16.mxu0 0
        %827 = vmatpush1.bf16.msra.mxu0 %v760
        %828 = vmatprep.subr.bf16.mxu0 0
        %829 = vmatpush1.bf16.msra.mxu0 %v761
        %830 = vmatprep.subr.bf16.mxu0 0
        %831 = vmatpush1.bf16.msra.mxu0 %v762
        %832 = vmatprep.mubr.bf16.mxu0 %v587
        %833 = vmatmul.mubr.bf16.gmra.mrb[0].mxu0 %v586
        %v834 = vpop.f32.mrb[0].mxu0
        %v835 = vadd.f32 %v645, %v834
        %v836 = vpop.f32.mrb[0].mxu0
        %v837 = vpop.f32.mrb[0].mxu0
        %v838 = vpop.f32.mrb[0].mxu0
        %839 = vdwg.mxu0
        %840 = vmatprep.subr.bf16.mxu0 0
        %841 = vmatpush1.bf16.msra.mxu0 %v763
        %842 = vmatprep.subr.bf16.mxu0 0
        %843 = vmatpush1.bf16.msra.mxu0 %v764
        %844 = vmatprep.subr.bf16.mxu0 0
        %845 = vmatpush1.bf16.msra.mxu0 %v765
        %846 = vmatprep.subr.bf16.mxu0 0
        %847 = vmatpush1.bf16.msra.mxu0 %v766
        %848 = vmatprep.subr.bf16.mxu0 0
        %849 = vmatpush1.bf16.msra.mxu0 %v767
        %850 = vmatprep.subr.bf16.mxu0 0
        %851 = vmatpush1.bf16.msra.mxu0 %v768
        %852 = vmatprep.subr.bf16.mxu0 0
        %853 = vmatpush1.bf16.msra.mxu0 %v769
        %854 = vmatprep.subr.bf16.mxu0 0
        %855 = vmatpush1.bf16.msra.mxu0 %v770
        %856 = vmatprep.subr.bf16.mxu0 0
        %857 = vmatpush1.bf16.msra.mxu0 %v771
        %858 = vmatprep.subr.bf16.mxu0 0
        %859 = vmatpush1.bf16.msra.mxu0 0
        %860 = vmatprep.subr.bf16.mxu0 0
        %861 = vmatpush1.bf16.msra.mxu0 0
        %862 = vmatprep.subr.bf16.mxu0 0
        %863 = vmatpush1.bf16.msra.mxu0 0
        %864 = vmatprep.subr.bf16.mxu0 0
        %865 = vmatpush1.bf16.msra.mxu0 0
        %866 = vmatprep.subr.bf16.mxu0 0
        %867 = vmatpush1.bf16.msra.mxu0 0
        %868 = vmatprep.subr.bf16.mxu0 0
        %869 = vmatpush1.bf16.msra.mxu0 0
        %870 = vmatprep.subr.bf16.mxu0 0
        %871 = vmatpush1.bf16.msra.mxu0 0
        %872 = vmatprep.mubr.bf16.mxu0 %v798
        %873 = vmatmul.mubr.bf16.gmra.mrb[0].mxu0 %v588
        %v874 = vpop.f32.mrb[0].mxu0
        %v875 = vadd.f32 %v835, %v874
        %v876 = vpop.f32.mrb[0].mxu0
        %v877 = vpop.f32.mrb[0].mxu0
        %v878 = vpop.f32.mrb[0].mxu0
        %879 = vdwg.mxu0
        %v881 = vrot.slane %v875, 6
        %882 = vrot.lane.b32.xlu0 %v881, 32
        %v883 = vpop.permute.xlu0 %882
        %vm885 = vcmask 1047810
        %886 = vst.msk [vmem:[#allocation2] sm:$0xfc] %vm885, %v883
        %vm887 = vcmask 261122
        %888 = vst.msk [vmem:[#allocation2 + $0x8] sm:$0xfc] %vm887, %v883
        %vm889 = vcmask 1041664
        %890 = vst.msk [vmem:[#allocation2 + $0x10] sm:$0x3] %vm889, %v883
        %vm891 = vcmask 254976
        %892 = vst.msk [vmem:[#allocation2 + $0x18] sm:$0x3] %vm891, %v883
        %v893 = vld [vmem:[#allocation2] sm:$0xfe]
        %v894 = vld [vmem:[#allocation2 + $0x8] sm:$0xfe]
        %v895 = vld [vmem:[#allocation2 + $0x10] sm:$0x1]
        %v896 = vld [vmem:[#allocation2 + $0x18] sm:$0x1]
        %v897 = vld [vmem:[#allocation2] sm:$0xfc]
        %v898 = vld [vmem:[#allocation2 + $0x8] sm:$0xfc]
        %v899 = vld [vmem:[#allocation2 + $0x10] sm:$0x3]
        %v900 = vld [vmem:[#allocation2 + $0x18] sm:$0x3]
        %v901 = vld [vmem:[#allocation2] sm:$0xf8]
        %v902 = vld [vmem:[#allocation2 + $0x8] sm:$0xf8]
        %v903 = vld [vmem:[#allocation2 + $0x10] sm:$0x7]
        %v904 = vld [vmem:[#allocation2 + $0x18] sm:$0x7]
        %909 = vrot.lane.b32.xlu0 %v893, 112
        %v910 = vpop.permute.xlu0 %909
        %911 = vrot.lane.b32.xlu0 %v894, 112
        %v912 = vpop.permute.xlu0 %911
        %913 = vrot.lane.b32.xlu0 %v895, 112
        %v914 = vpop.permute.xlu0 %913
        %915 = vrot.lane.b32.xlu0 %v896, 112
        %v916 = vpop.permute.xlu0 %915
        %v917 = vsel %vm501, %v910, %v912
        %v918 = vsel %vm501, %v914, %v916
        %921 = vrot.lane.b32.xlu0 %v893, 96
        %v922 = vpop.permute.xlu0 %921
        %923 = vrot.lane.b32.xlu0 %v894, 96
        %v924 = vpop.permute.xlu0 %923
        %925 = vrot.lane.b32.xlu0 %v895, 96
        %v926 = vpop.permute.xlu0 %925
        %927 = vrot.lane.b32.xlu0 %v896, 96
        %v928 = vpop.permute.xlu0 %927
        %v929 = vsel %vm499, %v922, %v924
        %v930 = vsel %vm499, %v926, %v928
        %933 = vrot.lane.b32.xlu0 %v893, 80
        %v934 = vpop.permute.xlu0 %933
        %935 = vrot.lane.b32.xlu0 %v894, 80
        %v936 = vpop.permute.xlu0 %935
        %937 = vrot.lane.b32.xlu0 %v895, 80
        %v938 = vpop.permute.xlu0 %937
        %939 = vrot.lane.b32.xlu0 %v896, 80
        %v940 = vpop.permute.xlu0 %939
        %v941 = vsel %vm497, %v934, %v936
        %v942 = vsel %vm497, %v938, %v940
        %v949 = vrot.slane %v897, 1
        %v950 = vrot.slane %v899, 1
        %v951 = vsel %vm449, %v949, %v950
        %v952 = vrot.slane %v898, 1
        %v953 = vrot.slane %v900, 1
        %v954 = vsel %vm449, %v952, %v953
        %955 = vrot.lane.b32.xlu0 %v951, 112
        %v956 = vpop.permute.xlu0 %955
        %957 = vrot.lane.b32.xlu0 %v954, 112
        %v958 = vpop.permute.xlu0 %957
        %959 = vrot.lane.b32.xlu0 %v950, 112
        %v960 = vpop.permute.xlu0 %959
        %961 = vrot.lane.b32.xlu0 %v953, 112
        %v962 = vpop.permute.xlu0 %961
        %v963 = vsel %vm501, %v956, %v958
        %v964 = vsel %vm501, %v960, %v962
        %967 = vrot.lane.b32.xlu0 %v951, 96
        %v968 = vpop.permute.xlu0 %967
        %969 = vrot.lane.b32.xlu0 %v954, 96
        %v970 = vpop.permute.xlu0 %969
        %971 = vrot.lane.b32.xlu0 %v950, 96
        %v972 = vpop.permute.xlu0 %971
        %973 = vrot.lane.b32.xlu0 %v953, 96
        %v974 = vpop.permute.xlu0 %973
        %v975 = vsel %vm499, %v968, %v970
        %v976 = vsel %vm499, %v972, %v974
        %979 = vrot.lane.b32.xlu0 %v951, 80
        %v980 = vpop.permute.xlu0 %979
        %981 = vrot.lane.b32.xlu0 %v954, 80
        %v982 = vpop.permute.xlu0 %981
        %983 = vrot.lane.b32.xlu0 %v950, 80
        %v984 = vpop.permute.xlu0 %983
        %985 = vrot.lane.b32.xlu0 %v953, 80
        %v986 = vpop.permute.xlu0 %985
        %v987 = vsel %vm497, %v980, %v982
        %v988 = vsel %vm497, %v984, %v986
        %v995 = vrot.slane %v901, 2
        %v996 = vrot.slane %v903, 2
        %v997 = vsel %vm360, %v995, %v996
        %v998 = vrot.slane %v902, 2
        %v999 = vrot.slane %v904, 2
        %v1000 = vsel %vm360, %v998, %v999
        %1001 = vrot.lane.b32.xlu0 %v997, 112
        %v1002 = vpop.permute.xlu0 %1001
        %1003 = vrot.lane.b32.xlu0 %v1000, 112
        %v1004 = vpop.permute.xlu0 %1003
        %1005 = vrot.lane.b32.xlu0 %v996, 112
        %v1006 = vpop.permute.xlu0 %1005
        %1007 = vrot.lane.b32.xlu0 %v999, 112
        %v1008 = vpop.permute.xlu0 %1007
        %v1009 = vsel %vm501, %v1002, %v1004
        %v1010 = vsel %vm501, %v1006, %v1008
        %1013 = vrot.lane.b32.xlu0 %v997, 96
        %v1014 = vpop.permute.xlu0 %1013
        %1015 = vrot.lane.b32.xlu0 %v1000, 96
        %v1016 = vpop.permute.xlu0 %1015
        %1017 = vrot.lane.b32.xlu0 %v996, 96
        %v1018 = vpop.permute.xlu0 %1017
        %1019 = vrot.lane.b32.xlu0 %v999, 96
        %v1020 = vpop.permute.xlu0 %1019
        %v1021 = vsel %vm499, %v1014, %v1016
        %v1022 = vsel %vm499, %v1018, %v1020
        %1025 = vrot.lane.b32.xlu0 %v997, 80
        %v1026 = vpop.permute.xlu0 %1025
        %1027 = vrot.lane.b32.xlu0 %v1000, 80
        %v1028 = vpop.permute.xlu0 %1027
        %1029 = vrot.lane.b32.xlu0 %v996, 80
        %v1030 = vpop.permute.xlu0 %1029
        %1031 = vrot.lane.b32.xlu0 %v999, 80
        %v1032 = vpop.permute.xlu0 %1031
        %v1033 = vsel %vm497, %v1026, %v1028
        %v1034 = vsel %vm497, %v1030, %v1032
        %v1037 = vpack.c.bf16 %v918, %v917
        %v1038 = vpack.c.bf16 %v930, %v929
        %v1039 = vpack.c.bf16 %v942, %v941
        %v1040 = vpack.c.bf16 %v964, %v963
        %v1041 = vpack.c.bf16 %v976, %v975
        %v1042 = vpack.c.bf16 %v988, %v987
        %v1043 = vpack.c.bf16 %v1010, %v1009
        %v1044 = vpack.c.bf16 %v1022, %v1021
        %v1045 = vpack.c.bf16 %v1034, %v1033
        %v1046 = vld [vmem:[#allocation3] sm:$0xf]
        %v1047 = vld [vmem:[#allocation3 + $0x4] sm:$0xf]
        %v1048 = vld [vmem:[#allocation3 + $0x8] sm:$0xf]
        %v1049 = vld [vmem:[#allocation3 + $0xc] sm:$0xf]
        %v1050 = vld [vmem:[#allocation3 + $0x10] sm:$0xf]
        %v1051 = vld [vmem:[#allocation3 + $0x14] sm:$0xf]
        %v1052 = vld [vmem:[#allocation3 + $0x18] sm:$0xf]
        %v1053 = vld [vmem:[#allocation3 + $0x1c] sm:$0xf]
        %v1054 = vld [vmem:[#allocation3 + $0x20] sm:$0xf]
        %v1055 = vld [vmem:[#allocation3 + $0x24] sm:$0xf]
        %v1056 = vld [vmem:[#allocation3 + $0x28] sm:$0xf]
        %v1057 = vld [vmem:[#allocation3 + $0x2c] sm:$0xf]
        %v1058 = vld [vmem:[#allocation3 + $0x30] sm:$0xf]
        %v1059 = vld [vmem:[#allocation3 + $0x34] sm:$0xf]
        %v1060 = vld [vmem:[#allocation3 + $0x38] sm:$0xf]
        %v1061 = vld [vmem:[#allocation3 + $0x3c] sm:$0xf]
        %v1062 = vld [vmem:[#allocation3 + $0x40] sm:$0xf]
        %v1063 = vld [vmem:[#allocation3 + $0x44] sm:$0xf]
        %v1064 = vld [vmem:[#allocation3 + $0x48] sm:$0xf]
        %v1065 = vld [vmem:[#allocation3 + $0x4c] sm:$0xf]
        %v1066 = vld [vmem:[#allocation3 + $0x50] sm:$0xf]
        %v1067 = vld [vmem:[#allocation3 + $0x54] sm:$0xf]
        %v1068 = vld [vmem:[#allocation3 + $0x58] sm:$0xf]
        %v1069 = vld [vmem:[#allocation3 + $0x5c] sm:$0xf]
        %v1070 = vld [vmem:[#allocation3 + $0x60] sm:$0xf]
        %v1071 = vld [vmem:[#allocation3 + $0x64] sm:$0xf]
        %v1072 = vld [vmem:[#allocation3 + $0x68] sm:$0xf]
        %v1073 = vld [vmem:[#allocation3 + $0x6c] sm:$0xf]
        %v1074 = vld [vmem:[#allocation3 + $0x70] sm:$0xf]
        %v1075 = vld [vmem:[#allocation3 + $0x74] sm:$0xf]
        %v1076 = vld [vmem:[#allocation3 + $0x78] sm:$0xf]
        %v1077 = vld [vmem:[#allocation3 + $0x7c] sm:$0xf]
        %v1078 = vld [vmem:[#allocation3 + $0x80] sm:$0xf]
        %v1079 = vld [vmem:[#allocation3 + $0x84] sm:$0xf]
        %v1080 = vld [vmem:[#allocation3 + $0x88] sm:$0xf]
        %v1081 = vld [vmem:[#allocation3 + $0x8c] sm:$0xf]
        %v1082 = vld [vmem:[#allocation3 + $0x90] sm:$0xf]
        %v1083 = vld [vmem:[#allocation3 + $0x94] sm:$0xf]
        %v1084 = vld [vmem:[#allocation3 + $0x98] sm:$0xf]
        %v1085 = vld [vmem:[#allocation3 + $0x9c] sm:$0xf]
        %v1086 = vld [vmem:[#allocation3 + $0xa0] sm:$0xf]
        %v1087 = vld [vmem:[#allocation3 + $0xa4] sm:$0xf]
        %v1088 = vld [vmem:[#allocation3 + $0xa8] sm:$0xf]
        %v1089 = vld [vmem:[#allocation3 + $0xac] sm:$0xf]
        %v1090 = vld [vmem:[#allocation3 + $0xb0] sm:$0xf]
        %v1091 = vld [vmem:[#allocation3 + $0xb4] sm:$0xf]
        %v1092 = vld [vmem:[#allocation3 + $0xb8] sm:$0xf]
        %v1093 = vld [vmem:[#allocation3 + $0xbc] sm:$0xf]
        %v1094 = vld [vmem:[#allocation3 + $0xc0] sm:$0xf]
        %v1095 = vld [vmem:[#allocation3 + $0xc4] sm:$0xf]
        %v1096 = vld [vmem:[#allocation3 + $0xc8] sm:$0xf]
        %v1097 = vld [vmem:[#allocation3 + $0xcc] sm:$0xf]
        %v1098 = vld [vmem:[#allocation3 + $0xd0] sm:$0xf]
        %v1099 = vld [vmem:[#allocation3 + $0xd4] sm:$0xf]
        %v1100 = vld [vmem:[#allocation3 + $0xd8] sm:$0xf]
        %v1101 = vld [vmem:[#allocation3 + $0xdc] sm:$0xf]
        %v1102 = vld [vmem:[#allocation3 + $0xe0] sm:$0xf]
        %v1103 = vld [vmem:[#allocation3 + $0xe4] sm:$0xf]
        %v1104 = vld [vmem:[#allocation3 + $0xe8] sm:$0xf]
        %v1105 = vld [vmem:[#allocation3 + $0xec] sm:$0xf]
        %v1106 = vld [vmem:[#allocation3 + $0xf0] sm:$0xf]
        %v1107 = vld [vmem:[#allocation3 + $0xf4] sm:$0xf]
        %v1108 = vld [vmem:[#allocation3 + $0xf8] sm:$0xf]
        %v1109 = vld [vmem:[#allocation3 + $0xfc] sm:$0xf]
        %v1110 = vld [vmem:[#allocation3 + $0x100] sm:$0xf]
        %v1111 = vld [vmem:[#allocation3 + $0x104] sm:$0xf]
        %v1112 = vld [vmem:[#allocation3 + $0x108] sm:$0xf]
        %v1113 = vld [vmem:[#allocation3 + $0x10c] sm:$0xf]
        %v1114 = vld [vmem:[#allocation3 + $0x110] sm:$0xf]
        %v1115 = vld [vmem:[#allocation3 + $0x114] sm:$0xf]
        %v1116 = vld [vmem:[#allocation3 + $0x118] sm:$0xf]
        %v1117 = vld [vmem:[#allocation3 + $0x11c] sm:$0xf]
        %v1118 = vld [vmem:[#allocation3 + $0x120] sm:$0xf]
        %v1119 = vld [vmem:[#allocation3 + $0x124] sm:$0xf]
        %v1120 = vld [vmem:[#allocation3 + $0x128] sm:$0xf]
        %v1121 = vld [vmem:[#allocation3 + $0x12c] sm:$0xf]
        %v1122 = vld [vmem:[#allocation3 + $0x130] sm:$0xf]
        %v1123 = vld [vmem:[#allocation3 + $0x134] sm:$0xf]
        %v1124 = vld [vmem:[#allocation3 + $0x138] sm:$0xf]
        %v1125 = vld [vmem:[#allocation3 + $0x13c] sm:$0xf]
        %v1126 = vld [vmem:[#allocation3 + $0x140] sm:$0xf]
        %v1127 = vld [vmem:[#allocation3 + $0x144] sm:$0xf]
        %v1128 = vld [vmem:[#allocation3 + $0x148] sm:$0xf]
        %v1129 = vld [vmem:[#allocation3 + $0x14c] sm:$0xf]
        %v1130 = vld [vmem:[#allocation3 + $0x150] sm:$0xf]
        %v1131 = vld [vmem:[#allocation3 + $0x154] sm:$0xf]
        %v1132 = vld [vmem:[#allocation3 + $0x158] sm:$0xf]
        %v1133 = vld [vmem:[#allocation3 + $0x15c] sm:$0xf]
        %v1134 = vld [vmem:[#allocation3 + $0x160] sm:$0xf]
        %v1135 = vld [vmem:[#allocation3 + $0x164] sm:$0xf]
        %v1136 = vld [vmem:[#allocation3 + $0x168] sm:$0xf]
        %v1137 = vld [vmem:[#allocation3 + $0x16c] sm:$0xf]
        %v1138 = vld [vmem:[#allocation3 + $0x170] sm:$0xf]
        %v1139 = vld [vmem:[#allocation3 + $0x174] sm:$0xf]
        %v1140 = vld [vmem:[#allocation3 + $0x178] sm:$0xf]
        %v1141 = vld [vmem:[#allocation3 + $0x17c] sm:$0xf]
        %v1142 = vld [vmem:[#allocation3 + $0x180] sm:$0xf]
        %v1143 = vld [vmem:[#allocation3 + $0x184] sm:$0xf]
        %v1144 = vld [vmem:[#allocation3 + $0x188] sm:$0xf]
        %v1145 = vld [vmem:[#allocation3 + $0x18c] sm:$0xf]
        %v1146 = vld [vmem:[#allocation3 + $0x190] sm:$0xf]
        %v1147 = vld [vmem:[#allocation3 + $0x194] sm:$0xf]
        %v1148 = vld [vmem:[#allocation3 + $0x198] sm:$0xf]
        %v1149 = vld [vmem:[#allocation3 + $0x19c] sm:$0xf]
        %v1150 = vld [vmem:[#allocation3 + $0x1a0] sm:$0xf]
        %v1151 = vld [vmem:[#allocation3 + $0x1a4] sm:$0xf]
        %v1152 = vld [vmem:[#allocation3 + $0x1a8] sm:$0xf]
        %v1153 = vld [vmem:[#allocation3 + $0x1ac] sm:$0xf]
        %v1154 = vld [vmem:[#allocation3 + $0x1b0] sm:$0xf]
        %v1155 = vld [vmem:[#allocation3 + $0x1b4] sm:$0xf]
        %v1156 = vld [vmem:[#allocation3 + $0x1b8] sm:$0xf]
        %v1157 = vld [vmem:[#allocation3 + $0x1bc] sm:$0xf]
        %v1158 = vld [vmem:[#allocation3 + $0x1c0] sm:$0xf]
        %v1159 = vld [vmem:[#allocation3 + $0x1c4] sm:$0xf]
        %v1160 = vld [vmem:[#allocation3 + $0x1c8] sm:$0xf]
        %v1161 = vld [vmem:[#allocation3 + $0x1cc] sm:$0xf]
        %v1162 = vld [vmem:[#allocation3 + $0x1d0] sm:$0xf]
        %v1163 = vld [vmem:[#allocation3 + $0x1d4] sm:$0xf]
        %v1164 = vld [vmem:[#allocation3 + $0x1d8] sm:$0xf]
        %v1165 = vld [vmem:[#allocation3 + $0x1dc] sm:$0xf]
        %v1166 = vld [vmem:[#allocation3 + $0x1e0] sm:$0xf]
        %v1167 = vld [vmem:[#allocation3 + $0x1e4] sm:$0xf]
        %v1168 = vld [vmem:[#allocation3 + $0x1e8] sm:$0xf]
        %v1169 = vld [vmem:[#allocation3 + $0x1ec] sm:$0xf]
        %v1170 = vld [vmem:[#allocation3 + $0x1f0] sm:$0xf]
        %v1171 = vld [vmem:[#allocation3 + $0x1f4] sm:$0xf]
        %v1172 = vld [vmem:[#allocation3 + $0x1f8] sm:$0xf]
        %v1173 = vld [vmem:[#allocation3 + $0x1fc] sm:$0xf]
        %v1174 = vld [vmem:[#allocation3 + $0x200] sm:$0xf]
        %v1175 = vld [vmem:[#allocation3 + $0x204] sm:$0xf]
        %v1176 = vld [vmem:[#allocation3 + $0x208] sm:$0xf]
        %v1177 = vld [vmem:[#allocation3 + $0x20c] sm:$0xf]
        %v1178 = vld [vmem:[#allocation3 + $0x210] sm:$0xf]
        %v1179 = vld [vmem:[#allocation3 + $0x214] sm:$0xf]
        %v1180 = vld [vmem:[#allocation3 + $0x218] sm:$0xf]
        %v1181 = vld [vmem:[#allocation3 + $0x21c] sm:$0xf]
        %v1182 = vld [vmem:[#allocation3 + $0x220] sm:$0xf]
        %v1183 = vld [vmem:[#allocation3 + $0x224] sm:$0xf]
        %v1184 = vld [vmem:[#allocation3 + $0x228] sm:$0xf]
        %v1185 = vld [vmem:[#allocation3 + $0x22c] sm:$0xf]
        %v1186 = vld [vmem:[#allocation3 + $0x230] sm:$0xf]
        %v1187 = vld [vmem:[#allocation3 + $0x234] sm:$0xf]
        %v1188 = vld [vmem:[#allocation3 + $0x238] sm:$0xf]
        %v1189 = vld [vmem:[#allocation3 + $0x23c] sm:$0xf]
        %v1191 = vshrl.u32 %v1037, 16
        %v1193 = vshll.u32 %v1037, 16
        %v1195 = vrot.slane %v1193, 1
        %v1196 = vor.u32 %v1191, %v1195
        %v1198 = vshrl.u32 %v1038, 16
        %v1200 = vshll.u32 %v1038, 16
        %v1202 = vrot.slane %v1200, 1
        %v1203 = vor.u32 %v1198, %v1202
        %v1205 = vshrl.u32 %v1039, 16
        %v1207 = vshll.u32 %v1039, 16
        %v1209 = vrot.slane %v1207, 1
        %v1210 = vor.u32 %v1205, %v1209
        %v1212 = vshrl.u32 %v1040, 16
        %v1214 = vshll.u32 %v1040, 16
        %v1216 = vrot.slane %v1214, 1
        %v1217 = vor.u32 %v1212, %v1216
        %v1219 = vshrl.u32 %v1041, 16
        %v1221 = vshll.u32 %v1041, 16
        %v1223 = vrot.slane %v1221, 1
        %v1224 = vor.u32 %v1219, %v1223
        %v1226 = vshrl.u32 %v1042, 16
        %v1228 = vshll.u32 %v1042, 16
        %v1230 = vrot.slane %v1228, 1
        %v1231 = vor.u32 %v1226, %v1230
        %v1233 = vshrl.u32 %v1043, 16
        %v1235 = vshll.u32 %v1043, 16
        %v1237 = vrot.slane %v1235, 1
        %v1238 = vor.u32 %v1233, %v1237
        %v1240 = vshrl.u32 %v1044, 16
        %v1242 = vshll.u32 %v1044, 16
        %v1244 = vrot.slane %v1242, 1
        %v1245 = vor.u32 %v1240, %v1244
        %v1247 = vshrl.u32 %v1045, 16
        %v1249 = vshll.u32 %v1045, 16
        %v1251 = vrot.slane %v1249, 1
        %v1252 = vor.u32 %v1247, %v1251
        %v1406 = vunpack.c.l.b16 %v1046
        %v1407 = vunpack.c.l.b16 %v1047
        %v1408 = vunpack.c.l.b16 %v1048
        %v1409 = vunpack.c.l.b16 %v1049
        %v1410 = vunpack.c.l.b16 %v1050
        %v1411 = vunpack.c.l.b16 %v1051
        %v1412 = vunpack.c.l.b16 %v1052
        %v1413 = vunpack.c.l.b16 %v1053
        %v1414 = vunpack.c.l.b16 %v1054
        %v1415 = vunpack.c.l.b16 %v1055
        %v1416 = vunpack.c.l.b16 %v1056
        %v1417 = vunpack.c.l.b16 %v1057
        %v1418 = vunpack.c.l.b16 %v1058
        %v1419 = vunpack.c.l.b16 %v1059
        %v1420 = vunpack.c.l.b16 %v1060
        %v1421 = vunpack.c.l.b16 %v1061
        %v1422 = vunpack.c.l.b16 %v1062
        %v1423 = vunpack.c.l.b16 %v1063
        %v1424 = vunpack.c.l.b16 %v1064
        %v1425 = vunpack.c.l.b16 %v1065
        %v1426 = vunpack.c.l.b16 %v1066
        %v1427 = vunpack.c.l.b16 %v1067
        %v1428 = vunpack.c.l.b16 %v1068
        %v1429 = vunpack.c.l.b16 %v1069
        %v1430 = vunpack.c.l.b16 %v1070
        %v1431 = vunpack.c.l.b16 %v1071
        %v1432 = vunpack.c.l.b16 %v1072
        %v1433 = vunpack.c.l.b16 %v1073
        %v1434 = vunpack.c.l.b16 %v1074
        %v1435 = vunpack.c.l.b16 %v1075
        %v1436 = vunpack.c.l.b16 %v1076
        %v1437 = vunpack.c.l.b16 %v1077
        %v1438 = vunpack.c.l.b16 %v1078
        %v1439 = vunpack.c.l.b16 %v1079
        %v1440 = vunpack.c.l.b16 %v1080
        %v1441 = vunpack.c.l.b16 %v1081
        %v1442 = vunpack.c.l.b16 %v1082
        %v1443 = vunpack.c.l.b16 %v1083
        %v1444 = vunpack.c.l.b16 %v1084
        %v1445 = vunpack.c.l.b16 %v1085
        %v1446 = vunpack.c.l.b16 %v1086
        %v1447 = vunpack.c.l.b16 %v1087
        %v1448 = vunpack.c.l.b16 %v1088
        %v1449 = vunpack.c.l.b16 %v1089
        %v1450 = vunpack.c.l.b16 %v1090
        %v1451 = vunpack.c.l.b16 %v1091
        %v1452 = vunpack.c.l.b16 %v1092
        %v1453 = vunpack.c.l.b16 %v1093
        %v1454 = vunpack.c.l.b16 %v1094
        %v1455 = vunpack.c.l.b16 %v1095
        %v1456 = vunpack.c.l.b16 %v1096
        %v1457 = vunpack.c.l.b16 %v1097
        %v1458 = vunpack.c.l.b16 %v1098
        %v1459 = vunpack.c.l.b16 %v1099
        %v1460 = vunpack.c.l.b16 %v1100
        %v1461 = vunpack.c.l.b16 %v1101
        %v1462 = vunpack.c.l.b16 %v1102
        %v1463 = vunpack.c.l.b16 %v1103
        %v1464 = vunpack.c.l.b16 %v1104
        %v1465 = vunpack.c.l.b16 %v1105
        %v1466 = vunpack.c.l.b16 %v1106
        %v1467 = vunpack.c.l.b16 %v1107
        %v1468 = vunpack.c.l.b16 %v1108
        %v1469 = vunpack.c.l.b16 %v1109
        %v1470 = vunpack.c.l.b16 %v1110
        %v1471 = vunpack.c.l.b16 %v1111
        %v1472 = vunpack.c.l.b16 %v1112
        %v1473 = vunpack.c.l.b16 %v1113
        %v1474 = vunpack.c.l.b16 %v1114
        %v1475 = vunpack.c.l.b16 %v1115
        %v1476 = vunpack.c.l.b16 %v1116
        %v1477 = vunpack.c.l.b16 %v1117
        %v1478 = vunpack.c.l.b16 %v1118
        %v1479 = vunpack.c.l.b16 %v1119
        %v1480 = vunpack.c.l.b16 %v1120
        %v1481 = vunpack.c.l.b16 %v1121
        %v1482 = vunpack.c.l.b16 %v1122
        %v1483 = vunpack.c.l.b16 %v1123
        %v1484 = vunpack.c.l.b16 %v1124
        %v1485 = vunpack.c.l.b16 %v1125
        %v1486 = vunpack.c.l.b16 %v1126
        %v1487 = vunpack.c.l.b16 %v1127
        %v1488 = vunpack.c.l.b16 %v1128
        %v1489 = vunpack.c.l.b16 %v1129
        %v1490 = vunpack.c.l.b16 %v1130
        %v1491 = vunpack.c.l.b16 %v1131
        %v1492 = vunpack.c.l.b16 %v1132
        %v1493 = vunpack.c.l.b16 %v1133
        %v1494 = vunpack.c.l.b16 %v1134
        %v1495 = vunpack.c.l.b16 %v1135
        %v1496 = vunpack.c.l.b16 %v1136
        %v1497 = vunpack.c.l.b16 %v1137
        %v1498 = vunpack.c.l.b16 %v1138
        %v1499 = vunpack.c.l.b16 %v1139
        %v1500 = vunpack.c.l.b16 %v1140
        %v1501 = vunpack.c.l.b16 %v1141
        %v1502 = vunpack.c.l.b16 %v1142
        %v1503 = vunpack.c.l.b16 %v1143
        %v1504 = vunpack.c.l.b16 %v1144
        %v1505 = vunpack.c.l.b16 %v1145
        %v1506 = vunpack.c.l.b16 %v1146
        %v1507 = vunpack.c.l.b16 %v1147
        %v1508 = vunpack.c.l.b16 %v1148
        %v1509 = vunpack.c.l.b16 %v1149
        %v1510 = vunpack.c.l.b16 %v1150
        %v1511 = vunpack.c.l.b16 %v1151
        %v1512 = vunpack.c.l.b16 %v1152
        %v1513 = vunpack.c.l.b16 %v1153
        %v1514 = vunpack.c.l.b16 %v1154
        %v1515 = vunpack.c.l.b16 %v1155
        %v1516 = vunpack.c.l.b16 %v1156
        %v1517 = vunpack.c.l.b16 %v1157
        %v1518 = vunpack.c.l.b16 %v1158
        %v1519 = vunpack.c.l.b16 %v1159
        %v1520 = vunpack.c.l.b16 %v1160
        %v1521 = vunpack.c.l.b16 %v1161
        %v1522 = vunpack.c.l.b16 %v1162
        %v1523 = vunpack.c.l.b16 %v1163
        %v1524 = vunpack.c.l.b16 %v1164
        %v1525 = vunpack.c.l.b16 %v1165
        %v1526 = vunpack.c.l.b16 %v1166
        %v1527 = vunpack.c.l.b16 %v1167
        %v1528 = vunpack.c.l.b16 %v1168
        %v1529 = vunpack.c.l.b16 %v1169
        %v1530 = vunpack.c.l.b16 %v1170
        %v1531 = vunpack.c.l.b16 %v1171
        %v1532 = vunpack.c.l.b16 %v1172
        %v1533 = vunpack.c.l.b16 %v1173
        %v1534 = vunpack.c.l.b16 %v1174
        %v1535 = vunpack.c.l.b16 %v1175
        %v1536 = vunpack.c.l.b16 %v1176
        %v1537 = vunpack.c.l.b16 %v1177
        %v1538 = vunpack.c.l.b16 %v1178
        %v1539 = vunpack.c.l.b16 %v1179
        %v1540 = vunpack.c.l.b16 %v1180
        %v1541 = vunpack.c.l.b16 %v1181
        %v1542 = vunpack.c.l.b16 %v1182
        %v1543 = vunpack.c.l.b16 %v1183
        %v1544 = vunpack.c.l.b16 %v1184
        %v1545 = vunpack.c.l.b16 %v1185
        %v1546 = vunpack.c.l.b16 %v1186
        %v1547 = vunpack.c.l.b16 %v1187
        %v1548 = vunpack.c.l.b16 %v1188
        %v1549 = vunpack.c.l.b16 %v1189
        %v1550 = vpack.c.b16 %v1407, %v1406
        %v1551 = vpack.c.b16 %v1409, %v1408
        %v1552 = vpack.c.b16 %v1411, %v1410
        %v1553 = vpack.c.b16 %v1413, %v1412
        %v1554 = vpack.c.b16 %v1415, %v1414
        %v1555 = vpack.c.b16 %v1417, %v1416
        %v1556 = vpack.c.b16 %v1419, %v1418
        %v1557 = vpack.c.b16 %v1421, %v1420
        %v1558 = vpack.c.b16 %v1423, %v1422
        %v1559 = vpack.c.b16 %v1425, %v1424
        %v1560 = vpack.c.b16 %v1427, %v1426
        %v1561 = vpack.c.b16 %v1429, %v1428
        %v1562 = vpack.c.b16 %v1431, %v1430
        %v1563 = vpack.c.b16 %v1433, %v1432
        %v1564 = vpack.c.b16 %v1435, %v1434
        %v1565 = vpack.c.b16 %v1437, %v1436
        %v1566 = vpack.c.b16 %v1439, %v1438
        %v1567 = vpack.c.b16 %v1441, %v1440
        %v1568 = vpack.c.b16 %v1443, %v1442
        %v1569 = vpack.c.b16 %v1445, %v1444
        %v1570 = vpack.c.b16 %v1447, %v1446
        %v1571 = vpack.c.b16 %v1449, %v1448
        %v1572 = vpack.c.b16 %v1451, %v1450
        %v1573 = vpack.c.b16 %v1453, %v1452
        %v1574 = vpack.c.b16 %v1455, %v1454
        %v1575 = vpack.c.b16 %v1457, %v1456
        %v1576 = vpack.c.b16 %v1459, %v1458
        %v1577 = vpack.c.b16 %v1461, %v1460
        %v1578 = vpack.c.b16 %v1463, %v1462
        %v1579 = vpack.c.b16 %v1465, %v1464
        %v1580 = vpack.c.b16 %v1467, %v1466
        %v1581 = vpack.c.b16 %v1469, %v1468
        %v1582 = vpack.c.b16 %v1471, %v1470
        %v1583 = vpack.c.b16 %v1473, %v1472
        %v1584 = vpack.c.b16 %v1475, %v1474
        %v1585 = vpack.c.b16 %v1477, %v1476
        %v1586 = vpack.c.b16 %v1479, %v1478
        %v1587 = vpack.c.b16 %v1481, %v1480
        %v1588 = vpack.c.b16 %v1483, %v1482
        %v1589 = vpack.c.b16 %v1485, %v1484
        %v1590 = vpack.c.b16 %v1487, %v1486
        %v1591 = vpack.c.b16 %v1489, %v1488
        %v1592 = vpack.c.b16 %v1491, %v1490
        %v1593 = vpack.c.b16 %v1493, %v1492
        %v1594 = vpack.c.b16 %v1495, %v1494
        %v1595 = vpack.c.b16 %v1497, %v1496
        %v1596 = vpack.c.b16 %v1499, %v1498
        %v1597 = vpack.c.b16 %v1501, %v1500
        %v1598 = vpack.c.b16 %v1503, %v1502
        %v1599 = vpack.c.b16 %v1505, %v1504
        %v1600 = vpack.c.b16 %v1507, %v1506
        %v1601 = vpack.c.b16 %v1509, %v1508
        %v1602 = vpack.c.b16 %v1511, %v1510
        %v1603 = vpack.c.b16 %v1513, %v1512
        %v1604 = vpack.c.b16 %v1515, %v1514
        %v1605 = vpack.c.b16 %v1517, %v1516
        %v1606 = vpack.c.b16 %v1519, %v1518
        %v1607 = vpack.c.b16 %v1521, %v1520
        %v1608 = vpack.c.b16 %v1523, %v1522
        %v1609 = vpack.c.b16 %v1525, %v1524
        %v1610 = vpack.c.b16 %v1527, %v1526
        %v1611 = vpack.c.b16 %v1529, %v1528
        %v1612 = vpack.c.b16 %v1531, %v1530
        %v1613 = vpack.c.b16 %v1533, %v1532
        %v1614 = vpack.c.b16 %v1535, %v1534
        %v1615 = vpack.c.b16 %v1537, %v1536
        %v1616 = vpack.c.b16 %v1539, %v1538
        %v1617 = vpack.c.b16 %v1541, %v1540
        %v1618 = vpack.c.b16 %v1543, %v1542
        %v1619 = vpack.c.b16 %v1545, %v1544
        %v1620 = vpack.c.b16 %v1547, %v1546
        %v1621 = vpack.c.b16 %v1549, %v1548
        %1694 = vmatprep.subr.bf16.mxu0 0
        %1695 = vmatpush1.bf16.msra.mxu0 %v1550
        %1696 = vmatprep.subr.bf16.mxu0 0
        %1697 = vmatpush1.bf16.msra.mxu0 %v1551
        %1698 = vmatprep.subr.bf16.mxu0 0
        %1699 = vmatpush1.bf16.msra.mxu0 %v1552
        %1700 = vmatprep.subr.bf16.mxu0 0
        %1701 = vmatpush1.bf16.msra.mxu0 %v1553
        %1702 = vmatprep.subr.bf16.mxu0 0
        %1703 = vmatpush1.bf16.msra.mxu0 %v1554
        %1704 = vmatprep.subr.bf16.mxu0 0
        %1705 = vmatpush1.bf16.msra.mxu0 %v1555
        %1706 = vmatprep.subr.bf16.mxu0 0
        %1707 = vmatpush1.bf16.msra.mxu0 %v1556
        %1708 = vmatprep.subr.bf16.mxu0 0
        %1709 = vmatpush1.bf16.msra.mxu0 %v1557
        %1710 = vmatprep.subr.bf16.mxu0 0
        %1711 = vmatpush1.bf16.msra.mxu0 %v1558
        %1712 = vmatprep.subr.bf16.mxu0 0
        %1713 = vmatpush1.bf16.msra.mxu0 %v1559
        %1714 = vmatprep.subr.bf16.mxu0 0
        %1715 = vmatpush1.bf16.msra.mxu0 %v1560
        %1716 = vmatprep.subr.bf16.mxu0 0
        %1717 = vmatpush1.bf16.msra.mxu0 %v1561
        %1718 = vmatprep.subr.bf16.mxu0 0
        %1719 = vmatpush1.bf16.msra.mxu0 %v1562
        %1720 = vmatprep.subr.bf16.mxu0 0
        %1721 = vmatpush1.bf16.msra.mxu0 %v1563
        %1722 = vmatprep.subr.bf16.mxu0 0
        %1723 = vmatpush1.bf16.msra.mxu0 %v1564
        %1724 = vmatprep.subr.bf16.mxu0 0
        %1725 = vmatpush1.bf16.msra.mxu0 %v1565
        %1726 = vmatprep.mubr.bf16.mxu0 %v1203
        %1727 = vmatmul.mubr.bf16.gmra.mrb[0].mxu0 %v1196
        %v1728 = vpop.f32.mrb[0].mxu0
        %v1729 = vadd.f32 0.0, %v1728
        %v1730 = vpop.f32.mrb[0].mxu0
        %v1731 = vpop.f32.mrb[0].mxu0
        %v1732 = vpop.f32.mrb[0].mxu0
        %1733 = vdwg.mxu0
        %1734 = vmatprep.subr.bf16.mxu0 0
        %1735 = vmatpush1.bf16.msra.mxu0 %v1566
        %1736 = vmatprep.subr.bf16.mxu0 0
        %1737 = vmatpush1.bf16.msra.mxu0 %v1567
        %1738 = vmatprep.subr.bf16.mxu0 0
        %1739 = vmatpush1.bf16.msra.mxu0 %v1568
        %1740 = vmatprep.subr.bf16.mxu0 0
        %1741 = vmatpush1.bf16.msra.mxu0 %v1569
        %1742 = vmatprep.subr.bf16.mxu0 0
        %1743 = vmatpush1.bf16.msra.mxu0 %v1570
        %1744 = vmatprep.subr.bf16.mxu0 0
        %1745 = vmatpush1.bf16.msra.mxu0 %v1571
        %1746 = vmatprep.subr.bf16.mxu0 0
        %1747 = vmatpush1.bf16.msra.mxu0 %v1572
        %1748 = vmatprep.subr.bf16.mxu0 0
        %1749 = vmatpush1.bf16.msra.mxu0 %v1573
        %1750 = vmatprep.subr.bf16.mxu0 0
        %1751 = vmatpush1.bf16.msra.mxu0 %v1574
        %1752 = vmatprep.subr.bf16.mxu0 0
        %1753 = vmatpush1.bf16.msra.mxu0 %v1575
        %1754 = vmatprep.subr.bf16.mxu0 0
        %1755 = vmatpush1.bf16.msra.mxu0 %v1576
        %1756 = vmatprep.subr.bf16.mxu0 0
        %1757 = vmatpush1.bf16.msra.mxu0 %v1577
        %1758 = vmatprep.subr.bf16.mxu0 0
        %1759 = vmatpush1.bf16.msra.mxu0 %v1578
        %1760 = vmatprep.subr.bf16.mxu0 0
        %1761 = vmatpush1.bf16.msra.mxu0 %v1579
        %1762 = vmatprep.subr.bf16.mxu0 0
        %1763 = vmatpush1.bf16.msra.mxu0 %v1580
        %1764 = vmatprep.subr.bf16.mxu0 0
        %1765 = vmatpush1.bf16.msra.mxu0 %v1581
        %1766 = vmatprep.mubr.bf16.mxu0 %v1217
        %1767 = vmatmul.mubr.bf16.gmra.mrb[0].mxu0 %v1210
        %v1768 = vpop.f32.mrb[0].mxu0
        %v1769 = vadd.f32 %v1729, %v1768
        %v1770 = vpop.f32.mrb[0].mxu0
        %v1771 = vpop.f32.mrb[0].mxu0
        %v1772 = vpop.f32.mrb[0].mxu0
        %1773 = vdwg.mxu0
        %1774 = vmatprep.subr.bf16.mxu0 0
        %1775 = vmatpush1.bf16.msra.mxu0 %v1582
        %1776 = vmatprep.subr.bf16.mxu0 0
        %1777 = vmatpush1.bf16.msra.mxu0 %v1583
        %1778 = vmatprep.subr.bf16.mxu0 0
        %1779 = vmatpush1.bf16.msra.mxu0 %v1584
        %1780 = vmatprep.subr.bf16.mxu0 0
        %1781 = vmatpush1.bf16.msra.mxu0 %v1585
        %1782 = vmatprep.subr.bf16.mxu0 0
        %1783 = vmatpush1.bf16.msra.mxu0 %v1586
        %1784 = vmatprep.subr.bf16.mxu0 0
        %1785 = vmatpush1.bf16.msra.mxu0 %v1587
        %1786 = vmatprep.subr.bf16.mxu0 0
        %1787 = vmatpush1.bf16.msra.mxu0 %v1588
        %1788 = vmatprep.subr.bf16.mxu0 0
        %1789 = vmatpush1.bf16.msra.mxu0 %v1589
        %1790 = vmatprep.subr.bf16.mxu0 0
        %1791 = vmatpush1.bf16.msra.mxu0 %v1590
        %1792 = vmatprep.subr.bf16.mxu0 0
        %1793 = vmatpush1.bf16.msra.mxu0 %v1591
        %1794 = vmatprep.subr.bf16.mxu0 0
        %1795 = vmatpush1.bf16.msra.mxu0 %v1592
        %1796 = vmatprep.subr.bf16.mxu0 0
        %1797 = vmatpush1.bf16.msra.mxu0 %v1593
        %1798 = vmatprep.subr.bf16.mxu0 0
        %1799 = vmatpush1.bf16.msra.mxu0 %v1594
        %1800 = vmatprep.subr.bf16.mxu0 0
        %1801 = vmatpush1.bf16.msra.mxu0 %v1595
        %1802 = vmatprep.subr.bf16.mxu0 0
        %1803 = vmatpush1.bf16.msra.mxu0 %v1596
        %1804 = vmatprep.subr.bf16.mxu0 0
        %1805 = vmatpush1.bf16.msra.mxu0 %v1597
        %1806 = vmatprep.mubr.bf16.mxu0 %v1231
        %1807 = vmatmul.mubr.bf16.gmra.mrb[0].mxu0 %v1224
        %v1808 = vpop.f32.mrb[0].mxu0
        %v1809 = vadd.f32 %v1769, %v1808
        %v1810 = vpop.f32.mrb[0].mxu0
        %v1811 = vpop.f32.mrb[0].mxu0
        %v1812 = vpop.f32.mrb[0].mxu0
        %1813 = vdwg.mxu0
        %1814 = vmatprep.subr.bf16.mxu0 0
        %1815 = vmatpush1.bf16.msra.mxu0 %v1598
        %1816 = vmatprep.subr.bf16.mxu0 0
        %1817 = vmatpush1.bf16.msra.mxu0 %v1599
        %1818 = vmatprep.subr.bf16.mxu0 0
        %1819 = vmatpush1.bf16.msra.mxu0 %v1600
        %1820 = vmatprep.subr.bf16.mxu0 0
        %1821 = vmatpush1.bf16.msra.mxu0 %v1601
        %1822 = vmatprep.subr.bf16.mxu0 0
        %1823 = vmatpush1.bf16.msra.mxu0 %v1602
        %1824 = vmatprep.subr.bf16.mxu0 0
        %1825 = vmatpush1.bf16.msra.mxu0 %v1603
        %1826 = vmatprep.subr.bf16.mxu0 0
        %1827 = vmatpush1.bf16.msra.mxu0 %v1604
        %1828 = vmatprep.subr.bf16.mxu0 0
        %1829 = vmatpush1.bf16.msra.mxu0 %v1605
        %1830 = vmatprep.subr.bf16.mxu0 0
        %1831 = vmatpush1.bf16.msra.mxu0 %v1606
        %1832 = vmatprep.subr.bf16.mxu0 0
        %1833 = vmatpush1.bf16.msra.mxu0 %v1607
        %1834 = vmatprep.subr.bf16.mxu0 0
        %1835 = vmatpush1.bf16.msra.mxu0 %v1608
        %1836 = vmatprep.subr.bf16.mxu0 0
        %1837 = vmatpush1.bf16.msra.mxu0 %v1609
        %1838 = vmatprep.subr.bf16.mxu0 0
        %1839 = vmatpush1.bf16.msra.mxu0 %v1610
        %1840 = vmatprep.subr.bf16.mxu0 0
        %1841 = vmatpush1.bf16.msra.mxu0 %v1611
        %1842 = vmatprep.subr.bf16.mxu0 0
        %1843 = vmatpush1.bf16.msra.mxu0 %v1612
        %1844 = vmatprep.subr.bf16.mxu0 0
        %1845 = vmatpush1.bf16.msra.mxu0 %v1613
        %1846 = vmatprep.mubr.bf16.mxu0 %v1245
        %1847 = vmatmul.mubr.bf16.gmra.mrb[0].mxu0 %v1238
        %v1848 = vpop.f32.mrb[0].mxu0
        %v1849 = vadd.f32 %v1809, %v1848
        %v1850 = vpop.f32.mrb[0].mxu0
        %v1851 = vpop.f32.mrb[0].mxu0
        %v1852 = vpop.f32.mrb[0].mxu0
        %1853 = vdwg.mxu0
        %1854 = vmatprep.subr.bf16.mxu0 0
        %1855 = vmatpush1.bf16.msra.mxu0 %v1614
        %1856 = vmatprep.subr.bf16.mxu0 0
        %1857 = vmatpush1.bf16.msra.mxu0 %v1615
        %1858 = vmatprep.subr.bf16.mxu0 0
        %1859 = vmatpush1.bf16.msra.mxu0 %v1616
        %1860 = vmatprep.subr.bf16.mxu0 0
        %1861 = vmatpush1.bf16.msra.mxu0 %v1617
        %1862 = vmatprep.subr.bf16.mxu0 0
        %1863 = vmatpush1.bf16.msra.mxu0 %v1618
        %1864 = vmatprep.subr.bf16.mxu0 0
        %1865 = vmatpush1.bf16.msra.mxu0 %v1619
        %1866 = vmatprep.subr.bf16.mxu0 0
        %1867 = vmatpush1.bf16.msra.mxu0 %v1620
        %1868 = vmatprep.subr.bf16.mxu0 0
        %1869 = vmatpush1.bf16.msra.mxu0 %v1621
        %1870 = vmatprep.subr.bf16.mxu0 0
        %1871 = vmatpush1.bf16.msra.mxu0 0
        %1872 = vmatprep.subr.bf16.mxu0 0
        %1873 = vmatpush1.bf16.msra.mxu0 0
        %1874 = vmatprep.subr.bf16.mxu0 0
        %1875 = vmatpush1.bf16.msra.mxu0 0
        %1876 = vmatprep.subr.bf16.mxu0 0
        %1877 = vmatpush1.bf16.msra.mxu0 0
        %1878 = vmatprep.subr.bf16.mxu0 0
        %1879 = vmatpush1.bf16.msra.mxu0 0
        %1880 = vmatprep.subr.bf16.mxu0 0
        %1881 = vmatpush1.bf16.msra.mxu0 0
        %1882 = vmatprep.subr.bf16.mxu0 0
        %1883 = vmatpush1.bf16.msra.mxu0 0
        %1884 = vmatprep.subr.bf16.mxu0 0
        %1885 = vmatpush1.bf16.msra.mxu0 0
        %1886 = vmatprep.mubr.bf16.mxu0 0
        %1887 = vmatmul.mubr.bf16.gmra.mrb[0].mxu0 %v1252
        %v1888 = vpop.f32.mrb[0].mxu0
        %v1889 = vadd.f32 %v1849, %v1888
        %v1890 = vpop.f32.mrb[0].mxu0
        %v1891 = vpop.f32.mrb[0].mxu0
        %v1892 = vpop.f32.mrb[0].mxu0
        %1893 = vdwg.mxu0
        %v1894 = vadd.f32 %v875, %v1889
        %v1895 = vld [vmem:[%s4] sm:$0x1]
        %v1896 = vlaneseq
        %v1897 = vshrl.u32 %v1896, 7
        %v1898 = vsub.s32 0, %v1897
        %v1899 = vrot.slane %v1895, %v1898
        %v1900 = vadd.f32 %v1894, %v1899
        %v1901 = vxor.u32 %v1900, 2147483648
        %v1902 = vmul.f32 %v1901, 1.442695
        %v1903 = vpow.pop %v1902
        %v1904 = vadd.f32 %v1903, 1.0
        %v1905 = vrcp.pop %v1904
        %v1906 = vmul.f32 1.0, %v1905
        %v1907 = vmul.f32 %v1900, %v1906
        %v1909 = vrot.slane %v1907, 6
        %1910 = vrot.lane.b32.xlu0 %v1909, 32
        %v1911 = vpop.permute.xlu0 %1910
        %1913 = vst.msk [vmem:[#allocation2] sm:$0xfc] %vm885, %v1911
        %1914 = vst.msk [vmem:[#allocation2 + $0x8] sm:$0xfc] %vm887, %v1911
        %1915 = vst.msk [vmem:[#allocation2 + $0x10] sm:$0x3] %vm889, %v1911
        %1916 = vst.msk [vmem:[#allocation2 + $0x18] sm:$0x3] %vm891, %v1911
        %v1917 = vld [vmem:[#allocation2] sm:$0xfe]
        %v1918 = vld [vmem:[#allocation2 + $0x8] sm:$0xfe]
        %v1919 = vld [vmem:[#allocation2 + $0x10] sm:$0x1]
        %v1920 = vld [vmem:[#allocation2 + $0x18] sm:$0x1]
        %v1921 = vld [vmem:[#allocation2] sm:$0xfc]
        %v1922 = vld [vmem:[#allocation2 + $0x8] sm:$0xfc]
        %v1923 = vld [vmem:[#allocation2 + $0x10] sm:$0x3]
        %v1924 = vld [vmem:[#allocation2 + $0x18] sm:$0x3]
        %v1925 = vld [vmem:[#allocation2] sm:$0xf8]
        %v1926 = vld [vmem:[#allocation2 + $0x8] sm:$0xf8]
        %v1927 = vld [vmem:[#allocation2 + $0x10] sm:$0x7]
        %v1928 = vld [vmem:[#allocation2 + $0x18] sm:$0x7]
        %1933 = vrot.lane.b32.xlu0 %v1917, 112
        %v1934 = vpop.permute.xlu0 %1933
        %1935 = vrot.lane.b32.xlu0 %v1918, 112
        %v1936 = vpop.permute.xlu0 %1935
        %1937 = vrot.lane.b32.xlu0 %v1919, 112
        %v1938 = vpop.permute.xlu0 %1937
        %1939 = vrot.lane.b32.xlu0 %v1920, 112
        %v1940 = vpop.permute.xlu0 %1939
        %v1941 = vsel %vm501, %v1934, %v1936
        %v1942 = vsel %vm501, %v1938, %v1940
        %1945 = vrot.lane.b32.xlu0 %v1917, 96
        %v1946 = vpop.permute.xlu0 %1945
        %1947 = vrot.lane.b32.xlu0 %v1918, 96
        %v1948 = vpop.permute.xlu0 %1947
        %1949 = vrot.lane.b32.xlu0 %v1919, 96
        %v1950 = vpop.permute.xlu0 %1949
        %1951 = vrot.lane.b32.xlu0 %v1920, 96
        %v1952 = vpop.permute.xlu0 %1951
        %v1953 = vsel %vm499, %v1946, %v1948
        %v1954 = vsel %vm499, %v1950, %v1952
        %1957 = vrot.lane.b32.xlu0 %v1917, 80
        %v1958 = vpop.permute.xlu0 %1957
        %1959 = vrot.lane.b32.xlu0 %v1918, 80
        %v1960 = vpop.permute.xlu0 %1959
        %1961 = vrot.lane.b32.xlu0 %v1919, 80
        %v1962 = vpop.permute.xlu0 %1961
        %1963 = vrot.lane.b32.xlu0 %v1920, 80
        %v1964 = vpop.permute.xlu0 %1963
        %v1965 = vsel %vm497, %v1958, %v1960
        %v1966 = vsel %vm497, %v1962, %v1964
        %v1973 = vrot.slane %v1921, 1
        %v1974 = vrot.slane %v1923, 1
        %v1975 = vsel %vm449, %v1973, %v1974
        %v1976 = vrot.slane %v1922, 1
        %v1977 = vrot.slane %v1924, 1
        %v1978 = vsel %vm449, %v1976, %v1977
        %1979 = vrot.lane.b32.xlu0 %v1975, 112
        %v1980 = vpop.permute.xlu0 %1979
        %1981 = vrot.lane.b32.xlu0 %v1978, 112
        %v1982 = vpop.permute.xlu0 %1981
        %1983 = vrot.lane.b32.xlu0 %v1974, 112
        %v1984 = vpop.permute.xlu0 %1983
        %1985 = vrot.lane.b32.xlu0 %v1977, 112
        %v1986 = vpop.permute.xlu0 %1985
        %v1987 = vsel %vm501, %v1980, %v1982
        %v1988 = vsel %vm501, %v1984, %v1986
        %1991 = vrot.lane.b32.xlu0 %v1975, 96
        %v1992 = vpop.permute.xlu0 %1991
        %1993 = vrot.lane.b32.xlu0 %v1978, 96
        %v1994 = vpop.permute.xlu0 %1993
        %1995 = vrot.lane.b32.xlu0 %v1974, 96
        %v1996 = vpop.permute.xlu0 %1995
        %1997 = vrot.lane.b32.xlu0 %v1977, 96
        %v1998 = vpop.permute.xlu0 %1997
        %v1999 = vsel %vm499, %v1992, %v1994
        %v2000 = vsel %vm499, %v1996, %v1998
        %2003 = vrot.lane.b32.xlu0 %v1975, 80
        %v2004 = vpop.permute.xlu0 %2003
        %2005 = vrot.lane.b32.xlu0 %v1978, 80
        %v2006 = vpop.permute.xlu0 %2005
        %2007 = vrot.lane.b32.xlu0 %v1974, 80
        %v2008 = vpop.permute.xlu0 %2007
        %2009 = vrot.lane.b32.xlu0 %v1977, 80
        %v2010 = vpop.permute.xlu0 %2009
        %v2011 = vsel %vm497, %v2004, %v2006
        %v2012 = vsel %vm497, %v2008, %v2010
        %v2019 = vrot.slane %v1925, 2
        %v2020 = vrot.slane %v1927, 2
        %v2021 = vsel %vm360, %v2019, %v2020
        %v2022 = vrot.slane %v1926, 2
        %v2023 = vrot.slane %v1928, 2
        %v2024 = vsel %vm360, %v2022, %v2023
        %2025 = vrot.lane.b32.xlu0 %v2021, 112
        %v2026 = vpop.permute.xlu0 %2025
        %2027 = vrot.lane.b32.xlu0 %v2024, 112
        %v2028 = vpop.permute.xlu0 %2027
        %2029 = vrot.lane.b32.xlu0 %v2020, 112
        %v2030 = vpop.permute.xlu0 %2029
        %2031 = vrot.lane.b32.xlu0 %v2023, 112
        %v2032 = vpop.permute.xlu0 %2031
        %v2033 = vsel %vm501, %v2026, %v2028
        %v2034 = vsel %vm501, %v2030, %v2032
        %2037 = vrot.lane.b32.xlu0 %v2021, 96
        %v2038 = vpop.permute.xlu0 %2037
        %2039 = vrot.lane.b32.xlu0 %v2024, 96
        %v2040 = vpop.permute.xlu0 %2039
        %2041 = vrot.lane.b32.xlu0 %v2020, 96
        %v2042 = vpop.permute.xlu0 %2041
        %2043 = vrot.lane.b32.xlu0 %v2023, 96
        %v2044 = vpop.permute.xlu0 %2043
        %v2045 = vsel %vm499, %v2038, %v2040
        %v2046 = vsel %vm499, %v2042, %v2044
        %2049 = vrot.lane.b32.xlu0 %v2021, 80
        %v2050 = vpop.permute.xlu0 %2049
        %2051 = vrot.lane.b32.xlu0 %v2024, 80
        %v2052 = vpop.permute.xlu0 %2051
        %2053 = vrot.lane.b32.xlu0 %v2020, 80
        %v2054 = vpop.permute.xlu0 %2053
        %2055 = vrot.lane.b32.xlu0 %v2023, 80
        %v2056 = vpop.permute.xlu0 %2055
        %v2057 = vsel %vm497, %v2050, %v2052
        %v2058 = vsel %vm497, %v2054, %v2056
        %v2061 = vpack.c.bf16 %v1942, %v1941
        %v2062 = vpack.c.bf16 %v1954, %v1953
        %v2063 = vpack.c.bf16 %v1966, %v1965
        %v2064 = vpack.c.bf16 %v1988, %v1987
        %v2065 = vpack.c.bf16 %v2000, %v1999
        %v2066 = vpack.c.bf16 %v2012, %v2011
        %v2067 = vpack.c.bf16 %v2034, %v2033
        %v2068 = vpack.c.bf16 %v2046, %v2045
        %v2069 = vpack.c.bf16 %v2058, %v2057
        %s2070 = scalar_lea.vmem [#allocation3], 576
        %v2071 = vld [vmem:[%s2070] sm:$0xf]
        %v2072 = vld [vmem:[%s2070 + $0x4] sm:$0xf]
        %v2073 = vld [vmem:[%s2070 + $0x8] sm:$0xf]
        %v2074 = vld [vmem:[%s2070 + $0xc] sm:$0xf]
        %v2075 = vld [vmem:[%s2070 + $0x10] sm:$0xf]
        %v2076 = vld [vmem:[%s2070 + $0x14] sm:$0xf]
        %v2077 = vld [vmem:[%s2070 + $0x18] sm:$0xf]
        %v2078 = vld [vmem:[%s2070 + $0x1c] sm:$0xf]
        %v2079 = vld [vmem:[%s2070 + $0x20] sm:$0xf]
        %v2080 = vld [vmem:[%s2070 + $0x24] sm:$0xf]
        %v2081 = vld [vmem:[%s2070 + $0x28] sm:$0xf]
        %v2082 = vld [vmem:[%s2070 + $0x2c] sm:$0xf]
        %v2083 = vld [vmem:[%s2070 + $0x30] sm:$0xf]
        %v2084 = vld [vmem:[%s2070 + $0x34] sm:$0xf]
        %v2085 = vld [vmem:[%s2070 + $0x38] sm:$0xf]
        %v2086 = vld [vmem:[%s2070 + $0x3c] sm:$0xf]
        %v2087 = vld [vmem:[%s2070 + $0x40] sm:$0xf]
        %v2088 = vld [vmem:[%s2070 + $0x44] sm:$0xf]
        %v2089 = vld [vmem:[%s2070 + $0x48] sm:$0xf]
        %v2090 = vld [vmem:[%s2070 + $0x4c] sm:$0xf]
        %v2091 = vld [vmem:[%s2070 + $0x50] sm:$0xf]
        %v2092 = vld [vmem:[%s2070 + $0x54] sm:$0xf]
        %v2093 = vld [vmem:[%s2070 + $0x58] sm:$0xf]
        %v2094 = vld [vmem:[%s2070 + $0x5c] sm:$0xf]
        %v2095 = vld [vmem:[%s2070 + $0x60] sm:$0xf]
        %v2096 = vld [vmem:[%s2070 + $0x64] sm:$0xf]
        %v2097 = vld [vmem:[%s2070 + $0x68] sm:$0xf]
        %v2098 = vld [vmem:[%s2070 + $0x6c] sm:$0xf]
        %v2099 = vld [vmem:[%s2070 + $0x70] sm:$0xf]
        %v2100 = vld [vmem:[%s2070 + $0x74] sm:$0xf]
        %v2101 = vld [vmem:[%s2070 + $0x78] sm:$0xf]
        %v2102 = vld [vmem:[%s2070 + $0x7c] sm:$0xf]
        %v2103 = vld [vmem:[%s2070 + $0x80] sm:$0xf]
        %v2104 = vld [vmem:[%s2070 + $0x84] sm:$0xf]
        %v2105 = vld [vmem:[%s2070 + $0x88] sm:$0xf]
        %v2106 = vld [vmem:[%s2070 + $0x8c] sm:$0xf]
        %v2107 = vld [vmem:[%s2070 + $0x90] sm:$0xf]
        %v2108 = vld [vmem:[%s2070 + $0x94] sm:$0xf]
        %v2109 = vld [vmem:[%s2070 + $0x98] sm:$0xf]
        %v2110 = vld [vmem:[%s2070 + $0x9c] sm:$0xf]
        %v2111 = vld [vmem:[%s2070 + $0xa0] sm:$0xf]
        %v2112 = vld [vmem:[%s2070 + $0xa4] sm:$0xf]
        %v2113 = vld [vmem:[%s2070 + $0xa8] sm:$0xf]
        %v2114 = vld [vmem:[%s2070 + $0xac] sm:$0xf]
        %v2115 = vld [vmem:[%s2070 + $0xb0] sm:$0xf]
        %v2116 = vld [vmem:[%s2070 + $0xb4] sm:$0xf]
        %v2117 = vld [vmem:[%s2070 + $0xb8] sm:$0xf]
        %v2118 = vld [vmem:[%s2070 + $0xbc] sm:$0xf]
        %v2119 = vld [vmem:[%s2070 + $0xc0] sm:$0xf]
        %v2120 = vld [vmem:[%s2070 + $0xc4] sm:$0xf]
        %v2121 = vld [vmem:[%s2070 + $0xc8] sm:$0xf]
        %v2122 = vld [vmem:[%s2070 + $0xcc] sm:$0xf]
        %v2123 = vld [vmem:[%s2070 + $0xd0] sm:$0xf]
        %v2124 = vld [vmem:[%s2070 + $0xd4] sm:$0xf]
        %v2125 = vld [vmem:[%s2070 + $0xd8] sm:$0xf]
        %v2126 = vld [vmem:[%s2070 + $0xdc] sm:$0xf]
        %v2127 = vld [vmem:[%s2070 + $0xe0] sm:$0xf]
        %v2128 = vld [vmem:[%s2070 + $0xe4] sm:$0xf]
        %v2129 = vld [vmem:[%s2070 + $0xe8] sm:$0xf]
        %v2130 = vld [vmem:[%s2070 + $0xec] sm:$0xf]
        %v2131 = vld [vmem:[%s2070 + $0xf0] sm:$0xf]
        %v2132 = vld [vmem:[%s2070 + $0xf4] sm:$0xf]
        %v2133 = vld [vmem:[%s2070 + $0xf8] sm:$0xf]
        %v2134 = vld [vmem:[%s2070 + $0xfc] sm:$0xf]
        %v2135 = vld [vmem:[%s2070 + $0x100] sm:$0xf]
        %v2136 = vld [vmem:[%s2070 + $0x104] sm:$0xf]
        %v2137 = vld [vmem:[%s2070 + $0x108] sm:$0xf]
        %v2138 = vld [vmem:[%s2070 + $0x10c] sm:$0xf]
        %v2139 = vld [vmem:[%s2070 + $0x110] sm:$0xf]
        %v2140 = vld [vmem:[%s2070 + $0x114] sm:$0xf]
        %v2141 = vld [vmem:[%s2070 + $0x118] sm:$0xf]
        %v2142 = vld [vmem:[%s2070 + $0x11c] sm:$0xf]
        %v2143 = vld [vmem:[%s2070 + $0x120] sm:$0xf]
        %v2144 = vld [vmem:[%s2070 + $0x124] sm:$0xf]
        %v2145 = vld [vmem:[%s2070 + $0x128] sm:$0xf]
        %v2146 = vld [vmem:[%s2070 + $0x12c] sm:$0xf]
        %v2147 = vld [vmem:[%s2070 + $0x130] sm:$0xf]
        %v2148 = vld [vmem:[%s2070 + $0x134] sm:$0xf]
        %v2149 = vld [vmem:[%s2070 + $0x138] sm:$0xf]
        %v2150 = vld [vmem:[%s2070 + $0x13c] sm:$0xf]
        %v2151 = vld [vmem:[%s2070 + $0x140] sm:$0xf]
        %v2152 = vld [vmem:[%s2070 + $0x144] sm:$0xf]
        %v2153 = vld [vmem:[%s2070 + $0x148] sm:$0xf]
        %v2154 = vld [vmem:[%s2070 + $0x14c] sm:$0xf]
        %v2155 = vld [vmem:[%s2070 + $0x150] sm:$0xf]
        %v2156 = vld [vmem:[%s2070 + $0x154] sm:$0xf]
        %v2157 = vld [vmem:[%s2070 + $0x158] sm:$0xf]
        %v2158 = vld [vmem:[%s2070 + $0x15c] sm:$0xf]
        %v2159 = vld [vmem:[%s2070 + $0x160] sm:$0xf]
        %v2160 = vld [vmem:[%s2070 + $0x164] sm:$0xf]
        %v2161 = vld [vmem:[%s2070 + $0x168] sm:$0xf]
        %v2162 = vld [vmem:[%s2070 + $0x16c] sm:$0xf]
        %v2163 = vld [vmem:[%s2070 + $0x170] sm:$0xf]
        %v2164 = vld [vmem:[%s2070 + $0x174] sm:$0xf]
        %v2165 = vld [vmem:[%s2070 + $0x178] sm:$0xf]
        %v2166 = vld [vmem:[%s2070 + $0x17c] sm:$0xf]
        %v2167 = vld [vmem:[%s2070 + $0x180] sm:$0xf]
        %v2168 = vld [vmem:[%s2070 + $0x184] sm:$0xf]
        %v2169 = vld [vmem:[%s2070 + $0x188] sm:$0xf]
        %v2170 = vld [vmem:[%s2070 + $0x18c] sm:$0xf]
        %v2171 = vld [vmem:[%s2070 + $0x190] sm:$0xf]
        %v2172 = vld [vmem:[%s2070 + $0x194] sm:$0xf]
        %v2173 = vld [vmem:[%s2070 + $0x198] sm:$0xf]
        %v2174 = vld [vmem:[%s2070 + $0x19c] sm:$0xf]
        %v2175 = vld [vmem:[%s2070 + $0x1a0] sm:$0xf]
        %v2176 = vld [vmem:[%s2070 + $0x1a4] sm:$0xf]
        %v2177 = vld [vmem:[%s2070 + $0x1a8] sm:$0xf]
        %v2178 = vld [vmem:[%s2070 + $0x1ac] sm:$0xf]
        %v2179 = vld [vmem:[%s2070 + $0x1b0] sm:$0xf]
        %v2180 = vld [vmem:[%s2070 + $0x1b4] sm:$0xf]
        %v2181 = vld [vmem:[%s2070 + $0x1b8] sm:$0xf]
        %v2182 = vld [vmem:[%s2070 + $0x1bc] sm:$0xf]
        %v2183 = vld [vmem:[%s2070 + $0x1c0] sm:$0xf]
        %v2184 = vld [vmem:[%s2070 + $0x1c4] sm:$0xf]
        %v2185 = vld [vmem:[%s2070 + $0x1c8] sm:$0xf]
        %v2186 = vld [vmem:[%s2070 + $0x1cc] sm:$0xf]
        %v2187 = vld [vmem:[%s2070 + $0x1d0] sm:$0xf]
        %v2188 = vld [vmem:[%s2070 + $0x1d4] sm:$0xf]
        %v2189 = vld [vmem:[%s2070 + $0x1d8] sm:$0xf]
        %v2190 = vld [vmem:[%s2070 + $0x1dc] sm:$0xf]
        %v2191 = vld [vmem:[%s2070 + $0x1e0] sm:$0xf]
        %v2192 = vld [vmem:[%s2070 + $0x1e4] sm:$0xf]
        %v2193 = vld [vmem:[%s2070 + $0x1e8] sm:$0xf]
        %v2194 = vld [vmem:[%s2070 + $0x1ec] sm:$0xf]
        %v2195 = vld [vmem:[%s2070 + $0x1f0] sm:$0xf]
        %v2196 = vld [vmem:[%s2070 + $0x1f4] sm:$0xf]
        %v2197 = vld [vmem:[%s2070 + $0x1f8] sm:$0xf]
        %v2198 = vld [vmem:[%s2070 + $0x1fc] sm:$0xf]
        %v2199 = vld [vmem:[%s2070 + $0x200] sm:$0xf]
        %v2200 = vld [vmem:[%s2070 + $0x204] sm:$0xf]
        %v2201 = vld [vmem:[%s2070 + $0x208] sm:$0xf]
        %v2202 = vld [vmem:[%s2070 + $0x20c] sm:$0xf]
        %v2203 = vld [vmem:[%s2070 + $0x210] sm:$0xf]
        %v2204 = vld [vmem:[%s2070 + $0x214] sm:$0xf]
        %v2205 = vld [vmem:[%s2070 + $0x218] sm:$0xf]
        %v2206 = vld [vmem:[%s2070 + $0x21c] sm:$0xf]
        %v2207 = vld [vmem:[%s2070 + $0x220] sm:$0xf]
        %v2208 = vld [vmem:[%s2070 + $0x224] sm:$0xf]
        %v2209 = vld [vmem:[%s2070 + $0x228] sm:$0xf]
        %v2210 = vld [vmem:[%s2070 + $0x22c] sm:$0xf]
        %v2211 = vld [vmem:[%s2070 + $0x230] sm:$0xf]
        %v2212 = vld [vmem:[%s2070 + $0x234] sm:$0xf]
        %v2213 = vld [vmem:[%s2070 + $0x238] sm:$0xf]
        %v2214 = vld [vmem:[%s2070 + $0x23c] sm:$0xf]
        %v2216 = vshrl.u32 %v2061, 16
        %v2218 = vshll.u32 %v2061, 16
        %v2220 = vrot.slane %v2218, 1
        %v2221 = vor.u32 %v2216, %v2220
        %v2223 = vshrl.u32 %v2062, 16
        %v2225 = vshll.u32 %v2062, 16
        %v2227 = vrot.slane %v2225, 1
        %v2228 = vor.u32 %v2223, %v2227
        %v2230 = vshrl.u32 %v2063, 16
        %v2232 = vshll.u32 %v2063, 16
        %v2234 = vrot.slane %v2232, 1
        %v2235 = vor.u32 %v2230, %v2234
        %v2237 = vshrl.u32 %v2064, 16
        %v2239 = vshll.u32 %v2064, 16
        %v2241 = vrot.slane %v2239, 1
        %v2242 = vor.u32 %v2237, %v2241
        %v2244 = vshrl.u32 %v2065, 16
        %v2246 = vshll.u32 %v2065, 16
        %v2248 = vrot.slane %v2246, 1
        %v2249 = vor.u32 %v2244, %v2248
        %v2251 = vshrl.u32 %v2066, 16
        %v2253 = vshll.u32 %v2066, 16
        %v2255 = vrot.slane %v2253, 1
        %v2256 = vor.u32 %v2251, %v2255
        %v2258 = vshrl.u32 %v2067, 16
        %v2260 = vshll.u32 %v2067, 16
        %v2262 = vrot.slane %v2260, 1
        %v2263 = vor.u32 %v2258, %v2262
        %v2265 = vshrl.u32 %v2068, 16
        %v2267 = vshll.u32 %v2068, 16
        %v2269 = vrot.slane %v2267, 1
        %v2270 = vor.u32 %v2265, %v2269
        %v2272 = vshrl.u32 %v2069, 16
        %v2274 = vshll.u32 %v2069, 16
        %v2276 = vrot.slane %v2274, 1
        %v2277 = vor.u32 %v2272, %v2276
        %v2431 = vunpack.c.l.b16 %v2071
        %v2432 = vunpack.c.l.b16 %v2072
        %v2433 = vunpack.c.l.b16 %v2073
        %v2434 = vunpack.c.l.b16 %v2074
        %v2435 = vunpack.c.l.b16 %v2075
        %v2436 = vunpack.c.l.b16 %v2076
        %v2437 = vunpack.c.l.b16 %v2077
        %v2438 = vunpack.c.l.b16 %v2078
        %v2439 = vunpack.c.l.b16 %v2079
        %v2440 = vunpack.c.l.b16 %v2080
        %v2441 = vunpack.c.l.b16 %v2081
        %v2442 = vunpack.c.l.b16 %v2082
        %v2443 = vunpack.c.l.b16 %v2083
        %v2444 = vunpack.c.l.b16 %v2084
        %v2445 = vunpack.c.l.b16 %v2085
        %v2446 = vunpack.c.l.b16 %v2086
        %v2447 = vunpack.c.l.b16 %v2087
        %v2448 = vunpack.c.l.b16 %v2088
        %v2449 = vunpack.c.l.b16 %v2089
        %v2450 = vunpack.c.l.b16 %v2090
        %v2451 = vunpack.c.l.b16 %v2091
        %v2452 = vunpack.c.l.b16 %v2092
        %v2453 = vunpack.c.l.b16 %v2093
        %v2454 = vunpack.c.l.b16 %v2094
        %v2455 = vunpack.c.l.b16 %v2095
        %v2456 = vunpack.c.l.b16 %v2096
        %v2457 = vunpack.c.l.b16 %v2097
        %v2458 = vunpack.c.l.b16 %v2098
        %v2459 = vunpack.c.l.b16 %v2099
        %v2460 = vunpack.c.l.b16 %v2100
        %v2461 = vunpack.c.l.b16 %v2101
        %v2462 = vunpack.c.l.b16 %v2102
        %v2463 = vunpack.c.l.b16 %v2103
        %v2464 = vunpack.c.l.b16 %v2104
        %v2465 = vunpack.c.l.b16 %v2105
        %v2466 = vunpack.c.l.b16 %v2106
        %v2467 = vunpack.c.l.b16 %v2107
        %v2468 = vunpack.c.l.b16 %v2108
        %v2469 = vunpack.c.l.b16 %v2109
        %v2470 = vunpack.c.l.b16 %v2110
        %v2471 = vunpack.c.l.b16 %v2111
        %v2472 = vunpack.c.l.b16 %v2112
        %v2473 = vunpack.c.l.b16 %v2113
        %v2474 = vunpack.c.l.b16 %v2114
        %v2475 = vunpack.c.l.b16 %v2115
        %v2476 = vunpack.c.l.b16 %v2116
        %v2477 = vunpack.c.l.b16 %v2117
        %v2478 = vunpack.c.l.b16 %v2118
        %v2479 = vunpack.c.l.b16 %v2119
        %v2480 = vunpack.c.l.b16 %v2120
        %v2481 = vunpack.c.l.b16 %v2121
        %v2482 = vunpack.c.l.b16 %v2122
        %v2483 = vunpack.c.l.b16 %v2123
        %v2484 = vunpack.c.l.b16 %v2124
        %v2485 = vunpack.c.l.b16 %v2125
        %v2486 = vunpack.c.l.b16 %v2126
        %v2487 = vunpack.c.l.b16 %v2127
        %v2488 = vunpack.c.l.b16 %v2128
        %v2489 = vunpack.c.l.b16 %v2129
        %v2490 = vunpack.c.l.b16 %v2130
        %v2491 = vunpack.c.l.b16 %v2131
        %v2492 = vunpack.c.l.b16 %v2132
        %v2493 = vunpack.c.l.b16 %v2133
        %v2494 = vunpack.c.l.b16 %v2134
        %v2495 = vunpack.c.l.b16 %v2135
        %v2496 = vunpack.c.l.b16 %v2136
        %v2497 = vunpack.c.l.b16 %v2137
        %v2498 = vunpack.c.l.b16 %v2138
        %v2499 = vunpack.c.l.b16 %v2139
        %v2500 = vunpack.c.l.b16 %v2140
        %v2501 = vunpack.c.l.b16 %v2141
        %v2502 = vunpack.c.l.b16 %v2142
        %v2503 = vunpack.c.l.b16 %v2143
        %v2504 = vunpack.c.l.b16 %v2144
        %v2505 = vunpack.c.l.b16 %v2145
        %v2506 = vunpack.c.l.b16 %v2146
        %v2507 = vunpack.c.l.b16 %v2147
        %v2508 = vunpack.c.l.b16 %v2148
        %v2509 = vunpack.c.l.b16 %v2149
        %v2510 = vunpack.c.l.b16 %v2150
        %v2511 = vunpack.c.l.b16 %v2151
        %v2512 = vunpack.c.l.b16 %v2152
        %v2513 = vunpack.c.l.b16 %v2153
        %v2514 = vunpack.c.l.b16 %v2154
        %v2515 = vunpack.c.l.b16 %v2155
        %v2516 = vunpack.c.l.b16 %v2156
        %v2517 = vunpack.c.l.b16 %v2157
        %v2518 = vunpack.c.l.b16 %v2158
        %v2519 = vunpack.c.l.b16 %v2159
        %v2520 = vunpack.c.l.b16 %v2160
        %v2521 = vunpack.c.l.b16 %v2161
        %v2522 = vunpack.c.l.b16 %v2162
        %v2523 = vunpack.c.l.b16 %v2163
        %v2524 = vunpack.c.l.b16 %v2164
        %v2525 = vunpack.c.l.b16 %v2165
        %v2526 = vunpack.c.l.b16 %v2166
        %v2527 = vunpack.c.l.b16 %v2167
        %v2528 = vunpack.c.l.b16 %v2168
        %v2529 = vunpack.c.l.b16 %v2169
        %v2530 = vunpack.c.l.b16 %v2170
        %v2531 = vunpack.c.l.b16 %v2171
        %v2532 = vunpack.c.l.b16 %v2172
        %v2533 = vunpack.c.l.b16 %v2173
        %v2534 = vunpack.c.l.b16 %v2174
        %v2535 = vunpack.c.l.b16 %v2175
        %v2536 = vunpack.c.l.b16 %v2176
        %v2537 = vunpack.c.l.b16 %v2177
        %v2538 = vunpack.c.l.b16 %v2178
        %v2539 = vunpack.c.l.b16 %v2179
        %v2540 = vunpack.c.l.b16 %v2180
        %v2541 = vunpack.c.l.b16 %v2181
        %v2542 = vunpack.c.l.b16 %v2182
        %v2543 = vunpack.c.l.b16 %v2183
        %v2544 = vunpack.c.l.b16 %v2184
        %v2545 = vunpack.c.l.b16 %v2185
        %v2546 = vunpack.c.l.b16 %v2186
        %v2547 = vunpack.c.l.b16 %v2187
        %v2548 = vunpack.c.l.b16 %v2188
        %v2549 = vunpack.c.l.b16 %v2189
        %v2550 = vunpack.c.l.b16 %v2190
        %v2551 = vunpack.c.l.b16 %v2191
        %v2552 = vunpack.c.l.b16 %v2192
        %v2553 = vunpack.c.l.b16 %v2193
        %v2554 = vunpack.c.l.b16 %v2194
        %v2555 = vunpack.c.l.b16 %v2195
        %v2556 = vunpack.c.l.b16 %v2196
        %v2557 = vunpack.c.l.b16 %v2197
        %v2558 = vunpack.c.l.b16 %v2198
        %v2559 = vunpack.c.l.b16 %v2199
        %v2560 = vunpack.c.l.b16 %v2200
        %v2561 = vunpack.c.l.b16 %v2201
        %v2562 = vunpack.c.l.b16 %v2202
        %v2563 = vunpack.c.l.b16 %v2203
        %v2564 = vunpack.c.l.b16 %v2204
        %v2565 = vunpack.c.l.b16 %v2205
        %v2566 = vunpack.c.l.b16 %v2206
        %v2567 = vunpack.c.l.b16 %v2207
        %v2568 = vunpack.c.l.b16 %v2208
        %v2569 = vunpack.c.l.b16 %v2209
        %v2570 = vunpack.c.l.b16 %v2210
        %v2571 = vunpack.c.l.b16 %v2211
        %v2572 = vunpack.c.l.b16 %v2212
        %v2573 = vunpack.c.l.b16 %v2213
        %v2574 = vunpack.c.l.b16 %v2214
        %v2575 = vpack.c.b16 %v2432, %v2431
        %v2576 = vpack.c.b16 %v2434, %v2433
        %v2577 = vpack.c.b16 %v2436, %v2435
        %v2578 = vpack.c.b16 %v2438, %v2437
        %v2579 = vpack.c.b16 %v2440, %v2439
        %v2580 = vpack.c.b16 %v2442, %v2441
        %v2581 = vpack.c.b16 %v2444, %v2443
        %v2582 = vpack.c.b16 %v2446, %v2445
        %v2583 = vpack.c.b16 %v2448, %v2447
        %v2584 = vpack.c.b16 %v2450, %v2449
        %v2585 = vpack.c.b16 %v2452, %v2451
        %v2586 = vpack.c.b16 %v2454, %v2453
        %v2587 = vpack.c.b16 %v2456, %v2455
        %v2588 = vpack.c.b16 %v2458, %v2457
        %v2589 = vpack.c.b16 %v2460, %v2459
        %v2590 = vpack.c.b16 %v2462, %v2461
        %v2591 = vpack.c.b16 %v2464, %v2463
        %v2592 = vpack.c.b16 %v2466, %v2465
        %v2593 = vpack.c.b16 %v2468, %v2467
        %v2594 = vpack.c.b16 %v2470, %v2469
        %v2595 = vpack.c.b16 %v2472, %v2471
        %v2596 = vpack.c.b16 %v2474, %v2473
        %v2597 = vpack.c.b16 %v2476, %v2475
        %v2598 = vpack.c.b16 %v2478, %v2477
        %v2599 = vpack.c.b16 %v2480, %v2479
        %v2600 = vpack.c.b16 %v2482, %v2481
        %v2601 = vpack.c.b16 %v2484, %v2483
        %v2602 = vpack.c.b16 %v2486, %v2485
        %v2603 = vpack.c.b16 %v2488, %v2487
        %v2604 = vpack.c.b16 %v2490, %v2489
        %v2605 = vpack.c.b16 %v2492, %v2491
        %v2606 = vpack.c.b16 %v2494, %v2493
        %v2607 = vpack.c.b16 %v2496, %v2495
        %v2608 = vpack.c.b16 %v2498, %v2497
        %v2609 = vpack.c.b16 %v2500, %v2499
        %v2610 = vpack.c.b16 %v2502, %v2501
        %v2611 = vpack.c.b16 %v2504, %v2503
        %v2612 = vpack.c.b16 %v2506, %v2505
        %v2613 = vpack.c.b16 %v2508, %v2507
        %v2614 = vpack.c.b16 %v2510, %v2509
        %v2615 = vpack.c.b16 %v2512, %v2511
        %v2616 = vpack.c.b16 %v2514, %v2513
        %v2617 = vpack.c.b16 %v2516, %v2515
        %v2618 = vpack.c.b16 %v2518, %v2517
        %v2619 = vpack.c.b16 %v2520, %v2519
        %v2620 = vpack.c.b16 %v2522, %v2521
        %v2621 = vpack.c.b16 %v2524, %v2523
        %v2622 = vpack.c.b16 %v2526, %v2525
        %v2623 = vpack.c.b16 %v2528, %v2527
        %v2624 = vpack.c.b16 %v2530, %v2529
        %v2625 = vpack.c.b16 %v2532, %v2531
        %v2626 = vpack.c.b16 %v2534, %v2533
        %v2627 = vpack.c.b16 %v2536, %v2535
        %v2628 = vpack.c.b16 %v2538, %v2537
        %v2629 = vpack.c.b16 %v2540, %v2539
        %v2630 = vpack.c.b16 %v2542, %v2541
        %v2631 = vpack.c.b16 %v2544, %v2543
        %v2632 = vpack.c.b16 %v2546, %v2545
        %v2633 = vpack.c.b16 %v2548, %v2547
        %v2634 = vpack.c.b16 %v2550, %v2549
        %v2635 = vpack.c.b16 %v2552, %v2551
        %v2636 = vpack.c.b16 %v2554, %v2553
        %v2637 = vpack.c.b16 %v2556, %v2555
        %v2638 = vpack.c.b16 %v2558, %v2557
        %v2639 = vpack.c.b16 %v2560, %v2559
        %v2640 = vpack.c.b16 %v2562, %v2561
        %v2641 = vpack.c.b16 %v2564, %v2563
        %v2642 = vpack.c.b16 %v2566, %v2565
        %v2643 = vpack.c.b16 %v2568, %v2567
        %v2644 = vpack.c.b16 %v2570, %v2569
        %v2645 = vpack.c.b16 %v2572, %v2571
        %v2646 = vpack.c.b16 %v2574, %v2573
        %2719 = vmatprep.subr.bf16.mxu0 0
        %2720 = vmatpush1.bf16.msra.mxu0 %v2575
        %2721 = vmatprep.subr.bf16.mxu0 0
        %2722 = vmatpush1.bf16.msra.mxu0 %v2576
        %2723 = vmatprep.subr.bf16.mxu0 0
        %2724 = vmatpush1.bf16.msra.mxu0 %v2577
        %2725 = vmatprep.subr.bf16.mxu0 0
        %2726 = vmatpush1.bf16.msra.mxu0 %v2578
        %2727 = vmatprep.subr.bf16.mxu0 0
        %2728 = vmatpush1.bf16.msra.mxu0 %v2579
        %2729 = vmatprep.subr.bf16.mxu0 0
        %2730 = vmatpush1.bf16.msra.mxu0 %v2580
        %2731 = vmatprep.subr.bf16.mxu0 0
        %2732 = vmatpush1.bf16.msra.mxu0 %v2581
        %2733 = vmatprep.subr.bf16.mxu0 0
        %2734 = vmatpush1.bf16.msra.mxu0 %v2582
        %2735 = vmatprep.subr.bf16.mxu0 0
        %2736 = vmatpush1.bf16.msra.mxu0 %v2583
        %2737 = vmatprep.subr.bf16.mxu0 0
        %2738 = vmatpush1.bf16.msra.mxu0 %v2584
        %2739 = vmatprep.subr.bf16.mxu0 0
        %2740 = vmatpush1.bf16.msra.mxu0 %v2585
        %2741 = vmatprep.subr.bf16.mxu0 0
        %2742 = vmatpush1.bf16.msra.mxu0 %v2586
        %2743 = vmatprep.subr.bf16.mxu0 0
        %2744 = vmatpush1.bf16.msra.mxu0 %v2587
        %2745 = vmatprep.subr.bf16.mxu0 0
        %2746 = vmatpush1.bf16.msra.mxu0 %v2588
        %2747 = vmatprep.subr.bf16.mxu0 0
        %2748 = vmatpush1.bf16.msra.mxu0 %v2589
        %2749 = vmatprep.subr.bf16.mxu0 0
        %2750 = vmatpush1.bf16.msra.mxu0 %v2590
        %2751 = vmatprep.mubr.bf16.mxu0 %v2228
        %2752 = vmatmul.mubr.bf16.gmra.mrb[0].mxu0 %v2221
        %v2753 = vpop.f32.mrb[0].mxu0
        %v2754 = vadd.f32 0.0, %v2753
        %v2755 = vpop.f32.mrb[0].mxu0
        %v2756 = vpop.f32.mrb[0].mxu0
        %v2757 = vpop.f32.mrb[0].mxu0
        %2758 = vdwg.mxu0
        %2759 = vmatprep.subr.bf16.mxu0 0
        %2760 = vmatpush1.bf16.msra.mxu0 %v2591
        %2761 = vmatprep.subr.bf16.mxu0 0
        %2762 = vmatpush1.bf16.msra.mxu0 %v2592
        %2763 = vmatprep.subr.bf16.mxu0 0
        %2764 = vmatpush1.bf16.msra.mxu0 %v2593
        %2765 = vmatprep.subr.bf16.mxu0 0
        %2766 = vmatpush1.bf16.msra.mxu0 %v2594
        %2767 = vmatprep.subr.bf16.mxu0 0
        %2768 = vmatpush1.bf16.msra.mxu0 %v2595
        %2769 = vmatprep.subr.bf16.mxu0 0
        %2770 = vmatpush1.bf16.msra.mxu0 %v2596
        %2771 = vmatprep.subr.bf16.mxu0 0
        %2772 = vmatpush1.bf16.msra.mxu0 %v2597
        %2773 = vmatprep.subr.bf16.mxu0 0
        %2774 = vmatpush1.bf16.msra.mxu0 %v2598
        %2775 = vmatprep.subr.bf16.mxu0 0
        %2776 = vmatpush1.bf16.msra.mxu0 %v2599
        %2777 = vmatprep.subr.bf16.mxu0 0
        %2778 = vmatpush1.bf16.msra.mxu0 %v2600
        %2779 = vmatprep.subr.bf16.mxu0 0
        %2780 = vmatpush1.bf16.msra.mxu0 %v2601
        %2781 = vmatprep.subr.bf16.mxu0 0
        %2782 = vmatpush1.bf16.msra.mxu0 %v2602
        %2783 = vmatprep.subr.bf16.mxu0 0
        %2784 = vmatpush1.bf16.msra.mxu0 %v2603
        %2785 = vmatprep.subr.bf16.mxu0 0
        %2786 = vmatpush1.bf16.msra.mxu0 %v2604
        %2787 = vmatprep.subr.bf16.mxu0 0
        %2788 = vmatpush1.bf16.msra.mxu0 %v2605
        %2789 = vmatprep.subr.bf16.mxu0 0
        %2790 = vmatpush1.bf16.msra.mxu0 %v2606
        %2791 = vmatprep.mubr.bf16.mxu0 %v2242
        %2792 = vmatmul.mubr.bf16.gmra.mrb[0].mxu0 %v2235
        %v2793 = vpop.f32.mrb[0].mxu0
        %v2794 = vadd.f32 %v2754, %v2793
        %v2795 = vpop.f32.mrb[0].mxu0
        %v2796 = vpop.f32.mrb[0].mxu0
        %v2797 = vpop.f32.mrb[0].mxu0
        %2798 = vdwg.mxu0
        %2799 = vmatprep.subr.bf16.mxu0 0
        %2800 = vmatpush1.bf16.msra.mxu0 %v2607
        %2801 = vmatprep.subr.bf16.mxu0 0
        %2802 = vmatpush1.bf16.msra.mxu0 %v2608
        %2803 = vmatprep.subr.bf16.mxu0 0
        %2804 = vmatpush1.bf16.msra.mxu0 %v2609
        %2805 = vmatprep.subr.bf16.mxu0 0
        %2806 = vmatpush1.bf16.msra.mxu0 %v2610
        %2807 = vmatprep.subr.bf16.mxu0 0
        %2808 = vmatpush1.bf16.msra.mxu0 %v2611
        %2809 = vmatprep.subr.bf16.mxu0 0
        %2810 = vmatpush1.bf16.msra.mxu0 %v2612
        %2811 = vmatprep.subr.bf16.mxu0 0
        %2812 = vmatpush1.bf16.msra.mxu0 %v2613
        %2813 = vmatprep.subr.bf16.mxu0 0
        %2814 = vmatpush1.bf16.msra.mxu0 %v2614
        %2815 = vmatprep.subr.bf16.mxu0 0
        %2816 = vmatpush1.bf16.msra.mxu0 %v2615
        %2817 = vmatprep.subr.bf16.mxu0 0
        %2818 = vmatpush1.bf16.msra.mxu0 %v2616
        %2819 = vmatprep.subr.bf16.mxu0 0
        %2820 = vmatpush1.bf16.msra.mxu0 %v2617
        %2821 = vmatprep.subr.bf16.mxu0 0
        %2822 = vmatpush1.bf16.msra.mxu0 %v2618
        %2823 = vmatprep.subr.bf16.mxu0 0
        %2824 = vmatpush1.bf16.msra.mxu0 %v2619
        %2825 = vmatprep.subr.bf16.mxu0 0
        %2826 = vmatpush1.bf16.msra.mxu0 %v2620
        %2827 = vmatprep.subr.bf16.mxu0 0
        %2828 = vmatpush1.bf16.msra.mxu0 %v2621
        %2829 = vmatprep.subr.bf16.mxu0 0
        %2830 = vmatpush1.bf16.msra.mxu0 %v2622
        %2831 = vmatprep.mubr.bf16.mxu0 %v2256
        %2832 = vmatmul.mubr.bf16.gmra.mrb[0].mxu0 %v2249
        %v2833 = vpop.f32.mrb[0].mxu0
        %v2834 = vadd.f32 %v2794, %v2833
        %v2835 = vpop.f32.mrb[0].mxu0
        %v2836 = vpop.f32.mrb[0].mxu0
        %v2837 = vpop.f32.mrb[0].mxu0
        %2838 = vdwg.mxu0
        %2839 = vmatprep.subr.bf16.mxu0 0
        %2840 = vmatpush1.bf16.msra.mxu0 %v2623
        %2841 = vmatprep.subr.bf16.mxu0 0
        %2842 = vmatpush1.bf16.msra.mxu0 %v2624
        %2843 = vmatprep.subr.bf16.mxu0 0
        %2844 = vmatpush1.bf16.msra.mxu0 %v2625
        %2845 = vmatprep.subr.bf16.mxu0 0
        %2846 = vmatpush1.bf16.msra.mxu0 %v2626
        %2847 = vmatprep.subr.bf16.mxu0 0
        %2848 = vmatpush1.bf16.msra.mxu0 %v2627
        %2849 = vmatprep.subr.bf16.mxu0 0
        %2850 = vmatpush1.bf16.msra.mxu0 %v2628
        %2851 = vmatprep.subr.bf16.mxu0 0
        %2852 = vmatpush1.bf16.msra.mxu0 %v2629
        %2853 = vmatprep.subr.bf16.mxu0 0
        %2854 = vmatpush1.bf16.msra.mxu0 %v2630
        %2855 = vmatprep.subr.bf16.mxu0 0
        %2856 = vmatpush1.bf16.msra.mxu0 %v2631
        %2857 = vmatprep.subr.bf16.mxu0 0
        %2858 = vmatpush1.bf16.msra.mxu0 %v2632
        %2859 = vmatprep.subr.bf16.mxu0 0
        %2860 = vmatpush1.bf16.msra.mxu0 %v2633
        %2861 = vmatprep.subr.bf16.mxu0 0
        %2862 = vmatpush1.bf16.msra.mxu0 %v2634
        %2863 = vmatprep.subr.bf16.mxu0 0
        %2864 = vmatpush1.bf16.msra.mxu0 %v2635
        %2865 = vmatprep.subr.bf16.mxu0 0
        %2866 = vmatpush1.bf16.msra.mxu0 %v2636
        %2867 = vmatprep.subr.bf16.mxu0 0
        %2868 = vmatpush1.bf16.msra.mxu0 %v2637
        %2869 = vmatprep.subr.bf16.mxu0 0
        %2870 = vmatpush1.bf16.msra.mxu0 %v2638
        %2871 = vmatprep.mubr.bf16.mxu0 %v2270
        %2872 = vmatmul.mubr.bf16.gmra.mrb[0].mxu0 %v2263
        %v2873 = vpop.f32.mrb[0].mxu0
        %v2874 = vadd.f32 %v2834, %v2873
        %v2875 = vpop.f32.mrb[0].mxu0
        %v2876 = vpop.f32.mrb[0].mxu0
        %v2877 = vpop.f32.mrb[0].mxu0
        %2878 = vdwg.mxu0
        %2879 = vmatprep.subr.bf16.mxu0 0
        %2880 = vmatpush1.bf16.msra.mxu0 %v2639
        %2881 = vmatprep.subr.bf16.mxu0 0
        %2882 = vmatpush1.bf16.msra.mxu0 %v2640
        %2883 = vmatprep.subr.bf16.mxu0 0
        %2884 = vmatpush1.bf16.msra.mxu0 %v2641
        %2885 = vmatprep.subr.bf16.mxu0 0
        %2886 = vmatpush1.bf16.msra.mxu0 %v2642
        %2887 = vmatprep.subr.bf16.mxu0 0
        %2888 = vmatpush1.bf16.msra.mxu0 %v2643
        %2889 = vmatprep.subr.bf16.mxu0 0
        %2890 = vmatpush1.bf16.msra.mxu0 %v2644
        %2891 = vmatprep.subr.bf16.mxu0 0
        %2892 = vmatpush1.bf16.msra.mxu0 %v2645
        %2893 = vmatprep.subr.bf16.mxu0 0
        %2894 = vmatpush1.bf16.msra.mxu0 %v2646
        %2895 = vmatprep.subr.bf16.mxu0 0
        %2896 = vmatpush1.bf16.msra.mxu0 0
        %2897 = vmatprep.subr.bf16.mxu0 0
        %2898 = vmatpush1.bf16.msra.mxu0 0
        %2899 = vmatprep.subr.bf16.mxu0 0
        %2900 = vmatpush1.bf16.msra.mxu0 0
        %2901 = vmatprep.subr.bf16.mxu0 0
        %2902 = vmatpush1.bf16.msra.mxu0 0
        %2903 = vmatprep.subr.bf16.mxu0 0
        %2904 = vmatpush1.bf16.msra.mxu0 0
        %2905 = vmatprep.subr.bf16.mxu0 0
        %2906 = vmatpush1.bf16.msra.mxu0 0
        %2907 = vmatprep.subr.bf16.mxu0 0
        %2908 = vmatpush1.bf16.msra.mxu0 0
        %2909 = vmatprep.subr.bf16.mxu0 0
        %2910 = vmatpush1.bf16.msra.mxu0 0
        %2911 = vmatprep.mubr.bf16.mxu0 0
        %2912 = vmatmul.mubr.bf16.gmra.mrb[0].mxu0 %v2277
        %v2913 = vpop.f32.mrb[0].mxu0
        %v2914 = vadd.f32 %v2874, %v2913
        %v2915 = vpop.f32.mrb[0].mxu0
        %v2916 = vpop.f32.mrb[0].mxu0
        %v2917 = vpop.f32.mrb[0].mxu0
        %2918 = vdwg.mxu0
        %v2919 = vadd.f32 %v1907, %v2914
        %v2920 = vld [vmem:[%s4 + $0x1] sm:$0x1]
        %v2921 = vlaneseq
        %v2922 = vshrl.u32 %v2921, 7
        %v2923 = vsub.s32 0, %v2922
        %v2924 = vrot.slane %v2920, %v2923
        %v2925 = vadd.f32 %v2919, %v2924
        %v2926 = vxor.u32 %v2925, 2147483648
        %v2927 = vmul.f32 %v2926, 1.442695
        %v2928 = vpow.pop %v2927
        %v2929 = vadd.f32 %v2928, 1.0
        %v2930 = vrcp.pop %v2929
        %v2931 = vmul.f32 1.0, %v2930
        %v2932 = vmul.f32 %v2925, %v2931
        %v2934 = vrot.slane %v2932, 6
        %2935 = vrot.lane.b32.xlu0 %v2934, 32
        %v2936 = vpop.permute.xlu0 %2935
        %2938 = vst.msk [vmem:[#allocation2] sm:$0xfc] %vm885, %v2936
        %2939 = vst.msk [vmem:[#allocation2 + $0x8] sm:$0xfc] %vm887, %v2936
        %2940 = vst.msk [vmem:[#allocation2 + $0x10] sm:$0x3] %vm889, %v2936
        %2941 = vst.msk [vmem:[#allocation2 + $0x18] sm:$0x3] %vm891, %v2936
        %v2942 = vld [vmem:[#allocation2] sm:$0xff]
        %v2943 = vld [vmem:[%s5] sm:$0x1]
        %v2944 = vlaneseq
        %v2945 = vshrl.u32 %v2944, 7
        %v2946 = vsub.s32 0, %v2945
        %v2947 = vrot.slane %v2943, %v2946
        %v2948 = vmul.f32 %v2942, %v2947
        %v2949 = vadd.f32 %v2948, 0.0
        %v2950 = vld [vmem:[#allocation2 + $0x8] sm:$0xff]
        %v2951 = vld [vmem:[%s5 + $0x1] sm:$0x1]
        %v2952 = vlaneseq
        %v2953 = vshrl.u32 %v2952, 7
        %v2954 = vsub.s32 0, %v2953
        %v2955 = vrot.slane %v2951, %v2954
        %2957 = vrot.lane.b32.xlu0 %v2955, 16
        %v2958 = vpop.permute.xlu0 %2957
        %v2960 = vmul.f32 %v2942, %v2958
        %v2961 = vmul.f32 %v2950, %v2958
        %2964 = vrot.lane.b32.xlu0 %v2960, 112
        %v2965 = vpop.permute.xlu0 %2964
        %2966 = vrot.lane.b32.xlu0 %v2961, 112
        %v2967 = vpop.permute.xlu0 %2966
        %v2968 = vsel %vm501, %v2965, %v2967
        %v2970 = vadd.f32 %v2949, %v2968
        %v2971 = vld [vmem:[%s5 + $0x2] sm:$0x1]
        %v2972 = vlaneseq
        %v2973 = vshrl.u32 %v2972, 7
        %v2974 = vsub.s32 0, %v2973
        %v2975 = vrot.slane %v2971, %v2974
        %2977 = vrot.lane.b32.xlu0 %v2975, 32
        %v2978 = vpop.permute.xlu0 %2977
        %v2980 = vmul.f32 %v2942, %v2978
        %v2981 = vmul.f32 %v2950, %v2978
        %2984 = vrot.lane.b32.xlu0 %v2980, 96
        %v2985 = vpop.permute.xlu0 %2984
        %2986 = vrot.lane.b32.xlu0 %v2981, 96
        %v2987 = vpop.permute.xlu0 %2986
        %v2988 = vsel %vm499, %v2985, %v2987
        %v2990 = vadd.f32 %v2970, %v2988
        %v2991 = vld [vmem:[%s5 + $0x3] sm:$0x1]
        %v2992 = vlaneseq
        %v2993 = vshrl.u32 %v2992, 7
        %v2994 = vsub.s32 0, %v2993
        %v2995 = vrot.slane %v2991, %v2994
        %2997 = vrot.lane.b32.xlu0 %v2995, 48
        %v2998 = vpop.permute.xlu0 %2997
        %v3000 = vmul.f32 %v2942, %v2998
        %v3001 = vmul.f32 %v2950, %v2998
        %3004 = vrot.lane.b32.xlu0 %v3000, 80
        %v3005 = vpop.permute.xlu0 %3004
        %3006 = vrot.lane.b32.xlu0 %v3001, 80
        %v3007 = vpop.permute.xlu0 %3006
        %v3008 = vsel %vm497, %v3005, %v3007
        %v3010 = vadd.f32 %v2990, %v3008
        %v3011 = vld [vmem:[%s5 + $0x4] sm:$0x1]
        %v3012 = vlaneseq
        %v3013 = vshrl.u32 %v3012, 7
        %v3014 = vsub.s32 0, %v3013
        %v3015 = vrot.slane %v3011, %v3014
        %3017 = vrot.lane.b32.xlu0 %v3015, 64
        %v3018 = vpop.permute.xlu0 %3017
        %v3020 = vmul.f32 %v2942, %v3018
        %v3021 = vmul.f32 %v2950, %v3018
        %3024 = vrot.lane.b32.xlu0 %v3020, 64
        %v3025 = vpop.permute.xlu0 %3024
        %3026 = vrot.lane.b32.xlu0 %v3021, 64
        %v3027 = vpop.permute.xlu0 %3026
        %v3028 = vsel %vm348, %v3025, %v3027
        %v3030 = vadd.f32 %v3010, %v3028
        %v3031 = vld [vmem:[#allocation2] sm:$0xfe]
        %v3032 = vld [vmem:[#allocation2 + $0x10] sm:$0x1]
        %v3033 = vld [vmem:[%s5 + $0x5] sm:$0x1]
        %v3034 = vlaneseq
        %v3035 = vshrl.u32 %v3034, 7
        %v3036 = vsub.s32 0, %v3035
        %v3037 = vrot.slane %v3033, %v3036
        %v3038 = vmul.f32 %v3031, %v3037
        %v3039 = vmul.f32 %v3032, %v3037
        %v3042 = vrot.slane %v3038, 1
        %v3043 = vrot.slane %v3039, 1
        %v3044 = vsel %vm449, %v3042, %v3043
        %v3046 = vadd.f32 %v3030, %v3044
        %v3047 = vld [vmem:[#allocation2 + $0x8] sm:$0xfe]
        %v3048 = vld [vmem:[#allocation2 + $0x18] sm:$0x1]
        %v3049 = vld [vmem:[%s5 + $0x6] sm:$0x1]
        %v3050 = vlaneseq
        %v3051 = vshrl.u32 %v3050, 7
        %v3052 = vsub.s32 0, %v3051
        %v3053 = vrot.slane %v3049, %v3052
        %3055 = vrot.lane.b32.xlu0 %v3053, 16
        %v3056 = vpop.permute.xlu0 %3055
        %v3058 = vmul.f32 %v3031, %v3056
        %v3059 = vmul.f32 %v3047, %v3056
        %v3060 = vmul.f32 %v3032, %v3056
        %v3061 = vmul.f32 %v3048, %v3056
        %v3066 = vrot.slane %v3058, 1
        %v3067 = vrot.slane %v3060, 1
        %v3068 = vsel %vm449, %v3066, %v3067
        %v3069 = vrot.slane %v3059, 1
        %v3070 = vrot.slane %v3061, 1
        %v3071 = vsel %vm449, %v3069, %v3070
        %3072 = vrot.lane.b32.xlu0 %v3068, 112
        %v3073 = vpop.permute.xlu0 %3072
        %3074 = vrot.lane.b32.xlu0 %v3071, 112
        %v3075 = vpop.permute.xlu0 %3074
        %v3076 = vsel %vm501, %v3073, %v3075
        %v3078 = vadd.f32 %v3046, %v3076
        %v3079 = vld [vmem:[%s5 + $0x7] sm:$0x1]
        %v3080 = vlaneseq
        %v3081 = vshrl.u32 %v3080, 7
        %v3082 = vsub.s32 0, %v3081
        %v3083 = vrot.slane %v3079, %v3082
        %3085 = vrot.lane.b32.xlu0 %v3083, 32
        %v3086 = vpop.permute.xlu0 %3085
        %v3088 = vmul.f32 %v3031, %v3086
        %v3089 = vmul.f32 %v3047, %v3086
        %v3090 = vmul.f32 %v3032, %v3086
        %v3091 = vmul.f32 %v3048, %v3086
        %v3096 = vrot.slane %v3088, 1
        %v3097 = vrot.slane %v3090, 1
        %v3098 = vsel %vm449, %v3096, %v3097
        %v3099 = vrot.slane %v3089, 1
        %v3100 = vrot.slane %v3091, 1
        %v3101 = vsel %vm449, %v3099, %v3100
        %3102 = vrot.lane.b32.xlu0 %v3098, 96
        %v3103 = vpop.permute.xlu0 %3102
        %3104 = vrot.lane.b32.xlu0 %v3101, 96
        %v3105 = vpop.permute.xlu0 %3104
        %v3106 = vsel %vm499, %v3103, %v3105
        %v3108 = vadd.f32 %v3078, %v3106
        %v3109 = vld [vmem:[%s5 + $0x8] sm:$0x1]
        %v3110 = vlaneseq
        %v3111 = vshrl.u32 %v3110, 7
        %v3112 = vsub.s32 0, %v3111
        %v3113 = vrot.slane %v3109, %v3112
        %3115 = vrot.lane.b32.xlu0 %v3113, 48
        %v3116 = vpop.permute.xlu0 %3115
        %v3118 = vmul.f32 %v3031, %v3116
        %v3119 = vmul.f32 %v3047, %v3116
        %v3120 = vmul.f32 %v3032, %v3116
        %v3121 = vmul.f32 %v3048, %v3116
        %v3126 = vrot.slane %v3118, 1
        %v3127 = vrot.slane %v3120, 1
        %v3128 = vsel %vm449, %v3126, %v3127
        %v3129 = vrot.slane %v3119, 1
        %v3130 = vrot.slane %v3121, 1
        %v3131 = vsel %vm449, %v3129, %v3130
        %3132 = vrot.lane.b32.xlu0 %v3128, 80
        %v3133 = vpop.permute.xlu0 %3132
        %3134 = vrot.lane.b32.xlu0 %v3131, 80
        %v3135 = vpop.permute.xlu0 %3134
        %v3136 = vsel %vm497, %v3133, %v3135
        %v3138 = vadd.f32 %v3108, %v3136
        %v3139 = vld [vmem:[%s5 + $0x9] sm:$0x1]
        %v3140 = vlaneseq
        %v3141 = vshrl.u32 %v3140, 7
        %v3142 = vsub.s32 0, %v3141
        %v3143 = vrot.slane %v3139, %v3142
        %3145 = vrot.lane.b32.xlu0 %v3143, 64
        %v3146 = vpop.permute.xlu0 %3145
        %v3148 = vmul.f32 %v3031, %v3146
        %v3149 = vmul.f32 %v3047, %v3146
        %v3150 = vmul.f32 %v3032, %v3146
        %v3151 = vmul.f32 %v3048, %v3146
        %v3156 = vrot.slane %v3148, 1
        %v3157 = vrot.slane %v3150, 1
        %v3158 = vsel %vm449, %v3156, %v3157
        %v3159 = vrot.slane %v3149, 1
        %v3160 = vrot.slane %v3151, 1
        %v3161 = vsel %vm449, %v3159, %v3160
        %3162 = vrot.lane.b32.xlu0 %v3158, 64
        %v3163 = vpop.permute.xlu0 %3162
        %3164 = vrot.lane.b32.xlu0 %v3161, 64
        %v3165 = vpop.permute.xlu0 %3164
        %v3166 = vsel %vm348, %v3163, %v3165
        %v3168 = vadd.f32 %v3138, %v3166
        %v3169 = vld [vmem:[#allocation2] sm:$0xfc]
        %v3170 = vld [vmem:[#allocation2 + $0x10] sm:$0x3]
        %v3171 = vld [vmem:[%s5 + $0xa] sm:$0x1]
        %v3172 = vlaneseq
        %v3173 = vshrl.u32 %v3172, 7
        %v3174 = vsub.s32 0, %v3173
        %v3175 = vrot.slane %v3171, %v3174
        %v3176 = vmul.f32 %v3169, %v3175
        %v3177 = vmul.f32 %v3170, %v3175
        %v3180 = vrot.slane %v3176, 2
        %v3181 = vrot.slane %v3177, 2
        %v3182 = vsel %vm360, %v3180, %v3181
        %v3184 = vadd.f32 %v3168, %v3182
        %v3185 = vld [vmem:[#allocation2 + $0x8] sm:$0xfc]
        %v3186 = vld [vmem:[#allocation2 + $0x18] sm:$0x3]
        %v3187 = vld [vmem:[%s5 + $0xb] sm:$0x1]
        %v3188 = vlaneseq
        %v3189 = vshrl.u32 %v3188, 7
        %v3190 = vsub.s32 0, %v3189
        %v3191 = vrot.slane %v3187, %v3190
        %3193 = vrot.lane.b32.xlu0 %v3191, 16
        %v3194 = vpop.permute.xlu0 %3193
        %v3196 = vmul.f32 %v3169, %v3194
        %v3197 = vmul.f32 %v3185, %v3194
        %v3198 = vmul.f32 %v3170, %v3194
        %v3199 = vmul.f32 %v3186, %v3194
        %v3204 = vrot.slane %v3196, 2
        %v3205 = vrot.slane %v3198, 2
        %v3206 = vsel %vm360, %v3204, %v3205
        %v3207 = vrot.slane %v3197, 2
        %v3208 = vrot.slane %v3199, 2
        %v3209 = vsel %vm360, %v3207, %v3208
        %3210 = vrot.lane.b32.xlu0 %v3206, 112
        %v3211 = vpop.permute.xlu0 %3210
        %3212 = vrot.lane.b32.xlu0 %v3209, 112
        %v3213 = vpop.permute.xlu0 %3212
        %v3214 = vsel %vm501, %v3211, %v3213
        %v3216 = vadd.f32 %v3184, %v3214
        %v3217 = vld [vmem:[%s5 + $0xc] sm:$0x1]
        %v3218 = vlaneseq
        %v3219 = vshrl.u32 %v3218, 7
        %v3220 = vsub.s32 0, %v3219
        %v3221 = vrot.slane %v3217, %v3220
        %3223 = vrot.lane.b32.xlu0 %v3221, 32
        %v3224 = vpop.permute.xlu0 %3223
        %v3226 = vmul.f32 %v3169, %v3224
        %v3227 = vmul.f32 %v3185, %v3224
        %v3228 = vmul.f32 %v3170, %v3224
        %v3229 = vmul.f32 %v3186, %v3224
        %v3234 = vrot.slane %v3226, 2
        %v3235 = vrot.slane %v3228, 2
        %v3236 = vsel %vm360, %v3234, %v3235
        %v3237 = vrot.slane %v3227, 2
        %v3238 = vrot.slane %v3229, 2
        %v3239 = vsel %vm360, %v3237, %v3238
        %3240 = vrot.lane.b32.xlu0 %v3236, 96
        %v3241 = vpop.permute.xlu0 %3240
        %3242 = vrot.lane.b32.xlu0 %v3239, 96
        %v3243 = vpop.permute.xlu0 %3242
        %v3244 = vsel %vm499, %v3241, %v3243
        %v3246 = vadd.f32 %v3216, %v3244
        %v3247 = vld [vmem:[%s5 + $0xd] sm:$0x1]
        %v3248 = vlaneseq
        %v3249 = vshrl.u32 %v3248, 7
        %v3250 = vsub.s32 0, %v3249
        %v3251 = vrot.slane %v3247, %v3250
        %3253 = vrot.lane.b32.xlu0 %v3251, 48
        %v3254 = vpop.permute.xlu0 %3253
        %v3256 = vmul.f32 %v3169, %v3254
        %v3257 = vmul.f32 %v3185, %v3254
        %v3258 = vmul.f32 %v3170, %v3254
        %v3259 = vmul.f32 %v3186, %v3254
        %v3264 = vrot.slane %v3256, 2
        %v3265 = vrot.slane %v3258, 2
        %v3266 = vsel %vm360, %v3264, %v3265
        %v3267 = vrot.slane %v3257, 2
        %v3268 = vrot.slane %v3259, 2
        %v3269 = vsel %vm360, %v3267, %v3268
        %3270 = vrot.lane.b32.xlu0 %v3266, 80
        %v3271 = vpop.permute.xlu0 %3270
        %3272 = vrot.lane.b32.xlu0 %v3269, 80
        %v3273 = vpop.permute.xlu0 %3272
        %v3274 = vsel %vm497, %v3271, %v3273
        %v3276 = vadd.f32 %v3246, %v3274
        %v3277 = vld [vmem:[%s5 + $0xe] sm:$0x1]
        %v3278 = vlaneseq
        %v3279 = vshrl.u32 %v3278, 7
        %v3280 = vsub.s32 0, %v3279
        %v3281 = vrot.slane %v3277, %v3280
        %3283 = vrot.lane.b32.xlu0 %v3281, 64
        %v3284 = vpop.permute.xlu0 %3283
        %v3286 = vmul.f32 %v3169, %v3284
        %v3287 = vmul.f32 %v3185, %v3284
        %v3288 = vmul.f32 %v3170, %v3284
        %v3289 = vmul.f32 %v3186, %v3284
        %v3294 = vrot.slane %v3286, 2
        %v3295 = vrot.slane %v3288, 2
        %v3296 = vsel %vm360, %v3294, %v3295
        %v3297 = vrot.slane %v3287, 2
        %v3298 = vrot.slane %v3289, 2
        %v3299 = vsel %vm360, %v3297, %v3298
        %3300 = vrot.lane.b32.xlu0 %v3296, 64
        %v3301 = vpop.permute.xlu0 %3300
        %3302 = vrot.lane.b32.xlu0 %v3299, 64
        %v3303 = vpop.permute.xlu0 %3302
        %v3304 = vsel %vm348, %v3301, %v3303
        %v3306 = vadd.f32 %v3276, %v3304
        %v3307 = vld [vmem:[#allocation2] sm:$0xf8]
        %v3308 = vld [vmem:[#allocation2 + $0x10] sm:$0x7]
        %v3309 = vld [vmem:[%s5 + $0xf] sm:$0x1]
        %v3310 = vlaneseq
        %v3311 = vshrl.u32 %v3310, 7
        %v3312 = vsub.s32 0, %v3311
        %v3313 = vrot.slane %v3309, %v3312
        %v3314 = vmul.f32 %v3307, %v3313
        %v3315 = vmul.f32 %v3308, %v3313
        %v3318 = vrot.slane %v3314, 3
        %v3319 = vrot.slane %v3315, 3
        %v3320 = vsel %vm483, %v3318, %v3319
        %v3322 = vadd.f32 %v3306, %v3320
        %v3323 = vld [vmem:[#allocation2 + $0x8] sm:$0xf8]
        %v3324 = vld [vmem:[#allocation2 + $0x18] sm:$0x7]
        %v3325 = vld [vmem:[%s5 + $0x10] sm:$0x1]
        %v3326 = vlaneseq
        %v3327 = vshrl.u32 %v3326, 7
        %v3328 = vsub.s32 0, %v3327
        %v3329 = vrot.slane %v3325, %v3328
        %3331 = vrot.lane.b32.xlu0 %v3329, 16
        %v3332 = vpop.permute.xlu0 %3331
        %v3334 = vmul.f32 %v3307, %v3332
        %v3335 = vmul.f32 %v3323, %v3332
        %v3336 = vmul.f32 %v3308, %v3332
        %v3337 = vmul.f32 %v3324, %v3332
        %v3342 = vrot.slane %v3334, 3
        %v3343 = vrot.slane %v3336, 3
        %v3344 = vsel %vm483, %v3342, %v3343
        %v3345 = vrot.slane %v3335, 3
        %v3346 = vrot.slane %v3337, 3
        %v3347 = vsel %vm483, %v3345, %v3346
        %3348 = vrot.lane.b32.xlu0 %v3344, 112
        %v3349 = vpop.permute.xlu0 %3348
        %3350 = vrot.lane.b32.xlu0 %v3347, 112
        %v3351 = vpop.permute.xlu0 %3350
        %v3352 = vsel %vm501, %v3349, %v3351
        %v3354 = vadd.f32 %v3322, %v3352
        %v3355 = vld [vmem:[%s5 + $0x11] sm:$0x1]
        %v3356 = vlaneseq
        %v3357 = vshrl.u32 %v3356, 7
        %v3358 = vsub.s32 0, %v3357
        %v3359 = vrot.slane %v3355, %v3358
        %3361 = vrot.lane.b32.xlu0 %v3359, 32
        %v3362 = vpop.permute.xlu0 %3361
        %v3364 = vmul.f32 %v3307, %v3362
        %v3365 = vmul.f32 %v3323, %v3362
        %v3366 = vmul.f32 %v3308, %v3362
        %v3367 = vmul.f32 %v3324, %v3362
        %v3372 = vrot.slane %v3364, 3
        %v3373 = vrot.slane %v3366, 3
        %v3374 = vsel %vm483, %v3372, %v3373
        %v3375 = vrot.slane %v3365, 3
        %v3376 = vrot.slane %v3367, 3
        %v3377 = vsel %vm483, %v3375, %v3376
        %3378 = vrot.lane.b32.xlu0 %v3374, 96
        %v3379 = vpop.permute.xlu0 %3378
        %3380 = vrot.lane.b32.xlu0 %v3377, 96
        %v3381 = vpop.permute.xlu0 %3380
        %v3382 = vsel %vm499, %v3379, %v3381
        %v3384 = vadd.f32 %v3354, %v3382
        %v3385 = vld [vmem:[%s5 + $0x12] sm:$0x1]
        %v3386 = vlaneseq
        %v3387 = vshrl.u32 %v3386, 7
        %v3388 = vsub.s32 0, %v3387
        %v3389 = vrot.slane %v3385, %v3388
        %3391 = vrot.lane.b32.xlu0 %v3389, 48
        %v3392 = vpop.permute.xlu0 %3391
        %v3394 = vmul.f32 %v3307, %v3392
        %v3395 = vmul.f32 %v3323, %v3392
        %v3396 = vmul.f32 %v3308, %v3392
        %v3397 = vmul.f32 %v3324, %v3392
        %v3402 = vrot.slane %v3394, 3
        %v3403 = vrot.slane %v3396, 3
        %v3404 = vsel %vm483, %v3402, %v3403
        %v3405 = vrot.slane %v3395, 3
        %v3406 = vrot.slane %v3397, 3
        %v3407 = vsel %vm483, %v3405, %v3406
        %3408 = vrot.lane.b32.xlu0 %v3404, 80
        %v3409 = vpop.permute.xlu0 %3408
        %3410 = vrot.lane.b32.xlu0 %v3407, 80
        %v3411 = vpop.permute.xlu0 %3410
        %v3412 = vsel %vm497, %v3409, %v3411
        %v3414 = vadd.f32 %v3384, %v3412
        %v3415 = vld [vmem:[%s5 + $0x13] sm:$0x1]
        %v3416 = vlaneseq
        %v3417 = vshrl.u32 %v3416, 7
        %v3418 = vsub.s32 0, %v3417
        %v3419 = vrot.slane %v3415, %v3418
        %3421 = vrot.lane.b32.xlu0 %v3419, 64
        %v3422 = vpop.permute.xlu0 %3421
        %v3424 = vmul.f32 %v3307, %v3422
        %v3425 = vmul.f32 %v3323, %v3422
        %v3426 = vmul.f32 %v3308, %v3422
        %v3427 = vmul.f32 %v3324, %v3422
        %v3432 = vrot.slane %v3424, 3
        %v3433 = vrot.slane %v3426, 3
        %v3434 = vsel %vm483, %v3432, %v3433
        %v3435 = vrot.slane %v3425, 3
        %v3436 = vrot.slane %v3427, 3
        %v3437 = vsel %vm483, %v3435, %v3436
        %3438 = vrot.lane.b32.xlu0 %v3434, 64
        %v3439 = vpop.permute.xlu0 %3438
        %3440 = vrot.lane.b32.xlu0 %v3437, 64
        %v3441 = vpop.permute.xlu0 %3440
        %v3442 = vsel %vm348, %v3439, %v3441
        %v3444 = vadd.f32 %v3414, %v3442
        %v3445 = vld [vmem:[#allocation2] sm:$0xf0]
        %v3446 = vld [vmem:[#allocation2 + $0x10] sm:$0xf]
        %v3447 = vld [vmem:[%s5 + $0x14] sm:$0x1]
        %v3448 = vlaneseq
        %v3449 = vshrl.u32 %v3448, 7
        %v3450 = vsub.s32 0, %v3449
        %v3451 = vrot.slane %v3447, %v3450
        %v3452 = vmul.f32 %v3445, %v3451
        %v3453 = vmul.f32 %v3446, %v3451
        %vm3456 = vcmask 1043456
        %v3457 = vrot.slane %v3452, 4
        %v3458 = vrot.slane %v3453, 4
        %v3459 = vsel %vm3456, %v3457, %v3458
        %v3461 = vadd.f32 %v3444, %v3459
        %v3462 = vld [vmem:[#allocation2 + $0x8] sm:$0xf0]
        %v3463 = vld [vmem:[#allocation2 + $0x18] sm:$0xf]
        %v3464 = vld [vmem:[%s5 + $0x15] sm:$0x1]
        %v3465 = vlaneseq
        %v3466 = vshrl.u32 %v3465, 7
        %v3467 = vsub.s32 0, %v3466
        %v3468 = vrot.slane %v3464, %v3467
        %3470 = vrot.lane.b32.xlu0 %v3468, 16
        %v3471 = vpop.permute.xlu0 %3470
        %v3473 = vmul.f32 %v3445, %v3471
        %v3474 = vmul.f32 %v3462, %v3471
        %v3475 = vmul.f32 %v3446, %v3471
        %v3476 = vmul.f32 %v3463, %v3471
        %v3481 = vrot.slane %v3473, 4
        %v3482 = vrot.slane %v3475, 4
        %v3483 = vsel %vm3456, %v3481, %v3482
        %v3484 = vrot.slane %v3474, 4
        %v3485 = vrot.slane %v3476, 4
        %v3486 = vsel %vm3456, %v3484, %v3485
        %3487 = vrot.lane.b32.xlu0 %v3483, 112
        %v3488 = vpop.permute.xlu0 %3487
        %3489 = vrot.lane.b32.xlu0 %v3486, 112
        %v3490 = vpop.permute.xlu0 %3489
        %v3491 = vsel %vm501, %v3488, %v3490
        %v3493 = vadd.f32 %v3461, %v3491
        %v3494 = vld [vmem:[%s5 + $0x16] sm:$0x1]
        %v3495 = vlaneseq
        %v3496 = vshrl.u32 %v3495, 7
        %v3497 = vsub.s32 0, %v3496
        %v3498 = vrot.slane %v3494, %v3497
        %3500 = vrot.lane.b32.xlu0 %v3498, 32
        %v3501 = vpop.permute.xlu0 %3500
        %v3503 = vmul.f32 %v3445, %v3501
        %v3504 = vmul.f32 %v3462, %v3501
        %v3505 = vmul.f32 %v3446, %v3501
        %v3506 = vmul.f32 %v3463, %v3501
        %v3511 = vrot.slane %v3503, 4
        %v3512 = vrot.slane %v3505, 4
        %v3513 = vsel %vm3456, %v3511, %v3512
        %v3514 = vrot.slane %v3504, 4
        %v3515 = vrot.slane %v3506, 4
        %v3516 = vsel %vm3456, %v3514, %v3515
        %3517 = vrot.lane.b32.xlu0 %v3513, 96
        %v3518 = vpop.permute.xlu0 %3517
        %3519 = vrot.lane.b32.xlu0 %v3516, 96
        %v3520 = vpop.permute.xlu0 %3519
        %v3521 = vsel %vm499, %v3518, %v3520
        %v3523 = vadd.f32 %v3493, %v3521
        %v3524 = vld [vmem:[%s5 + $0x17] sm:$0x1]
        %v3525 = vlaneseq
        %v3526 = vshrl.u32 %v3525, 7
        %v3527 = vsub.s32 0, %v3526
        %v3528 = vrot.slane %v3524, %v3527
        %3530 = vrot.lane.b32.xlu0 %v3528, 48
        %v3531 = vpop.permute.xlu0 %3530
        %v3533 = vmul.f32 %v3445, %v3531
        %v3534 = vmul.f32 %v3462, %v3531
        %v3535 = vmul.f32 %v3446, %v3531
        %v3536 = vmul.f32 %v3463, %v3531
        %v3541 = vrot.slane %v3533, 4
        %v3542 = vrot.slane %v3535, 4
        %v3543 = vsel %vm3456, %v3541, %v3542
        %v3544 = vrot.slane %v3534, 4
        %v3545 = vrot.slane %v3536, 4
        %v3546 = vsel %vm3456, %v3544, %v3545
        %3547 = vrot.lane.b32.xlu0 %v3543, 80
        %v3548 = vpop.permute.xlu0 %3547
        %3549 = vrot.lane.b32.xlu0 %v3546, 80
        %v3550 = vpop.permute.xlu0 %3549
        %v3551 = vsel %vm497, %v3548, %v3550
        %v3553 = vadd.f32 %v3523, %v3551
        %v3554 = vld [vmem:[%s5 + $0x18] sm:$0x1]
        %v3555 = vlaneseq
        %v3556 = vshrl.u32 %v3555, 7
        %v3557 = vsub.s32 0, %v3556
        %v3558 = vrot.slane %v3554, %v3557
        %3560 = vrot.lane.b32.xlu0 %v3558, 64
        %v3561 = vpop.permute.xlu0 %3560
        %v3563 = vmul.f32 %v3445, %v3561
        %v3564 = vmul.f32 %v3462, %v3561
        %v3565 = vmul.f32 %v3446, %v3561
        %v3566 = vmul.f32 %v3463, %v3561
        %v3571 = vrot.slane %v3563, 4
        %v3572 = vrot.slane %v3565, 4
        %v3573 = vsel %vm3456, %v3571, %v3572
        %v3574 = vrot.slane %v3564, 4
        %v3575 = vrot.slane %v3566, 4
        %v3576 = vsel %vm3456, %v3574, %v3575
        %3577 = vrot.lane.b32.xlu0 %v3573, 64
        %v3578 = vpop.permute.xlu0 %3577
        %3579 = vrot.lane.b32.xlu0 %v3576, 64
        %v3580 = vpop.permute.xlu0 %3579
        %v3581 = vsel %vm348, %v3578, %v3580
        %v3583 = vadd.f32 %v3553, %v3581
        %v3584 = vld [vmem:[%s6] sm:$0xff]
        %v3585 = vld [vmem:[%s6 + $0x8] sm:$0xff]
        %v3586 = vld [vmem:[%s6 + $0x10] sm:$0xff]
        %v3587 = vld [vmem:[%s6 + $0x18] sm:$0xff]
        %v3588 = vld [vmem:[%s6 + $0x20] sm:$0xff]
        %v3589 = vld [vmem:[%s6 + $0x28] sm:$0xff]
        %v3590 = vld [vmem:[%s6 + $0x30] sm:$0xff]
        %v3591 = vld [vmem:[%s6 + $0x38] sm:$0xff]
        %v3592 = vld [vmem:[%s6 + $0x40] sm:$0xff]
        %v3593 = vld [vmem:[%s6 + $0x48] sm:$0xff]
        %v3594 = vld [vmem:[%s6 + $0x50] sm:$0xff]
        %v3595 = vld [vmem:[%s6 + $0x58] sm:$0xff]
        %v3596 = vld [vmem:[%s6 + $0x60] sm:$0xff]
        %v3597 = vld [vmem:[%s6 + $0x68] sm:$0xff]
        %v3598 = vld [vmem:[%s6 + $0x70] sm:$0xff]
        %v3599 = vld [vmem:[%s6 + $0x78] sm:$0xff]
        %v3600 = vld [vmem:[%s8] sm:$0xff]
        %3601 = vmatprep.subr.mxu0 0.0
        %3602 = vmatpush1.msra.mxu0 %v3584
        %3603 = vmatprep.subr.mxu0 0.0
        %3604 = vmatpush1.msra.mxu0 %v3585
        %3605 = vmatprep.subr.mxu0 0.0
        %3606 = vmatpush1.msra.mxu0 %v3586
        %3607 = vmatprep.subr.mxu0 0.0
        %3608 = vmatpush1.msra.mxu0 %v3587
        %3609 = vmatprep.subr.mxu0 0.0
        %3610 = vmatpush1.msra.mxu0 %v3588
        %3611 = vmatprep.subr.mxu0 0.0
        %3612 = vmatpush1.msra.mxu0 %v3589
        %3613 = vmatprep.subr.mxu0 0.0
        %3614 = vmatpush1.msra.mxu0 %v3590
        %3615 = vmatprep.subr.mxu0 0.0
        %3616 = vmatpush1.msra.mxu0 %v3591
        %3617 = vmatprep.subr.mxu0 0.0
        %3618 = vmatpush1.msra.mxu0 %v3592
        %3619 = vmatprep.subr.mxu0 0.0
        %3620 = vmatpush1.msra.mxu0 %v3593
        %3621 = vmatprep.subr.mxu0 0.0
        %3622 = vmatpush1.msra.mxu0 %v3594
        %3623 = vmatprep.subr.mxu0 0.0
        %3624 = vmatpush1.msra.mxu0 %v3595
        %3625 = vmatprep.subr.mxu0 0.0
        %3626 = vmatpush1.msra.mxu0 %v3596
        %3627 = vmatprep.subr.mxu0 0.0
        %3628 = vmatpush1.msra.mxu0 %v3597
        %3629 = vmatprep.subr.mxu0 0.0
        %3630 = vmatpush1.msra.mxu0 %v3598
        %3631 = vmatprep.subr.mxu0 0.0
        %3632 = vmatpush1.msra.mxu0 %v3599
        %3633 = vmatprep.subr.mxu0 0.0
        %3634 = vmatpush1.msra.mxu0 0.0
        %3635 = vmatprep.subr.mxu0 0.0
        %3636 = vmatpush1.msra.mxu0 0.0
        %3637 = vmatprep.subr.mxu0 0.0
        %3638 = vmatpush1.msra.mxu0 0.0
        %3639 = vmatprep.subr.mxu0 0.0
        %3640 = vmatpush1.msra.mxu0 0.0
        %3641 = vmatprep.subr.mxu0 0.0
        %3642 = vmatpush1.msra.mxu0 0.0
        %3643 = vmatprep.subr.mxu0 0.0
        %3644 = vmatpush1.msra.mxu0 0.0
        %3645 = vmatprep.subr.mxu0 0.0
        %3646 = vmatpush1.msra.mxu0 0.0
        %3647 = vmatprep.subr.mxu0 0.0
        %3648 = vmatpush1.msra.mxu0 0.0
        %3649 = vmatprep.subr.mxu0 0.0
        %3650 = vmatpush1.msra.mxu0 0.0
        %3651 = vmatprep.subr.mxu0 0.0
        %3652 = vmatpush1.msra.mxu0 0.0
        %3653 = vmatprep.subr.mxu0 0.0
        %3654 = vmatpush1.msra.mxu0 0.0
        %3655 = vmatprep.subr.mxu0 0.0
        %3656 = vmatpush1.msra.mxu0 0.0
        %3657 = vmatprep.subr.mxu0 0.0
        %3658 = vmatpush1.msra.mxu0 0.0
        %3659 = vmatprep.subr.mxu0 0.0
        %3660 = vmatpush1.msra.mxu0 0.0
        %3661 = vmatprep.subr.mxu0 0.0
        %3662 = vmatpush1.msra.mxu0 0.0
        %3663 = vmatprep.subr.mxu0 0.0
        %3664 = vmatpush1.msra.mxu0 0.0
        %3665 = vmatprep.mubr.f32.mxu0 0.0
        %3666 = vmatmul.mubr.f32.gmra.mrb[0].mxu0 %v3583
        %v3667 = vpop.f32.mrb[0].mxu0
        %v3668 = vadd.f32 %v3600, %v3667
        %v3669 = vpop.f32.mrb[0].mxu0
        %3670 = vdwg.mxu0
        %vm3671 = vcmask 64512
        %v3672 = vsel %vm3671, %v434, 0.0
        %3673 = vadd.xlane.f32.xlu0 %v3672
        %v3674 = vpop.xlane.xlu0 %3673
        %v3675 = vrot.slane %v3674, 4
        %v3676 = vadd.f32 %v3674, %v3675
        %v3677 = vrot.slane %v3676, 2
        %v3678 = vadd.f32 %v3676, %v3677
        %v3679 = vrot.slane %v3678, 1
        %v3680 = vadd.f32 %v3678, %v3679
        %s3681 = vtos %v3680
        %v3682 = vstv %s3681
        %v3683 = vsub.f32 %v3682, 1.0
        %v3684 = vmul.f32 %v3683, 1000.0
        %v3685 = vtanh.pop %v3684
        %v3686 = vmul.f32 %v3685, 10.0
        %v3687 = vmul.f32 %v3686, 1.442695
        %v3688 = vpow.pop %v3687
        %v3689 = vsub.f32 %v3688, 1.0
        %v3690 = vmul.f32 %v434, %v3689
        %v3691 = vsub.f32 %v3668, %v3690
        %3692 = vst.msk [vmem:[%s345] sm:$0xff] %vm3671, %v3691
        %p3693 = scmp.lt.s32.totalorder %s21, 1
        %s3694 = scalar_select %p3693, %s21, 1
        %s3695 = smul.addr %s3694, 8
        %s3696 = scalar_lea.vmem %s9, %s3695
        // Predicated region
        $region61: #{conv_forward.1} parent=55 // pred_check
          %p3697 = pneg %p233
        $region62: #{conv_forward.1} parent=55 // pred_check_branch
          %3699 = sbr.rel (%p3697) target = $region64
        $region63: #{conv_forward.1} parent=55 // pred_region
          _
        $region64: #{conv_forward.1} parent=55 // pred_fallthru
          _
      $region56: #{conv_forward.1} parent=5 // pred_fallthru
        _
      %p3700 = scmp.le.s32.totalorder 2, %s16
      // Predicated region
      $region65: #{conv_forward.1} parent=5 // pred_check
        %p3701 = pneg %p3700
      $region66: #{conv_forward.1} parent=5 // pred_check_branch
        %3703 = sbr.rel (%p3701) target = $region68
      $region67: #{conv_forward.1} parent=5 // pred_region
        %s3704 = ssub.s32 %s16, 2
        // Predicated region
        $region69: #{conv_forward.1} parent=67 // pred_check
          %p3705 = pneg %p239
        $region70: #{conv_forward.1} parent=67 // pred_check_branch
          %3707 = sbr.rel (%p3705) target = $region72
        $region71: #{conv_forward.1} parent=67 // pred_region
          %p3708 = scmp.lt.s32.totalorder %s22, 1
          %s3709 = scalar_select %p3708, %s22, 1
          %s3710 = smul.addr %s3709, 8
          %s3711 = scalar_lea.vmem %s9, %s3710
        $region72: #{conv_forward.1} parent=67 // pred_fallthru
          _
      $region68: #{conv_forward.1} parent=5 // pred_fallthru
        _
    $region6: #{conv_forward.1} parent=1 // loop_footer
      %s20 = sadd.s32 1, %s16
    $region7: #{conv_forward.1} parent=1 // loop_footer_branch
      %15 = sbr.rel target = $region3
    $region8: #{conv_forward.1} parent=1 // loop_exit
      _
    %3712 = vsyncpa [#allocation4], 1
    %s3713 = scalar_lea.sflag [#allocation4], 1
    %3714 = vsyncpa %s3713, 1

</llo_original>
